<compile_context>
chip_gen: v7x
topology: tpu7x:2x2x1
jax: 0.10.0
libtpu: 0.0.40
codegen_flags: <defaults>
</compile_context>

<pallas_src>
import jax
import jax.numpy as jnp
from jax.experimental import pallas as pl
from jax.experimental.pallas import tpu as pltpu

BN_EPS = 1e-5


def _double_conv_kernel(x_ref,        # (H, W, Cin)   one image, NHWC, f32
                        dw1_ref,      # (3, 3, Cin)   depthwise #1 taps
                        w1_ref,       # (Cin, Cmid)   pointwise #1, BN-folded
                        off1_ref,     # (1, Cmid)     fused bias+BN offset #1
                        dw2_ref,      # (3, 3, Cmid)  depthwise #2 taps
                        w2t_ref,      # (Cout, Cmid)  pointwise #2, BN-folded (channel-major)
                        off2_ref,     # (Cout, 1)     fused bias+BN offset #2
                        o_ref,        # (Cout, H*W)   lane-dense output
                        xpad_ref,     # scratch (H+2, W+2, Cin)
                        midpad_ref):  # scratch (H+2, W+2, Cmid)
    H, W, Cin = x_ref.shape
    Cmid = w1_ref.shape[1]
    f32 = jnp.float32

    # ---- fuse conv #1's padding=1 into the kernel: zero only the 1-pixel
    # border strips.  The interior is fully overwritten every grid step, so
    # this stays correct even though scratch persists across iterations/cores.
    xpad_ref[0:1, :, :] = jnp.zeros((1, W + 2, Cin), f32)
    xpad_ref[H + 1:H + 2, :, :] = jnp.zeros((1, W + 2, Cin), f32)
    xpad_ref[:, 0:1, :] = jnp.zeros((H + 2, 1, Cin), f32)
    xpad_ref[:, W + 1:W + 2, :] = jnp.zeros((H + 2, 1, Cin), f32)
    xpad_ref[1:H + 1, 1:W + 1, :] = x_ref[...]

    # ---- depthwise 3x3 conv #1: 9 shifted FMAs, tap windows read directly
    # from the padded ref at static offsets.
    dw1 = dw1_ref[...]
    acc1 = jnp.zeros((H, W, Cin), f32)
    for dy in range(3):
        for dx in range(3):
            acc1 = acc1 + (xpad_ref[dy:dy + H, dx:dx + W, :]
                           * dw1[dy, dx].reshape(1, 1, Cin))

    # ---- pointwise 1x1 conv #1 (MXU) with depthwise bias + pointwise bias +
    # BatchNorm #1 folded into (w1, off1), then ReLU.
    mid = jnp.dot(acc1.reshape(H * W, Cin), w1_ref[...],
                  preferred_element_type=f32)
    mid = jnp.maximum(mid + off1_ref[...], 0.0)

    # ---- stage the ReLU output into the second halo scratch (borders only).
    midpad_ref[0:1, :, :] = jnp.zeros((1, W + 2, Cmid), f32)
    midpad_ref[H + 1:H + 2, :, :] = jnp.zeros((1, W + 2, Cmid), f32)
    midpad_ref[:, 0:1, :] = jnp.zeros((H + 2, 1, Cmid), f32)
    midpad_ref[:, W + 1:W + 2, :] = jnp.zeros((H + 2, 1, Cmid), f32)
    midpad_ref[1:H + 1, 1:W + 1, :] = mid.reshape(H, W, Cmid)

    # ---- depthwise 3x3 conv #2.
    dw2 = dw2_ref[...]
    acc2 = jnp.zeros((H, W, Cmid), f32)
    for dy in range(3):
        for dx in range(3):
            acc2 = acc2 + (midpad_ref[dy:dy + H, dx:dx + W, :]
                           * dw2[dy, dx].reshape(1, 1, Cmid))

    # ---- pointwise 1x1 conv #2 computed channel-major so the output store is
    # lane-dense: out_t[c, s] = sum_k w2t[c, k] * acc2_flat[s, k].
    flat2 = acc2.reshape(H * W, Cmid)
    out_t = jax.lax.dot_general(
        w2t_ref[...], flat2,
        dimension_numbers=(((1,), (1,)), ((), ())),   # trans_b form
        preferred_element_type=f32)                   # (Cout, H*W)
    o_ref[...] = jnp.maximum(out_t + off2_ref[...], 0.0)


def double_conv_pallas(x_nchw, params):
    """Runs DoubleConv.  x_nchw: (N, Cin, H, W) float32, PyTorch layout."""
    p = params
    N, Cin, H, W = x_nchw.shape
    Cmid = p["pw1_w"].shape[0]
    Cout = p["pw2_w"].shape[0]

    # NCHW -> NHWC (channels on the lane axis).  No jnp.pad: the halo is built
    # inside the kernel.
    # TODO(synk): if the surrounding model runs NHWC natively, drop this.
    x_nhwc = jnp.transpose(x_nchw, (0, 2, 3, 1)).astype(jnp.float32)

    # Depthwise weights: (C, 1, 3, 3) -> (3, 3, C).
    dw1_w = jnp.transpose(p["dw1_w"][:, 0, :, :], (1, 2, 0))
    dw2_w = jnp.transpose(p["dw2_w"][:, 0, :, :], (1, 2, 0))

    # Fold eval-mode BatchNorm + all conv biases into the pointwise weights and
    # a single per-channel offset per stage:
    #   stage(x) = relu( DW(x) @ (W_pw * s) + ((b_dw @ W_pw + b_pw) * s + o) )
    bn1_s = p["bn1_gamma"] / jnp.sqrt(p["bn1_var"] + BN_EPS)
    bn1_o = p["bn1_beta"] - p["bn1_mean"] * bn1_s
    bn2_s = p["bn2_gamma"] / jnp.sqrt(p["bn2_var"] + BN_EPS)
    bn2_o = p["bn2_beta"] - p["bn2_mean"] * bn2_s

    pw1 = p["pw1_w"][:, :, 0, 0]                               # (Cmid, Cin)
    w1 = jnp.transpose(pw1, (1, 0)) * bn1_s[None, :]           # (Cin, Cmid)
    off1 = ((p["pw1_b"] + pw1 @ p["dw1_b"]) * bn1_s + bn1_o).reshape(1, Cmid)

    pw2 = p["pw2_w"][:, :, 0, 0]                               # (Cout, Cmid)
    w2t = pw2 * bn2_s[:, None]                                 # (Cout, Cmid)
    off2 = ((p["pw2_b"] + pw2 @ p["dw2_b"]) * bn2_s + bn2_o).reshape(Cout, 1)

    flops = 2 * N * H * W * (9 * Cin + Cin * Cmid + 9 * Cmid + Cmid * Cout)
    bytes_accessed = 4 * N * H * W * (Cin + Cout)

    out_flat = pl.pallas_call(
        _double_conv_kernel,
        out_shape=jax.ShapeDtypeStruct((N, Cout, H * W), jnp.float32),
        grid=(N,),
        in_specs=[
            pl.BlockSpec((None, H, W, Cin), lambda n: (n, 0, 0, 0)),
            pl.BlockSpec((3, 3, Cin), lambda n: (0, 0, 0)),
            pl.BlockSpec((Cin, Cmid), lambda n: (0, 0)),
            pl.BlockSpec((1, Cmid), lambda n: (0, 0)),
            pl.BlockSpec((3, 3, Cmid), lambda n: (0, 0, 0)),
            pl.BlockSpec((Cout, Cmid), lambda n: (0, 0)),
            pl.BlockSpec((Cout, 1), lambda n: (0, 0)),
        ],
        out_specs=pl.BlockSpec((None, Cout, H * W), lambda n: (n, 0, 0)),
        scratch_shapes=[
            pltpu.VMEM((H + 2, W + 2, Cin), jnp.float32),
            pltpu.VMEM((H + 2, W + 2, Cmid), jnp.float32),
        ],
        compiler_params=pltpu.CompilerParams(
            dimension_semantics=("parallel",),
            vmem_limit_bytes=32 * 1024 * 1024),
        cost_estimate=pl.CostEstimate(
            flops=flops, transcendentals=0, bytes_accessed=bytes_accessed),
    )(x_nhwc, dw1_w, w1, off1, dw2_w, w2t, off2)

    # (N, Cout, H*W) -> (N, Cout, H, W): pure reshape, no HBM transpose.
    return out_flat.reshape(N, Cout, H, W)


# ---------------- pure-JAX reference (mirrors PyTorch eval forward) ----------
def double_conv_ref(x, p):
    def conv_dw(x, w, b):
        y = jax.lax.conv_general_dilated(
            x, w, (1, 1), ((1, 1), (1, 1)),
            dimension_numbers=("NCHW", "OIHW", "NCHW"),
            feature_group_count=x.shape[1])
        return y + b.reshape(1, -1, 1, 1)

    def conv_pw(x, w, b):
        y = jax.lax.conv_general_dilated(
            x, w, (1, 1), ((0, 0), (0, 0)),
            dimension_numbers=("NCHW", "OIHW", "NCHW"))
        return y + b.reshape(1, -1, 1, 1)

    def bn(x, g, bt, m, v):
        g, bt, m, v = (t.reshape(1, -1, 1, 1) for t in (g, bt, m, v))
        return g * (x - m) / jnp.sqrt(v + BN_EPS) + bt

    x = conv_pw(conv_dw(x, p["dw1_w"], p["dw1_b"]), p["pw1_w"], p["pw1_b"])
    x = jnp.maximum(bn(x, p["bn1_gamma"], p["bn1_beta"], p["bn1_mean"], p["bn1_var"]), 0.0)
    x = conv_pw(conv_dw(x, p["dw2_w"], p["dw2_b"]), p["pw2_w"], p["pw2_b"])
    x = jnp.maximum(bn(x, p["bn2_gamma"], p["bn2_beta"], p["bn2_mean"], p["bn2_var"]), 0.0)
    return x


def init_params(key, in_channels, out_channels, mid_channels=None):
    if not mid_channels:
        mid_channels = out_channels
    ks = jax.random.split(key, 16)
    f32 = jnp.float32
    return {
        # DepthwiseSeparableConv #1
        "dw1_w": 0.2 * jax.random.normal(ks[0], (in_channels, 1, 3, 3), f32),
        "dw1_b": 0.1 * jax.random.normal(ks[1], (in_channels,), f32),
        "pw1_w": 0.2 * jax.random.normal(ks[2], (mid_channels, in_channels, 1, 1), f32),
        "pw1_b": 0.1 * jax.random.normal(ks[3], (mid_channels,), f32),
        # BatchNorm2d #1 (eval-mode stats)
        "bn1_gamma": 1.0 + 0.1 * jax.random.normal(ks[4], (mid_channels,), f32),
        "bn1_beta": 0.1 * jax.random.normal(ks[5], (mid_channels,), f32),
        "bn1_mean": 0.1 * jax.random.normal(ks[6], (mid_channels,), f32),
        "bn1_var": jax.random.uniform(ks[7], (mid_channels,), f32, 0.5, 1.5),
        # DepthwiseSeparableConv #2
        "dw2_w": 0.2 * jax.random.normal(ks[8], (mid_channels, 1, 3, 3), f32),
        "dw2_b": 0.1 * jax.random.normal(ks[9], (mid_channels,), f32),
        "pw2_w": 0.2 * jax.random.normal(ks[10], (out_channels, mid_channels, 1, 1), f32),
        "pw2_b": 0.1 * jax.random.normal(ks[11], (out_channels,), f32),
        # BatchNorm2d #2
        "bn2_gamma": 1.0 + 0.1 * jax.random.normal(ks[12], (out_channels,), f32),
        "bn2_beta": 0.1 * jax.random.normal(ks[13], (out_channels,), f32),
        "bn2_mean": 0.1 * jax.random.normal(ks[14], (out_channels,), f32),
        "bn2_var": jax.random.uniform(ks[15], (out_channels,), f32, 0.5, 1.5),
    }


if __name__ == "__main__":
    key = jax.random.PRNGKey(0)
    k_x, k_p = jax.random.split(key)

    N, Cin, H, W = 2, 4, 16, 16
    Cout = 8

    x = jax.random.normal(k_x, (N, Cin, H, W), jnp.float32)
    params = init_params(k_p, Cin, Cout)

    out = double_conv_pallas(x, params)
    out = jax.block_until_ready(out)

    ref = jax.block_until_ready(double_conv_ref(x, params))
    assert out.shape == (N, Cout, H, W), out.shape
    assert jnp.allclose(out, ref, atol=1e-4, rtol=1e-4), (
        float(jnp.max(jnp.abs(out - ref))))

    print("KERNEL_OK")
</pallas_src>

<mosaic_0001>
module attributes {stable_mosaic.version = 11 : i64} {
  func.func @_double_conv_kernel(%arg0: i32, %arg1: memref<1x16x16x4xf32, #tpu.memory_space<vmem>>, %arg2: memref<3x3x4xf32, #tpu.memory_space<vmem>>, %arg3: memref<4x8xf32, #tpu.memory_space<vmem>>, %arg4: memref<1x8xf32, #tpu.memory_space<vmem>>, %arg5: memref<3x3x8xf32, #tpu.memory_space<vmem>>, %arg6: memref<8x8xf32, #tpu.memory_space<vmem>>, %arg7: memref<8x1xf32, #tpu.memory_space<vmem>>, %arg8: memref<1x8x256xf32, #tpu.memory_space<vmem>>, %arg9: memref<18x18x4xf32, #tpu.memory_space<vmem>>, %arg10: memref<18x18x8xf32, #tpu.memory_space<vmem>>) attributes {dimension_semantics = [#tpu.dimension_semantics<parallel>], iteration_bounds = array<i64: 2>, scalar_prefetch = 0 : i64, scratch_operands = 2 : i64, tpu.core_type = #tpu.core_type<tc>, window_params = [{transform_indices = @transform_0, window_bounds = array<i64: 1, 16, 16, 4>}, {pipeline_mode = #tpu.pipeline_mode<synchronous>, transform_indices = @transform_1, window_bounds = array<i64: 3, 3, 4>}, {pipeline_mode = #tpu.pipeline_mode<synchronous>, transform_indices = @transform_2, window_bounds = array<i64: 4, 8>}, {pipeline_mode = #tpu.pipeline_mode<synchronous>, transform_indices = @transform_3, window_bounds = array<i64: 1, 8>}, {pipeline_mode = #tpu.pipeline_mode<synchronous>, transform_indices = @transform_4, window_bounds = array<i64: 3, 3, 8>}, {pipeline_mode = #tpu.pipeline_mode<synchronous>, transform_indices = @transform_5, window_bounds = array<i64: 8, 8>}, {pipeline_mode = #tpu.pipeline_mode<synchronous>, transform_indices = @transform_6, window_bounds = array<i64: 8, 1>}, {transform_indices = @transform_7, window_bounds = array<i64: 1, 8, 256>}]} {
    %cst = arith.constant 0.000000e+00 : f32
    %0 = vector.broadcast %cst : f32 to vector<1x18x4xf32>
    %c0 = arith.constant 0 : index
    %c0_0 = arith.constant 0 : index
    %c0_1 = arith.constant 0 : index
    %1 = vector.load %arg9[%c0, %c0_0, %c0_1] : memref<18x18x4xf32, #tpu.memory_space<vmem>>, vector<1x18x4xf32>
    tpu.vector_store %arg9[%c0, %c0_0, %c0_1], %0 {strides = array<i32>} : memref<18x18x4xf32, #tpu.memory_space<vmem>>, vector<1x18x4xf32>,
    %cst_2 = arith.constant 0.000000e+00 : f32
    %2 = vector.broadcast %cst_2 : f32 to vector<1x18x4xf32>
    %c17 = arith.constant 17 : index
    %c0_3 = arith.constant 0 : index
    %c0_4 = arith.constant 0 : index
    %3 = vector.load %arg9[%c17, %c0_3, %c0_4] : memref<18x18x4xf32, #tpu.memory_space<vmem>>, vector<1x18x4xf32>
    tpu.vector_store %arg9[%c17, %c0_3, %c0_4], %2 {strides = array<i32>} : memref<18x18x4xf32, #tpu.memory_space<vmem>>, vector<1x18x4xf32>,
    %cst_5 = arith.constant 0.000000e+00 : f32
    %4 = vector.broadcast %cst_5 : f32 to vector<18x1x4xf32>
    %c0_6 = arith.constant 0 : index
    %c0_7 = arith.constant 0 : index
    %c0_8 = arith.constant 0 : index
    %5 = vector.load %arg9[%c0_6, %c0_7, %c0_8] : memref<18x18x4xf32, #tpu.memory_space<vmem>>, vector<18x1x4xf32>
    tpu.vector_store %arg9[%c0_6, %c0_7, %c0_8], %4 {strides = array<i32>} : memref<18x18x4xf32, #tpu.memory_space<vmem>>, vector<18x1x4xf32>,
    %cst_9 = arith.constant 0.000000e+00 : f32
    %6 = vector.broadcast %cst_9 : f32 to vector<18x1x4xf32>
    %c0_10 = arith.constant 0 : index
    %c17_11 = arith.constant 17 : index
    %c0_12 = arith.constant 0 : index
    %7 = vector.load %arg9[%c0_10, %c17_11, %c0_12] : memref<18x18x4xf32, #tpu.memory_space<vmem>>, vector<18x1x4xf32>
    tpu.vector_store %arg9[%c0_10, %c17_11, %c0_12], %6 {strides = array<i32>} : memref<18x18x4xf32, #tpu.memory_space<vmem>>, vector<18x1x4xf32>,
    %c0_13 = arith.constant 0 : index
    %c0_14 = arith.constant 0 : index
    %c0_15 = arith.constant 0 : index
    %c0_16 = arith.constant 0 : index
    %8 = vector.load %arg1[%c0_13, %c0_14, %c0_15, %c0_16] : memref<1x16x16x4xf32, #tpu.memory_space<vmem>>, vector<1x16x16x4xf32>
    %9 = vector.shape_cast %8 : vector<1x16x16x4xf32> to vector<16x16x4xf32>
    %c1 = arith.constant 1 : index
    %c1_17 = arith.constant 1 : index
    %c0_18 = arith.constant 0 : index
    %10 = vector.load %arg9[%c1, %c1_17, %c0_18] : memref<18x18x4xf32, #tpu.memory_space<vmem>>, vector<16x16x4xf32>
    tpu.vector_store %arg9[%c1, %c1_17, %c0_18], %9 {strides = array<i32>} : memref<18x18x4xf32, #tpu.memory_space<vmem>>, vector<16x16x4xf32>,
    %c0_19 = arith.constant 0 : index
    %c0_20 = arith.constant 0 : index
    %c0_21 = arith.constant 0 : index
    %11 = vector.load %arg2[%c0_19, %c0_20, %c0_21] : memref<3x3x4xf32, #tpu.memory_space<vmem>>, vector<3x3x4xf32>
    %cst_22 = arith.constant 0.000000e+00 : f32
    %12 = vector.broadcast %cst_22 : f32 to vector<16x16x4xf32>
    %c0_23 = arith.constant 0 : index
    %c0_24 = arith.constant 0 : index
    %c0_25 = arith.constant 0 : index
    %13 = vector.load %arg9[%c0_23, %c0_24, %c0_25] : memref<18x18x4xf32, #tpu.memory_space<vmem>>, vector<16x16x4xf32>
    %14 = vector.extract_strided_slice %11 {offsets = [0, 0, 0], sizes = [1, 1, 4], strides = [1, 1, 1]} : vector<3x3x4xf32> to vector<1x1x4xf32>
    %15 = vector.shape_cast %14 : vector<1x1x4xf32> to vector<4xf32>
    %16 = vector.shape_cast %15 : vector<4xf32> to vector<1x1x4xf32>
    %17 = vector.broadcast %16 : vector<1x1x4xf32> to vector<16x16x4xf32>
    %18 = arith.mulf %13, %17 : vector<16x16x4xf32>
    %19 = arith.addf %12, %18 : vector<16x16x4xf32>
    %c0_26 = arith.constant 0 : index
    %c1_27 = arith.constant 1 : index
    %c0_28 = arith.constant 0 : index
    %20 = vector.load %arg9[%c0_26, %c1_27, %c0_28] : memref<18x18x4xf32, #tpu.memory_space<vmem>>, vector<16x16x4xf32>
    %21 = vector.extract_strided_slice %11 {offsets = [0, 1, 0], sizes = [1, 1, 4], strides = [1, 1, 1]} : vector<3x3x4xf32> to vector<1x1x4xf32>
    %22 = vector.shape_cast %21 : vector<1x1x4xf32> to vector<4xf32>
    %23 = vector.shape_cast %22 : vector<4xf32> to vector<1x1x4xf32>
    %24 = vector.broadcast %23 : vector<1x1x4xf32> to vector<16x16x4xf32>
    %25 = arith.mulf %20, %24 : vector<16x16x4xf32>
    %26 = arith.addf %19, %25 : vector<16x16x4xf32>
    %c0_29 = arith.constant 0 : index
    %c2 = arith.constant 2 : index
    %c0_30 = arith.constant 0 : index
    %27 = vector.load %arg9[%c0_29, %c2, %c0_30] : memref<18x18x4xf32, #tpu.memory_space<vmem>>, vector<16x16x4xf32>
    %28 = vector.extract_strided_slice %11 {offsets = [0, 2, 0], sizes = [1, 1, 4], strides = [1, 1, 1]} : vector<3x3x4xf32> to vector<1x1x4xf32>
    %29 = vector.shape_cast %28 : vector<1x1x4xf32> to vector<4xf32>
    %30 = vector.shape_cast %29 : vector<4xf32> to vector<1x1x4xf32>
    %31 = vector.broadcast %30 : vector<1x1x4xf32> to vector<16x16x4xf32>
    %32 = arith.mulf %27, %31 : vector<16x16x4xf32>
    %33 = arith.addf %26, %32 : vector<16x16x4xf32>
    %c1_31 = arith.constant 1 : index
    %c0_32 = arith.constant 0 : index
    %c0_33 = arith.constant 0 : index
    %34 = vector.load %arg9[%c1_31, %c0_32, %c0_33] : memref<18x18x4xf32, #tpu.memory_space<vmem>>, vector<16x16x4xf32>
    %35 = vector.extract_strided_slice %11 {offsets = [1, 0, 0], sizes = [1, 1, 4], strides = [1, 1, 1]} : vector<3x3x4xf32> to vector<1x1x4xf32>
    %36 = vector.shape_cast %35 : vector<1x1x4xf32> to vector<4xf32>
    %37 = vector.shape_cast %36 : vector<4xf32> to vector<1x1x4xf32>
    %38 = vector.broadcast %37 : vector<1x1x4xf32> to vector<16x16x4xf32>
    %39 = arith.mulf %34, %38 : vector<16x16x4xf32>
    %40 = arith.addf %33, %39 : vector<16x16x4xf32>
    %c1_34 = arith.constant 1 : index
    %c1_35 = arith.constant 1 : index
    %c0_36 = arith.constant 0 : index
    %41 = vector.load %arg9[%c1_34, %c1_35, %c0_36] : memref<18x18x4xf32, #tpu.memory_space<vmem>>, vector<16x16x4xf32>
    %42 = vector.extract_strided_slice %11 {offsets = [1, 1, 0], sizes = [1, 1, 4], strides = [1, 1, 1]} : vector<3x3x4xf32> to vector<1x1x4xf32>
    %43 = vector.shape_cast %42 : vector<1x1x4xf32> to vector<4xf32>
    %44 = vector.shape_cast %43 : vector<4xf32> to vector<1x1x4xf32>
    %45 = vector.broadcast %44 : vector<1x1x4xf32> to vector<16x16x4xf32>
    %46 = arith.mulf %41, %45 : vector<16x16x4xf32>
    %47 = arith.addf %40, %46 : vector<16x16x4xf32>
    %c1_37 = arith.constant 1 : index
    %c2_38 = arith.constant 2 : index
    %c0_39 = arith.constant 0 : index
    %48 = vector.load %arg9[%c1_37, %c2_38, %c0_39] : memref<18x18x4xf32, #tpu.memory_space<vmem>>, vector<16x16x4xf32>
    %49 = vector.extract_strided_slice %11 {offsets = [1, 2, 0], sizes = [1, 1, 4], strides = [1, 1, 1]} : vector<3x3x4xf32> to vector<1x1x4xf32>
    %50 = vector.shape_cast %49 : vector<1x1x4xf32> to vector<4xf32>
    %51 = vector.shape_cast %50 : vector<4xf32> to vector<1x1x4xf32>
    %52 = vector.broadcast %51 : vector<1x1x4xf32> to vector<16x16x4xf32>
    %53 = arith.mulf %48, %52 : vector<16x16x4xf32>
    %54 = arith.addf %47, %53 : vector<16x16x4xf32>
    %c2_40 = arith.constant 2 : index
    %c0_41 = arith.constant 0 : index
    %c0_42 = arith.constant 0 : index
    %55 = vector.load %arg9[%c2_40, %c0_41, %c0_42] : memref<18x18x4xf32, #tpu.memory_space<vmem>>, vector<16x16x4xf32>
    %56 = vector.extract_strided_slice %11 {offsets = [2, 0, 0], sizes = [1, 1, 4], strides = [1, 1, 1]} : vector<3x3x4xf32> to vector<1x1x4xf32>
    %57 = vector.shape_cast %56 : vector<1x1x4xf32> to vector<4xf32>
    %58 = vector.shape_cast %57 : vector<4xf32> to vector<1x1x4xf32>
    %59 = vector.broadcast %58 : vector<1x1x4xf32> to vector<16x16x4xf32>
    %60 = arith.mulf %55, %59 : vector<16x16x4xf32>
    %61 = arith.addf %54, %60 : vector<16x16x4xf32>
    %c2_43 = arith.constant 2 : index
    %c1_44 = arith.constant 1 : index
    %c0_45 = arith.constant 0 : index
    %62 = vector.load %arg9[%c2_43, %c1_44, %c0_45] : memref<18x18x4xf32, #tpu.memory_space<vmem>>, vector<16x16x4xf32>
    %63 = vector.extract_strided_slice %11 {offsets = [2, 1, 0], sizes = [1, 1, 4], strides = [1, 1, 1]} : vector<3x3x4xf32> to vector<1x1x4xf32>
    %64 = vector.shape_cast %63 : vector<1x1x4xf32> to vector<4xf32>
    %65 = vector.shape_cast %64 : vector<4xf32> to vector<1x1x4xf32>
    %66 = vector.broadcast %65 : vector<1x1x4xf32> to vector<16x16x4xf32>
    %67 = arith.mulf %62, %66 : vector<16x16x4xf32>
    %68 = arith.addf %61, %67 : vector<16x16x4xf32>
    %c2_46 = arith.constant 2 : index
    %c2_47 = arith.constant 2 : index
    %c0_48 = arith.constant 0 : index
    %69 = vector.load %arg9[%c2_46, %c2_47, %c0_48] : memref<18x18x4xf32, #tpu.memory_space<vmem>>, vector<16x16x4xf32>
    %70 = vector.extract_strided_slice %11 {offsets = [2, 2, 0], sizes = [1, 1, 4], strides = [1, 1, 1]} : vector<3x3x4xf32> to vector<1x1x4xf32>
    %71 = vector.shape_cast %70 : vector<1x1x4xf32> to vector<4xf32>
    %72 = vector.shape_cast %71 : vector<4xf32> to vector<1x1x4xf32>
    %73 = vector.broadcast %72 : vector<1x1x4xf32> to vector<16x16x4xf32>
    %74 = arith.mulf %69, %73 : vector<16x16x4xf32>
    %75 = arith.addf %68, %74 : vector<16x16x4xf32>
    %76 = vector.shape_cast %75 : vector<16x16x4xf32> to vector<256x4xf32>
    %c0_49 = arith.constant 0 : index
    %c0_50 = arith.constant 0 : index
    %77 = vector.load %arg3[%c0_49, %c0_50] : memref<4x8xf32, #tpu.memory_space<vmem>>, vector<4x8xf32>
    %cst_51 = arith.constant dense<0.000000e+00> : vector<256x8xf32>
    %78 = tpu.matmul %76, %77, %cst_51 {dimension_numbers = #tpu.dot_dimension_numbers<[1], [0], [0], [1], [0, 0, 1, 1], [], []>} : vector<256x4xf32>, vector<4x8xf32>, vector<256x8xf32> -> vector<256x8xf32>
    %c0_52 = arith.constant 0 : index
    %c0_53 = arith.constant 0 : index
    %79 = vector.load %arg4[%c0_52, %c0_53] : memref<1x8xf32, #tpu.memory_space<vmem>>, vector<1x8xf32>
    %80 = vector.broadcast %79 : vector<1x8xf32> to vector<256x8xf32>
    %81 = arith.addf %78, %80 : vector<256x8xf32>
    %cst_54 = arith.constant 0.000000e+00 : f32
    %82 = vector.broadcast %cst_54 : f32 to vector<256x8xf32>
    %83 = arith.maximumf %81, %82 : vector<256x8xf32>
    %cst_55 = arith.constant 0.000000e+00 : f32
    %84 = vector.broadcast %cst_55 : f32 to vector<1x18x8xf32>
    %c0_56 = arith.constant 0 : index
    %c0_57 = arith.constant 0 : index
    %c0_58 = arith.constant 0 : index
    %85 = vector.load %arg10[%c0_56, %c0_57, %c0_58] : memref<18x18x8xf32, #tpu.memory_space<vmem>>, vector<1x18x8xf32>
    tpu.vector_store %arg10[%c0_56, %c0_57, %c0_58], %84 {strides = array<i32>} : memref<18x18x8xf32, #tpu.memory_space<vmem>>, vector<1x18x8xf32>,
    %cst_59 = arith.constant 0.000000e+00 : f32
    %86 = vector.broadcast %cst_59 : f32 to vector<1x18x8xf32>
    %c17_60 = arith.constant 17 : index
    %c0_61 = arith.constant 0 : index
    %c0_62 = arith.constant 0 : index
    %87 = vector.load %arg10[%c17_60, %c0_61, %c0_62] : memref<18x18x8xf32, #tpu.memory_space<vmem>>, vector<1x18x8xf32>
    tpu.vector_store %arg10[%c17_60, %c0_61, %c0_62], %86 {strides = array<i32>} : memref<18x18x8xf32, #tpu.memory_space<vmem>>, vector<1x18x8xf32>,
    %cst_63 = arith.constant 0.000000e+00 : f32
    %88 = vector.broadcast %cst_63 : f32 to vector<18x1x8xf32>
    %c0_64 = arith.constant 0 : index
    %c0_65 = arith.constant 0 : index
    %c0_66 = arith.constant 0 : index
    %89 = vector.load %arg10[%c0_64, %c0_65, %c0_66] : memref<18x18x8xf32, #tpu.memory_space<vmem>>, vector<18x1x8xf32>
    tpu.vector_store %arg10[%c0_64, %c0_65, %c0_66], %88 {strides = array<i32>} : memref<18x18x8xf32, #tpu.memory_space<vmem>>, vector<18x1x8xf32>,
    %cst_67 = arith.constant 0.000000e+00 : f32
    %90 = vector.broadcast %cst_67 : f32 to vector<18x1x8xf32>
    %c0_68 = arith.constant 0 : index
    %c17_69 = arith.constant 17 : index
    %c0_70 = arith.constant 0 : index
    %91 = vector.load %arg10[%c0_68, %c17_69, %c0_70] : memref<18x18x8xf32, #tpu.memory_space<vmem>>, vector<18x1x8xf32>
    tpu.vector_store %arg10[%c0_68, %c17_69, %c0_70], %90 {strides = array<i32>} : memref<18x18x8xf32, #tpu.memory_space<vmem>>, vector<18x1x8xf32>,
    %92 = vector.shape_cast %83 : vector<256x8xf32> to vector<16x16x8xf32>
    %c1_71 = arith.constant 1 : index
    %c1_72 = arith.constant 1 : index
    %c0_73 = arith.constant 0 : index
    %93 = vector.load %arg10[%c1_71, %c1_72, %c0_73] : memref<18x18x8xf32, #tpu.memory_space<vmem>>, vector<16x16x8xf32>
    tpu.vector_store %arg10[%c1_71, %c1_72, %c0_73], %92 {strides = array<i32>} : memref<18x18x8xf32, #tpu.memory_space<vmem>>, vector<16x16x8xf32>,
    %c0_74 = arith.constant 0 : index
    %c0_75 = arith.constant 0 : index
    %c0_76 = arith.constant 0 : index
    %94 = vector.load %arg5[%c0_74, %c0_75, %c0_76] : memref<3x3x8xf32, #tpu.memory_space<vmem>>, vector<3x3x8xf32>
    %cst_77 = arith.constant 0.000000e+00 : f32
    %95 = vector.broadcast %cst_77 : f32 to vector<16x16x8xf32>
    %c0_78 = arith.constant 0 : index
    %c0_79 = arith.constant 0 : index
    %c0_80 = arith.constant 0 : index
    %96 = vector.load %arg10[%c0_78, %c0_79, %c0_80] : memref<18x18x8xf32, #tpu.memory_space<vmem>>, vector<16x16x8xf32>
    %97 = vector.extract_strided_slice %94 {offsets = [0, 0, 0], sizes = [1, 1, 8], strides = [1, 1, 1]} : vector<3x3x8xf32> to vector<1x1x8xf32>
    %98 = vector.shape_cast %97 : vector<1x1x8xf32> to vector<8xf32>
    %99 = vector.shape_cast %98 : vector<8xf32> to vector<1x1x8xf32>
    %100 = vector.broadcast %99 : vector<1x1x8xf32> to vector<16x16x8xf32>
    %101 = arith.mulf %96, %100 : vector<16x16x8xf32>
    %102 = arith.addf %95, %101 : vector<16x16x8xf32>
    %c0_81 = arith.constant 0 : index
    %c1_82 = arith.constant 1 : index
    %c0_83 = arith.constant 0 : index
    %103 = vector.load %arg10[%c0_81, %c1_82, %c0_83] : memref<18x18x8xf32, #tpu.memory_space<vmem>>, vector<16x16x8xf32>
    %104 = vector.extract_strided_slice %94 {offsets = [0, 1, 0], sizes = [1, 1, 8], strides = [1, 1, 1]} : vector<3x3x8xf32> to vector<1x1x8xf32>
    %105 = vector.shape_cast %104 : vector<1x1x8xf32> to vector<8xf32>
    %106 = vector.shape_cast %105 : vector<8xf32> to vector<1x1x8xf32>
    %107 = vector.broadcast %106 : vector<1x1x8xf32> to vector<16x16x8xf32>
    %108 = arith.mulf %103, %107 : vector<16x16x8xf32>
    %109 = arith.addf %102, %108 : vector<16x16x8xf32>
    %c0_84 = arith.constant 0 : index
    %c2_85 = arith.constant 2 : index
    %c0_86 = arith.constant 0 : index
    %110 = vector.load %arg10[%c0_84, %c2_85, %c0_86] : memref<18x18x8xf32, #tpu.memory_space<vmem>>, vector<16x16x8xf32>
    %111 = vector.extract_strided_slice %94 {offsets = [0, 2, 0], sizes = [1, 1, 8], strides = [1, 1, 1]} : vector<3x3x8xf32> to vector<1x1x8xf32>
    %112 = vector.shape_cast %111 : vector<1x1x8xf32> to vector<8xf32>
    %113 = vector.shape_cast %112 : vector<8xf32> to vector<1x1x8xf32>
    %114 = vector.broadcast %113 : vector<1x1x8xf32> to vector<16x16x8xf32>
    %115 = arith.mulf %110, %114 : vector<16x16x8xf32>
    %116 = arith.addf %109, %115 : vector<16x16x8xf32>
    %c1_87 = arith.constant 1 : index
    %c0_88 = arith.constant 0 : index
    %c0_89 = arith.constant 0 : index
    %117 = vector.load %arg10[%c1_87, %c0_88, %c0_89] : memref<18x18x8xf32, #tpu.memory_space<vmem>>, vector<16x16x8xf32>
    %118 = vector.extract_strided_slice %94 {offsets = [1, 0, 0], sizes = [1, 1, 8], strides = [1, 1, 1]} : vector<3x3x8xf32> to vector<1x1x8xf32>
    %119 = vector.shape_cast %118 : vector<1x1x8xf32> to vector<8xf32>
    %120 = vector.shape_cast %119 : vector<8xf32> to vector<1x1x8xf32>
    %121 = vector.broadcast %120 : vector<1x1x8xf32> to vector<16x16x8xf32>
    %122 = arith.mulf %117, %121 : vector<16x16x8xf32>
    %123 = arith.addf %116, %122 : vector<16x16x8xf32>
    %c1_90 = arith.constant 1 : index
    %c1_91 = arith.constant 1 : index
    %c0_92 = arith.constant 0 : index
    %124 = vector.load %arg10[%c1_90, %c1_91, %c0_92] : memref<18x18x8xf32, #tpu.memory_space<vmem>>, vector<16x16x8xf32>
    %125 = vector.extract_strided_slice %94 {offsets = [1, 1, 0], sizes = [1, 1, 8], strides = [1, 1, 1]} : vector<3x3x8xf32> to vector<1x1x8xf32>
    %126 = vector.shape_cast %125 : vector<1x1x8xf32> to vector<8xf32>
    %127 = vector.shape_cast %126 : vector<8xf32> to vector<1x1x8xf32>
    %128 = vector.broadcast %127 : vector<1x1x8xf32> to vector<16x16x8xf32>
    %129 = arith.mulf %124, %128 : vector<16x16x8xf32>
    %130 = arith.addf %123, %129 : vector<16x16x8xf32>
    %c1_93 = arith.constant 1 : index
    %c2_94 = arith.constant 2 : index
    %c0_95 = arith.constant 0 : index
    %131 = vector.load %arg10[%c1_93, %c2_94, %c0_95] : memref<18x18x8xf32, #tpu.memory_space<vmem>>, vector<16x16x8xf32>
    %132 = vector.extract_strided_slice %94 {offsets = [1, 2, 0], sizes = [1, 1, 8], strides = [1, 1, 1]} : vector<3x3x8xf32> to vector<1x1x8xf32>
    %133 = vector.shape_cast %132 : vector<1x1x8xf32> to vector<8xf32>
    %134 = vector.shape_cast %133 : vector<8xf32> to vector<1x1x8xf32>
    %135 = vector.broadcast %134 : vector<1x1x8xf32> to vector<16x16x8xf32>
    %136 = arith.mulf %131, %135 : vector<16x16x8xf32>
    %137 = arith.addf %130, %136 : vector<16x16x8xf32>
    %c2_96 = arith.constant 2 : index
    %c0_97 = arith.constant 0 : index
    %c0_98 = arith.constant 0 : index
    %138 = vector.load %arg10[%c2_96, %c0_97, %c0_98] : memref<18x18x8xf32, #tpu.memory_space<vmem>>, vector<16x16x8xf32>
    %139 = vector.extract_strided_slice %94 {offsets = [2, 0, 0], sizes = [1, 1, 8], strides = [1, 1, 1]} : vector<3x3x8xf32> to vector<1x1x8xf32>
    %140 = vector.shape_cast %139 : vector<1x1x8xf32> to vector<8xf32>
    %141 = vector.shape_cast %140 : vector<8xf32> to vector<1x1x8xf32>
    %142 = vector.broadcast %141 : vector<1x1x8xf32> to vector<16x16x8xf32>
    %143 = arith.mulf %138, %142 : vector<16x16x8xf32>
    %144 = arith.addf %137, %143 : vector<16x16x8xf32>
    %c2_99 = arith.constant 2 : index
    %c1_100 = arith.constant 1 : index
    %c0_101 = arith.constant 0 : index
    %145 = vector.load %arg10[%c2_99, %c1_100, %c0_101] : memref<18x18x8xf32, #tpu.memory_space<vmem>>, vector<16x16x8xf32>
    %146 = vector.extract_strided_slice %94 {offsets = [2, 1, 0], sizes = [1, 1, 8], strides = [1, 1, 1]} : vector<3x3x8xf32> to vector<1x1x8xf32>
    %147 = vector.shape_cast %146 : vector<1x1x8xf32> to vector<8xf32>
    %148 = vector.shape_cast %147 : vector<8xf32> to vector<1x1x8xf32>
    %149 = vector.broadcast %148 : vector<1x1x8xf32> to vector<16x16x8xf32>
    %150 = arith.mulf %145, %149 : vector<16x16x8xf32>
    %151 = arith.addf %144, %150 : vector<16x16x8xf32>
    %c2_102 = arith.constant 2 : index
    %c2_103 = arith.constant 2 : index
    %c0_104 = arith.constant 0 : index
    %152 = vector.load %arg10[%c2_102, %c2_103, %c0_104] : memref<18x18x8xf32, #tpu.memory_space<vmem>>, vector<16x16x8xf32>
    %153 = vector.extract_strided_slice %94 {offsets = [2, 2, 0], sizes = [1, 1, 8], strides = [1, 1, 1]} : vector<3x3x8xf32> to vector<1x1x8xf32>
    %154 = vector.shape_cast %153 : vector<1x1x8xf32> to vector<8xf32>
    %155 = vector.shape_cast %154 : vector<8xf32> to vector<1x1x8xf32>
    %156 = vector.broadcast %155 : vector<1x1x8xf32> to vector<16x16x8xf32>
    %157 = arith.mulf %152, %156 : vector<16x16x8xf32>
    %158 = arith.addf %151, %157 : vector<16x16x8xf32>
    %159 = vector.shape_cast %158 : vector<16x16x8xf32> to vector<256x8xf32>
    %c0_105 = arith.constant 0 : index
    %c0_106 = arith.constant 0 : index
    %160 = vector.load %arg6[%c0_105, %c0_106] : memref<8x8xf32, #tpu.memory_space<vmem>>, vector<8x8xf32>
    %cst_107 = arith.constant dense<0.000000e+00> : vector<8x256xf32>
    %161 = tpu.matmul %160, %159, %cst_107 {dimension_numbers = #tpu.dot_dimension_numbers<[1], [1], [0], [0], [0, 0, 1, 0], [], []>} : vector<8x8xf32>, vector<256x8xf32>, vector<8x256xf32> -> vector<8x256xf32>
    %c0_108 = arith.constant 0 : index
    %c0_109 = arith.constant 0 : index
    %162 = vector.load %arg7[%c0_108, %c0_109] : memref<8x1xf32, #tpu.memory_space<vmem>>, vector<8x1xf32>
    %163 = vector.broadcast %162 : vector<8x1xf32> to vector<8x256xf32>
    %164 = arith.addf %161, %163 : vector<8x256xf32>
    %cst_110 = arith.constant 0.000000e+00 : f32
    %165 = vector.broadcast %cst_110 : f32 to vector<8x256xf32>
    %166 = arith.maximumf %164, %165 : vector<8x256xf32>
    %c0_111 = arith.constant 0 : index
    %c0_112 = arith.constant 0 : index
    %c0_113 = arith.constant 0 : index
    %167 = vector.load %arg8[%c0_111, %c0_112, %c0_113] : memref<1x8x256xf32, #tpu.memory_space<vmem>>, vector<1x8x256xf32>
    %168 = vector.shape_cast %167 : vector<1x8x256xf32> to vector<8x256xf32>
    %169 = vector.shape_cast %166 : vector<8x256xf32> to vector<1x8x256xf32>
    tpu.vector_store %arg8[%c0_111, %c0_112, %c0_113], %169 {strides = array<i32>} : memref<1x8x256xf32, #tpu.memory_space<vmem>>, vector<1x8x256xf32>,
    return
  }
  func.func @transform_0(%arg0: i32) -> (i32, i32, i32, i32) {
    %c0_i32 = arith.constant 0 : i32
    %c0_i32_0 = arith.constant 0 : i32
    %c0_i32_1 = arith.constant 0 : i32
    %c0_i32_2 = arith.constant 0 : i32
    return %arg0, %c0_i32, %c0_i32_0, %c0_i32_1 : i32, i32, i32, i32
  }
  func.func @transform_1(%arg0: i32) -> (i32, i32, i32) {
    %c0_i32 = arith.constant 0 : i32
    %c0_i32_0 = arith.constant 0 : i32
    %c0_i32_1 = arith.constant 0 : i32
    %c0_i32_2 = arith.constant 0 : i32
    return %c0_i32, %c0_i32_0, %c0_i32_1 : i32, i32, i32
  }
  func.func @transform_2(%arg0: i32) -> (i32, i32) {
    %c0_i32 = arith.constant 0 : i32
    %c0_i32_0 = arith.constant 0 : i32
    %c0_i32_1 = arith.constant 0 : i32
    return %c0_i32, %c0_i32_0 : i32, i32
  }
  func.func @transform_3(%arg0: i32) -> (i32, i32) {
    %c0_i32 = arith.constant 0 : i32
    %c0_i32_0 = arith.constant 0 : i32
    %c0_i32_1 = arith.constant 0 : i32
    return %c0_i32, %c0_i32_0 : i32, i32
  }
  func.func @transform_4(%arg0: i32) -> (i32, i32, i32) {
    %c0_i32 = arith.constant 0 : i32
    %c0_i32_0 = arith.constant 0 : i32
    %c0_i32_1 = arith.constant 0 : i32
    %c0_i32_2 = arith.constant 0 : i32
    return %c0_i32, %c0_i32_0, %c0_i32_1 : i32, i32, i32
  }
  func.func @transform_5(%arg0: i32) -> (i32, i32) {
    %c0_i32 = arith.constant 0 : i32
    %c0_i32_0 = arith.constant 0 : i32
    %c0_i32_1 = arith.constant 0 : i32
    return %c0_i32, %c0_i32_0 : i32, i32
  }
  func.func @transform_6(%arg0: i32) -> (i32, i32) {
    %c0_i32 = arith.constant 0 : i32
    %c0_i32_0 = arith.constant 0 : i32
    %c0_i32_1 = arith.constant 0 : i32
    return %c0_i32, %c0_i32_0 : i32, i32
  }
  func.func @transform_7(%arg0: i32) -> (i32, i32, i32) {
    %c0_i32 = arith.constant 0 : i32
    %c0_i32_0 = arith.constant 0 : i32
    %c0_i32_1 = arith.constant 0 : i32
    return %arg0, %c0_i32, %c0_i32_0 : i32, i32, i32
  }
}

</mosaic_0001>

<llo_original>
// kernel: tpu_custom_call.1
$region0: #{tpu_custom_call.1}
  #allocation0 [shape = 'u32[]', space=smem, size = 0x4, offset = 0x4, fixed_abs, tag = 'smem constant byte address 0x4 - core index']
  #allocation1 [shape = 'u32[144,128]{1,0:T(1,128)}', space=vmem, size = 0x12000, scoped, tag = 'internal scratch']
  #allocation2 [shape = 'f32[18,18,4]{2,1,0:T(8,128)}', space=vmem, size = 0x36000, scoped, tag = 'scratch operand']
  #allocation3 [shape = 'f32[18,18,8]{2,1,0:T(8,128)}', space=vmem, size = 0x36000, scoped, tag = 'scratch operand']
  %s0 = inlined_call_operand.vmem [shape: f32[2,16,16,4], index: 0, kind: input, shape index: {}]
  %s1 = inlined_call_operand.vmem [shape: f32[3,3,4], index: 1, kind: input, shape index: {}]
  %s2 = inlined_call_operand.vmem [shape: f32[4,8], index: 2, kind: input, shape index: {}]
  %s3 = inlined_call_operand.vmem [shape: f32[1,8], index: 3, kind: input, shape index: {}]
  %s4 = inlined_call_operand.vmem [shape: f32[3,3,8], index: 4, kind: input, shape index: {}]
  %s5 = inlined_call_operand.vmem [shape: f32[8,8], index: 5, kind: input, shape index: {}]
  %s6 = inlined_call_operand.vmem [shape: f32[8,1], index: 6, kind: input, shape index: {}]
  %s7 = inlined_call_operand.hbm [shape: f32[2,8,256], index: 7, kind: output, shape index: {}]
  %s8 = sld [smem:[#allocation0]]
  $region61: #{tpu_custom_call.1} parent=0
    _
  %s10 = ssub.s32 1, %s8
  %s11 = scalar_select 0, %s10, %s8
  $region1: #{tpu_custom_call.1} parent=0
    #allocation4 [shape = 'u8[16384]{0}', space=vmem, size = 0x4000, scoped, tag = 'output window, operand 0']
    #allocation5 [shape = 's32[2]{0}', space=sflag, size = 0x8, scoped, tag = 'scoped memory for tpu_custom_call.1']
    %12 = vsyncpa [#allocation5], 0
    %s13 = scalar_lea.sflag [#allocation5], 1
    %14 = vsyncpa %s13, 0
    loop: start=0, step=1, limit=4
    $region2: #{tpu_custom_call.1} parent=1 // loop_pre_header
      _
    $region3: #{tpu_custom_call.1} parent=1 // loop_header
      %s16 = sphi 0, %s20
      %p17 = scmp.ge.s32.totalorder %s16, 4
      %s26 = sphi 0, %s28
      %s29 = sphi 0, %s26
      %s30 = sphi 0, %s29
      %s46 = sphi 0, %s30
      %s50 = sphi 0, %s50
      %s52 = sphi 0, %s50
      %s53 = sphi 0, %s52
      %s67 = sphi 0, %s53
      %s71 = sphi 0, %s71
      %s73 = sphi 0, %s71
      %s74 = sphi 0, %s73
      %s88 = sphi 0, %s74
      %s92 = sphi 0, %s92
      %s94 = sphi 0, %s92
      %s95 = sphi 0, %s94
      %s109 = sphi 0, %s95
      %s113 = sphi 0, %s113
      %s115 = sphi 0, %s113
      %s116 = sphi 0, %s115
      %s130 = sphi 0, %s116
      %s134 = sphi 0, %s134
      %s136 = sphi 0, %s134
      %s137 = sphi 0, %s136
      %s151 = sphi 0, %s137
      %s155 = sphi 0, %s155
      %s157 = sphi 0, %s155
      %s158 = sphi 0, %s157
      %s172 = sphi 0, %s158
      %s178 = sphi 0, %s180
      %s181 = sphi 0, %s178
      %s182 = sphi 0, %s181
      %s198 = sphi 0, %s182
    $region4: #{tpu_custom_call.1} parent=1 // loop_header_branch
      %19 = sbr.rel (%p17) target = $region8
    $region5: #{tpu_custom_call.1} parent=1 // loop_body
      %s21 = ssub.s32 %s16, 1
      %s22 = ssub.s32 %s16, 2
      %s23 = sadd.s32 %s16, 1
      %s24 = ssub.s32 %s16, %s23
      %p25 = scmp.eq.s32.totalorder %s24, 0
      %s27 = sadd.s32 %s26, 1
      %s28 = scalar_select %p25, %s26, %s27
      %p31 = pneg %p25
      %p32 = scmp.eq.s32.totalorder %s16, 1
      %p33 = por %p31, %p32
      %p34 = scmp.ne.s32.totalorder %s26, %s29
      %p35 = scmp.eq.s32.totalorder %s16, 0
      %p36 = por %p34, %p35
      %p37 = scmp.ne.s32.totalorder %s26, %s29
      %p38 = scmp.eq.s32.totalorder %s21, 1
      %p39 = por %p37, %p38
      %p40 = scmp.ne.s32.totalorder %s29, %s30
      %p41 = scmp.eq.s32.totalorder %s21, 0
      %p42 = por %p40, %p41
      %p43 = scmp.ne.s32.totalorder %s29, %s30
      %p44 = scmp.eq.s32.totalorder %s22, 1
      %p45 = por %p43, %p44
      %p47 = scmp.ne.s32.totalorder %s30, %s46
      %p48 = scmp.eq.s32.totalorder %s22, 0
      %p49 = por %p47, %p48
      %s51 = sadd.s32 %s50, 1
      %p54 = scmp.eq.s32.totalorder %s16, 1
      %p55 = scmp.ne.s32.totalorder %s50, %s52
      %p56 = scmp.eq.s32.totalorder %s16, 0
      %p57 = por %p55, %p56
      %p58 = scmp.ne.s32.totalorder %s50, %s52
      %p59 = scmp.eq.s32.totalorder %s21, 1
      %p60 = por %p58, %p59
      %p61 = scmp.ne.s32.totalorder %s52, %s53
      %p62 = scmp.eq.s32.totalorder %s21, 0
      %p63 = por %p61, %p62
      %p64 = scmp.ne.s32.totalorder %s52, %s53
      %p65 = scmp.eq.s32.totalorder %s22, 1
      %p66 = por %p64, %p65
      %p68 = scmp.ne.s32.totalorder %s53, %s67
      %p69 = scmp.eq.s32.totalorder %s22, 0
      %p70 = por %p68, %p69
      %s72 = sadd.s32 %s71, 1
      %p75 = scmp.eq.s32.totalorder %s16, 1
      %p76 = scmp.ne.s32.totalorder %s71, %s73
      %p77 = scmp.eq.s32.totalorder %s16, 0
      %p78 = por %p76, %p77
      %p79 = scmp.ne.s32.totalorder %s71, %s73
      %p80 = scmp.eq.s32.totalorder %s21, 1
      %p81 = por %p79, %p80
      %p82 = scmp.ne.s32.totalorder %s73, %s74
      %p83 = scmp.eq.s32.totalorder %s21, 0
      %p84 = por %p82, %p83
      %p85 = scmp.ne.s32.totalorder %s73, %s74
      %p86 = scmp.eq.s32.totalorder %s22, 1
      %p87 = por %p85, %p86
      %p89 = scmp.ne.s32.totalorder %s74, %s88
      %p90 = scmp.eq.s32.totalorder %s22, 0
      %p91 = por %p89, %p90
      %s93 = sadd.s32 %s92, 1
      %p96 = scmp.eq.s32.totalorder %s16, 1
      %p97 = scmp.ne.s32.totalorder %s92, %s94
      %p98 = scmp.eq.s32.totalorder %s16, 0
      %p99 = por %p97, %p98
      %p100 = scmp.ne.s32.totalorder %s92, %s94
      %p101 = scmp.eq.s32.totalorder %s21, 1
      %p102 = por %p100, %p101
      %p103 = scmp.ne.s32.totalorder %s94, %s95
      %p104 = scmp.eq.s32.totalorder %s21, 0
      %p105 = por %p103, %p104
      %p106 = scmp.ne.s32.totalorder %s94, %s95
      %p107 = scmp.eq.s32.totalorder %s22, 1
      %p108 = por %p106, %p107
      %p110 = scmp.ne.s32.totalorder %s95, %s109
      %p111 = scmp.eq.s32.totalorder %s22, 0
      %p112 = por %p110, %p111
      %s114 = sadd.s32 %s113, 1
      %p117 = scmp.eq.s32.totalorder %s16, 1
      %p118 = scmp.ne.s32.totalorder %s113, %s115
      %p119 = scmp.eq.s32.totalorder %s16, 0
      %p120 = por %p118, %p119
      %p121 = scmp.ne.s32.totalorder %s113, %s115
      %p122 = scmp.eq.s32.totalorder %s21, 1
      %p123 = por %p121, %p122
      %p124 = scmp.ne.s32.totalorder %s115, %s116
      %p125 = scmp.eq.s32.totalorder %s21, 0
      %p126 = por %p124, %p125
      %p127 = scmp.ne.s32.totalorder %s115, %s116
      %p128 = scmp.eq.s32.totalorder %s22, 1
      %p129 = por %p127, %p128
      %p131 = scmp.ne.s32.totalorder %s116, %s130
      %p132 = scmp.eq.s32.totalorder %s22, 0
      %p133 = por %p131, %p132
      %s135 = sadd.s32 %s134, 1
      %p138 = scmp.eq.s32.totalorder %s16, 1
      %p139 = scmp.ne.s32.totalorder %s134, %s136
      %p140 = scmp.eq.s32.totalorder %s16, 0
      %p141 = por %p139, %p140
      %p142 = scmp.ne.s32.totalorder %s134, %s136
      %p143 = scmp.eq.s32.totalorder %s21, 1
      %p144 = por %p142, %p143
      %p145 = scmp.ne.s32.totalorder %s136, %s137
      %p146 = scmp.eq.s32.totalorder %s21, 0
      %p147 = por %p145, %p146
      %p148 = scmp.ne.s32.totalorder %s136, %s137
      %p149 = scmp.eq.s32.totalorder %s22, 1
      %p150 = por %p148, %p149
      %p152 = scmp.ne.s32.totalorder %s137, %s151
      %p153 = scmp.eq.s32.totalorder %s22, 0
      %p154 = por %p152, %p153
      %s156 = sadd.s32 %s155, 1
      %p159 = scmp.eq.s32.totalorder %s16, 1
      %p160 = scmp.ne.s32.totalorder %s155, %s157
      %p161 = scmp.eq.s32.totalorder %s16, 0
      %p162 = por %p160, %p161
      %p163 = scmp.ne.s32.totalorder %s155, %s157
      %p164 = scmp.eq.s32.totalorder %s21, 1
      %p165 = por %p163, %p164
      %p166 = scmp.ne.s32.totalorder %s157, %s158
      %p167 = scmp.eq.s32.totalorder %s21, 0
      %p168 = por %p166, %p167
      %p169 = scmp.ne.s32.totalorder %s157, %s158
      %p170 = scmp.eq.s32.totalorder %s22, 1
      %p171 = por %p169, %p170
      %p173 = scmp.ne.s32.totalorder %s158, %s172
      %p174 = scmp.eq.s32.totalorder %s22, 0
      %p175 = por %p173, %p174
      %s176 = ssub.s32 %s16, %s23
      %p177 = scmp.eq.s32.totalorder %s176, 0
      %s179 = sadd.s32 %s178, 1
      %s180 = scalar_select %p177, %s178, %s179
      %p183 = pneg %p177
      %p184 = scmp.eq.s32.totalorder %s16, 1
      %p185 = por %p183, %p184
      %p186 = scmp.ne.s32.totalorder %s178, %s181
      %p187 = scmp.eq.s32.totalorder %s16, 0
      %p188 = por %p186, %p187
      %p189 = scmp.ne.s32.totalorder %s178, %s181
      %p190 = scmp.eq.s32.totalorder %s21, 1
      %p191 = por %p189, %p190
      %p192 = scmp.ne.s32.totalorder %s181, %s182
      %p193 = scmp.eq.s32.totalorder %s21, 0
      %p194 = por %p192, %p193
      %p195 = scmp.ne.s32.totalorder %s181, %s182
      %p196 = scmp.eq.s32.totalorder %s22, 1
      %p197 = por %p195, %p196
      %p199 = scmp.ne.s32.totalorder %s182, %s198
      %p200 = scmp.eq.s32.totalorder %s22, 0
      %p201 = por %p199, %p200
      %p202 = scmp.le.s32.totalorder 1, %s16
      %p203 = scmp.lt.s32.totalorder %s16, 3
      %p204 = pnand %p202, %p203
      %p205 = pneg %p204
      // Predicated region
      $region9: #{tpu_custom_call.1} parent=5 // pred_check
        _
      $region10: #{tpu_custom_call.1} parent=5 // pred_check_branch
        %207 = sbr.rel (%p204) target = $region12
      $region11: #{tpu_custom_call.1} parent=5 // pred_region
        %s208 = ssub.s32 %s16, 1
        // Predicated region
        $region13: #{tpu_custom_call.1} parent=11 // pred_check
          %p209 = pneg %p63
        $region14: #{tpu_custom_call.1} parent=11 // pred_check_branch
          %211 = sbr.rel (%p209) target = $region16
        $region15: #{tpu_custom_call.1} parent=11 // pred_region
          _
        $region16: #{tpu_custom_call.1} parent=11 // pred_fallthru
          _
        // Predicated region
        $region17: #{tpu_custom_call.1} parent=11 // pred_check
          %p212 = pneg %p84
        $region18: #{tpu_custom_call.1} parent=11 // pred_check_branch
          %214 = sbr.rel (%p212) target = $region20
        $region19: #{tpu_custom_call.1} parent=11 // pred_region
          _
        $region20: #{tpu_custom_call.1} parent=11 // pred_fallthru
          _
        // Predicated region
        $region21: #{tpu_custom_call.1} parent=11 // pred_check
          %p215 = pneg %p105
        $region22: #{tpu_custom_call.1} parent=11 // pred_check_branch
          %217 = sbr.rel (%p215) target = $region24
        $region23: #{tpu_custom_call.1} parent=11 // pred_region
          _
        $region24: #{tpu_custom_call.1} parent=11 // pred_fallthru
          _
        // Predicated region
        $region25: #{tpu_custom_call.1} parent=11 // pred_check
          %p218 = pneg %p126
        $region26: #{tpu_custom_call.1} parent=11 // pred_check_branch
          %220 = sbr.rel (%p218) target = $region28
        $region27: #{tpu_custom_call.1} parent=11 // pred_region
          _
        $region28: #{tpu_custom_call.1} parent=11 // pred_fallthru
          _
        // Predicated region
        $region29: #{tpu_custom_call.1} parent=11 // pred_check
          %p221 = pneg %p147
        $region30: #{tpu_custom_call.1} parent=11 // pred_check_branch
          %223 = sbr.rel (%p221) target = $region32
        $region31: #{tpu_custom_call.1} parent=11 // pred_region
          _
        $region32: #{tpu_custom_call.1} parent=11 // pred_fallthru
          _
        // Predicated region
        $region33: #{tpu_custom_call.1} parent=11 // pred_check
          %p224 = pneg %p168
        $region34: #{tpu_custom_call.1} parent=11 // pred_check_branch
          %226 = sbr.rel (%p224) target = $region36
        $region35: #{tpu_custom_call.1} parent=11 // pred_region
          _
        $region36: #{tpu_custom_call.1} parent=11 // pred_fallthru
          _
      $region12: #{tpu_custom_call.1} parent=5 // pred_fallthru
        _
      %p227 = scmp.lt.s32.totalorder %s16, 2
      // Predicated region
      $region37: #{tpu_custom_call.1} parent=5 // pred_check
        %p228 = pneg %p227
      $region38: #{tpu_custom_call.1} parent=5 // pred_check_branch
        %230 = sbr.rel (%p228) target = $region40
      $region39: #{tpu_custom_call.1} parent=5 // pred_region
        // Predicated region
        $region41: #{tpu_custom_call.1} parent=39 // pred_check
          %p231 = pneg %p36
        $region42: #{tpu_custom_call.1} parent=39 // pred_check_branch
          %233 = sbr.rel (%p231) target = $region44
        $region43: #{tpu_custom_call.1} parent=39 // pred_region
          %p234 = scmp.lt.s32.totalorder %s16, 1
          %s235 = scalar_select %p234, %s16, 1
          %s236 = smul.addr %s235, 32
          %s237 = smul.addr %s236, 8
          %s238 = scalar_lea.vmem %s0, %s237
        $region44: #{tpu_custom_call.1} parent=39 // pred_fallthru
          _
      $region40: #{tpu_custom_call.1} parent=5 // pred_fallthru
        _
      %p239 = scmp.le.s32.totalorder 1, %s16
      %p240 = scmp.lt.s32.totalorder %s16, 3
      %p241 = pnand %p239, %p240
      %p242 = pneg %p241
      // Predicated region
      $region45: #{tpu_custom_call.1} parent=5 // pred_check
        _
      $region46: #{tpu_custom_call.1} parent=5 // pred_check_branch
        %244 = sbr.rel (%p241) target = $region48
      $region47: #{tpu_custom_call.1} parent=5 // pred_region
        %s245 = ssub.s32 %s16, 1
        %p246 = scmp.lt.s32.totalorder %s21, 1
        %s247 = scalar_select %p246, %s21, 1
        %s248 = smul.addr %s247, 32
        %s249 = smul.addr %s248, 8
        %s250 = scalar_lea.vmem %s0, %s249
        %p251 = pneg %p42
        %p252 = pneg %p39
        %p253 = pneg %p63
        %p254 = pneg %p60
        %p255 = pneg %p84
        %p256 = pneg %p81
        %p257 = pneg %p105
        %p258 = pneg %p102
        %p259 = pneg %p126
        %p260 = pneg %p123
        %p261 = pneg %p147
        %p262 = pneg %p144
        %p263 = pneg %p168
        %p264 = pneg %p165
        %p265 = pneg %p194
        %p266 = pneg %p191
        %s267 = sand.u32 %s181, 1
        %s268 = scalar_lea.sflag [#allocation5], %s267
        %s269 = sand.u32 %s181, 1
        %s270 = smul.addr %s269, 16
        %s271 = scalar_lea.vmem [#allocation4], %s270
        %p272 = scmp.lt.s32.totalorder %s21, 1
        %s273 = scalar_select %p272, %s21, 1
        %s274 = smul.addr %s273, 32
        %s275 = smul.addr %s274, 8
        %s276 = scalar_lea.vmem %s0, %s275
        %vm277 = vcmask 31744
        %278 = vst.msk [vmem:[#allocation2] sm:$0xff] %vm277, 0.0
        %279 = vst.msk [vmem:[#allocation2 + $0x8] sm:$0xff] %vm277, 0.0
        %vm280 = vcmask 25600
        %281 = vst.msk [vmem:[#allocation2 + $0x10] sm:$0x3] %vm280, 0.0
        %s282 = scalar_lea.vmem [#allocation2], 408
        %283 = vst.msk [vmem:[%s282] sm:$0xff] %vm277, 0.0
        %284 = vst.msk [vmem:[%s282 + $0x8] sm:$0xff] %vm277, 0.0
        %285 = vst.msk [vmem:[%s282 + $0x10] sm:$0x3] %vm280, 0.0
        %vm286 = vcmask 24576
        %287 = vst.msk [vmem:[#allocation2] sm:$0x1] %vm286, 0.0
        %288 = vst.msk [vmem:[#allocation2 + $0x18] sm:$0x1] %vm286, 0.0
        %289 = vst.msk [vmem:[#allocation2 + $0x30] sm:$0x1] %vm286, 0.0
        %290 = vst.msk [vmem:[#allocation2 + $0x48] sm:$0x1] %vm286, 0.0
        %291 = vst.msk [vmem:[#allocation2 + $0x60] sm:$0x1] %vm286, 0.0
        %292 = vst.msk [vmem:[#allocation2 + $0x78] sm:$0x1] %vm286, 0.0
        %293 = vst.msk [vmem:[#allocation2 + $0x90] sm:$0x1] %vm286, 0.0
        %294 = vst.msk [vmem:[#allocation2 + $0xa8] sm:$0x1] %vm286, 0.0
        %295 = vst.msk [vmem:[#allocation2 + $0xc0] sm:$0x1] %vm286, 0.0
        %296 = vst.msk [vmem:[#allocation2 + $0xd8] sm:$0x1] %vm286, 0.0
        %297 = vst.msk [vmem:[#allocation2 + $0xf0] sm:$0x1] %vm286, 0.0
        %298 = vst.msk [vmem:[#allocation2 + $0x108] sm:$0x1] %vm286, 0.0
        %299 = vst.msk [vmem:[#allocation2 + $0x120] sm:$0x1] %vm286, 0.0
        %300 = vst.msk [vmem:[#allocation2 + $0x138] sm:$0x1] %vm286, 0.0
        %301 = vst.msk [vmem:[#allocation2 + $0x150] sm:$0x1] %vm286, 0.0
        %302 = vst.msk [vmem:[#allocation2 + $0x168] sm:$0x1] %vm286, 0.0
        %303 = vst.msk [vmem:[#allocation2 + $0x180] sm:$0x1] %vm286, 0.0
        %304 = vst.msk [vmem:[#allocation2 + $0x198] sm:$0x1] %vm286, 0.0
        %305 = vst.msk [vmem:[#allocation2 + $0x11] sm:$0x1] %vm286, 0.0
        %306 = vst.msk [vmem:[#allocation2 + $0x29] sm:$0x1] %vm286, 0.0
        %307 = vst.msk [vmem:[#allocation2 + $0x41] sm:$0x1] %vm286, 0.0
        %308 = vst.msk [vmem:[#allocation2 + $0x59] sm:$0x1] %vm286, 0.0
        %309 = vst.msk [vmem:[#allocation2 + $0x71] sm:$0x1] %vm286, 0.0
        %310 = vst.msk [vmem:[#allocation2 + $0x89] sm:$0x1] %vm286, 0.0
        %311 = vst.msk [vmem:[#allocation2 + $0xa1] sm:$0x1] %vm286, 0.0
        %312 = vst.msk [vmem:[#allocation2 + $0xb9] sm:$0x1] %vm286, 0.0
        %313 = vst.msk [vmem:[#allocation2 + $0xd1] sm:$0x1] %vm286, 0.0
        %314 = vst.msk [vmem:[#allocation2 + $0xe9] sm:$0x1] %vm286, 0.0
        %315 = vst.msk [vmem:[#allocation2 + $0x101] sm:$0x1] %vm286, 0.0
        %316 = vst.msk [vmem:[#allocation2 + $0x119] sm:$0x1] %vm286, 0.0
        %317 = vst.msk [vmem:[#allocation2 + $0x131] sm:$0x1] %vm286, 0.0
        %318 = vst.msk [vmem:[#allocation2 + $0x149] sm:$0x1] %vm286, 0.0
        %319 = vst.msk [vmem:[#allocation2 + $0x161] sm:$0x1] %vm286, 0.0
        %320 = vst.msk [vmem:[#allocation2 + $0x179] sm:$0x1] %vm286, 0.0
        %321 = vst.msk [vmem:[#allocation2 + $0x191] sm:$0x1] %vm286, 0.0
        %322 = vst.msk [vmem:[#allocation2 + $0x1a9] sm:$0x1] %vm286, 0.0
        %v323 = vld [vmem:[%s276] sm:$0xff]
        %v324 = vld [vmem:[%s276 + $0x8] sm:$0xff]
        %v325 = vld [vmem:[%s276 + $0x10] sm:$0xff]
        %v326 = vld [vmem:[%s276 + $0x18] sm:$0xff]
        %v327 = vld [vmem:[%s276 + $0x20] sm:$0xff]
        %v328 = vld [vmem:[%s276 + $0x28] sm:$0xff]
        %v329 = vld [vmem:[%s276 + $0x30] sm:$0xff]
        %v330 = vld [vmem:[%s276 + $0x38] sm:$0xff]
        %v331 = vld [vmem:[%s276 + $0x40] sm:$0xff]
        %v332 = vld [vmem:[%s276 + $0x48] sm:$0xff]
        %v333 = vld [vmem:[%s276 + $0x50] sm:$0xff]
        %v334 = vld [vmem:[%s276 + $0x58] sm:$0xff]
        %v335 = vld [vmem:[%s276 + $0x60] sm:$0xff]
        %v336 = vld [vmem:[%s276 + $0x68] sm:$0xff]
        %v337 = vld [vmem:[%s276 + $0x70] sm:$0xff]
        %v338 = vld [vmem:[%s276 + $0x78] sm:$0xff]
        %v339 = vld [vmem:[%s276 + $0x80] sm:$0xff]
        %v340 = vld [vmem:[%s276 + $0x88] sm:$0xff]
        %v341 = vld [vmem:[%s276 + $0x90] sm:$0xff]
        %v342 = vld [vmem:[%s276 + $0x98] sm:$0xff]
        %v343 = vld [vmem:[%s276 + $0xa0] sm:$0xff]
        %v344 = vld [vmem:[%s276 + $0xa8] sm:$0xff]
        %v345 = vld [vmem:[%s276 + $0xb0] sm:$0xff]
        %v346 = vld [vmem:[%s276 + $0xb8] sm:$0xff]
        %v347 = vld [vmem:[%s276 + $0xc0] sm:$0xff]
        %v348 = vld [vmem:[%s276 + $0xc8] sm:$0xff]
        %v349 = vld [vmem:[%s276 + $0xd0] sm:$0xff]
        %v350 = vld [vmem:[%s276 + $0xd8] sm:$0xff]
        %v351 = vld [vmem:[%s276 + $0xe0] sm:$0xff]
        %v352 = vld [vmem:[%s276 + $0xe8] sm:$0xff]
        %v353 = vld [vmem:[%s276 + $0xf0] sm:$0xff]
        %v354 = vld [vmem:[%s276 + $0xf8] sm:$0xff]
        %s355 = scalar_lea.vmem [#allocation2], 24
        %356 = vst.msk [vmem:[%s355 + $0x1] sm:$0xff] %vm277, %v323
        %357 = vst.msk [vmem:[%s355 + $0x9] sm:$0xff] %vm277, %v324
        %358 = vst.msk [vmem:[%s355 + $0x19] sm:$0xff] %vm277, %v325
        %359 = vst.msk [vmem:[%s355 + $0x21] sm:$0xff] %vm277, %v326
        %360 = vst.msk [vmem:[%s355 + $0x31] sm:$0xff] %vm277, %v327
        %361 = vst.msk [vmem:[%s355 + $0x39] sm:$0xff] %vm277, %v328
        %362 = vst.msk [vmem:[%s355 + $0x49] sm:$0xff] %vm277, %v329
        %363 = vst.msk [vmem:[%s355 + $0x51] sm:$0xff] %vm277, %v330
        %364 = vst.msk [vmem:[%s355 + $0x61] sm:$0xff] %vm277, %v331
        %365 = vst.msk [vmem:[%s355 + $0x69] sm:$0xff] %vm277, %v332
        %366 = vst.msk [vmem:[%s355 + $0x79] sm:$0xff] %vm277, %v333
        %367 = vst.msk [vmem:[%s355 + $0x81] sm:$0xff] %vm277, %v334
        %368 = vst.msk [vmem:[%s355 + $0x91] sm:$0xff] %vm277, %v335
        %369 = vst.msk [vmem:[%s355 + $0x99] sm:$0xff] %vm277, %v336
        %370 = vst.msk [vmem:[%s355 + $0xa9] sm:$0xff] %vm277, %v337
        %371 = vst.msk [vmem:[%s355 + $0xb1] sm:$0xff] %vm277, %v338
        %372 = vst.msk [vmem:[%s355 + $0xc1] sm:$0xff] %vm277, %v339
        %373 = vst.msk [vmem:[%s355 + $0xc9] sm:$0xff] %vm277, %v340
        %374 = vst.msk [vmem:[%s355 + $0xd9] sm:$0xff] %vm277, %v341
        %375 = vst.msk [vmem:[%s355 + $0xe1] sm:$0xff] %vm277, %v342
        %376 = vst.msk [vmem:[%s355 + $0xf1] sm:$0xff] %vm277, %v343
        %377 = vst.msk [vmem:[%s355 + $0xf9] sm:$0xff] %vm277, %v344
        %378 = vst.msk [vmem:[%s355 + $0x109] sm:$0xff] %vm277, %v345
        %379 = vst.msk [vmem:[%s355 + $0x111] sm:$0xff] %vm277, %v346
        %380 = vst.msk [vmem:[%s355 + $0x121] sm:$0xff] %vm277, %v347
        %381 = vst.msk [vmem:[%s355 + $0x129] sm:$0xff] %vm277, %v348
        %382 = vst.msk [vmem:[%s355 + $0x139] sm:$0xff] %vm277, %v349
        %383 = vst.msk [vmem:[%s355 + $0x141] sm:$0xff] %vm277, %v350
        %384 = vst.msk [vmem:[%s355 + $0x151] sm:$0xff] %vm277, %v351
        %385 = vst.msk [vmem:[%s355 + $0x159] sm:$0xff] %vm277, %v352
        %386 = vst.msk [vmem:[%s355 + $0x169] sm:$0xff] %vm277, %v353
        %387 = vst.msk [vmem:[%s355 + $0x171] sm:$0xff] %vm277, %v354
        %v388 = vld [vmem:[%s1] sm:$0x7]
        %v389 = vld [vmem:[%s1 + $0x4] sm:$0x7]
        %v390 = vld [vmem:[%s1 + $0x8] sm:$0x7]
        %v391 = vld [vmem:[#allocation2] sm:$0xff]
        %v392 = vld [vmem:[#allocation2 + $0x8] sm:$0xff]
        %v393 = vld [vmem:[#allocation2 + $0x18] sm:$0xff]
        %v394 = vld [vmem:[#allocation2 + $0x20] sm:$0xff]
        %v395 = vld [vmem:[#allocation2 + $0x30] sm:$0xff]
        %v396 = vld [vmem:[#allocation2 + $0x38] sm:$0xff]
        %v397 = vld [vmem:[#allocation2 + $0x48] sm:$0xff]
        %v398 = vld [vmem:[#allocation2 + $0x50] sm:$0xff]
        %v399 = vld [vmem:[#allocation2 + $0x60] sm:$0xff]
        %v400 = vld [vmem:[#allocation2 + $0x68] sm:$0xff]
        %v401 = vld [vmem:[#allocation2 + $0x78] sm:$0xff]
        %v402 = vld [vmem:[#allocation2 + $0x80] sm:$0xff]
        %v403 = vld [vmem:[#allocation2 + $0x90] sm:$0xff]
        %v404 = vld [vmem:[#allocation2 + $0x98] sm:$0xff]
        %v405 = vld [vmem:[#allocation2 + $0xa8] sm:$0xff]
        %v406 = vld [vmem:[#allocation2 + $0xb0] sm:$0xff]
        %v407 = vld [vmem:[#allocation2 + $0xc0] sm:$0xff]
        %v408 = vld [vmem:[#allocation2 + $0xc8] sm:$0xff]
        %v409 = vld [vmem:[#allocation2 + $0xd8] sm:$0xff]
        %v410 = vld [vmem:[#allocation2 + $0xe0] sm:$0xff]
        %v411 = vld [vmem:[#allocation2 + $0xf0] sm:$0xff]
        %v412 = vld [vmem:[#allocation2 + $0xf8] sm:$0xff]
        %v413 = vld [vmem:[#allocation2 + $0x108] sm:$0xff]
        %v414 = vld [vmem:[#allocation2 + $0x110] sm:$0xff]
        %v415 = vld [vmem:[#allocation2 + $0x120] sm:$0xff]
        %v416 = vld [vmem:[#allocation2 + $0x128] sm:$0xff]
        %v417 = vld [vmem:[#allocation2 + $0x138] sm:$0xff]
        %v418 = vld [vmem:[#allocation2 + $0x140] sm:$0xff]
        %v419 = vld [vmem:[#allocation2 + $0x150] sm:$0xff]
        %v420 = vld [vmem:[#allocation2 + $0x158] sm:$0xff]
        %v421 = vld [vmem:[#allocation2 + $0x168] sm:$0xff]
        %v422 = vld [vmem:[#allocation2 + $0x170] sm:$0xff]
        %v423 = vlaneseq
        %v424 = vshrl.u32 %v423, 7
        %v425 = vsub.s32 0, %v424
        %v426 = vrot.slane %v388, %v425
        %v427 = vmul.f32 %v391, %v426
        %v428 = vmul.f32 %v392, %v426
        %v429 = vmul.f32 %v393, %v426
        %v430 = vmul.f32 %v394, %v426
        %v431 = vmul.f32 %v395, %v426
        %v432 = vmul.f32 %v396, %v426
        %v433 = vmul.f32 %v397, %v426
        %v434 = vmul.f32 %v398, %v426
        %v435 = vmul.f32 %v399, %v426
        %v436 = vmul.f32 %v400, %v426
        %v437 = vmul.f32 %v401, %v426
        %v438 = vmul.f32 %v402, %v426
        %v439 = vmul.f32 %v403, %v426
        %v440 = vmul.f32 %v404, %v426
        %v441 = vmul.f32 %v405, %v426
        %v442 = vmul.f32 %v406, %v426
        %v443 = vmul.f32 %v407, %v426
        %v444 = vmul.f32 %v408, %v426
        %v445 = vmul.f32 %v409, %v426
        %v446 = vmul.f32 %v410, %v426
        %v447 = vmul.f32 %v411, %v426
        %v448 = vmul.f32 %v412, %v426
        %v449 = vmul.f32 %v413, %v426
        %v450 = vmul.f32 %v414, %v426
        %v451 = vmul.f32 %v415, %v426
        %v452 = vmul.f32 %v416, %v426
        %v453 = vmul.f32 %v417, %v426
        %v454 = vmul.f32 %v418, %v426
        %v455 = vmul.f32 %v419, %v426
        %v456 = vmul.f32 %v420, %v426
        %v457 = vmul.f32 %v421, %v426
        %v458 = vmul.f32 %v422, %v426
        %v459 = vadd.f32 %v427, 0.0
        %v460 = vadd.f32 %v428, 0.0
        %v461 = vadd.f32 %v429, 0.0
        %v462 = vadd.f32 %v430, 0.0
        %v463 = vadd.f32 %v431, 0.0
        %v464 = vadd.f32 %v432, 0.0
        %v465 = vadd.f32 %v433, 0.0
        %v466 = vadd.f32 %v434, 0.0
        %v467 = vadd.f32 %v435, 0.0
        %v468 = vadd.f32 %v436, 0.0
        %v469 = vadd.f32 %v437, 0.0
        %v470 = vadd.f32 %v438, 0.0
        %v471 = vadd.f32 %v439, 0.0
        %v472 = vadd.f32 %v440, 0.0
        %v473 = vadd.f32 %v441, 0.0
        %v474 = vadd.f32 %v442, 0.0
        %v475 = vadd.f32 %v443, 0.0
        %v476 = vadd.f32 %v444, 0.0
        %v477 = vadd.f32 %v445, 0.0
        %v478 = vadd.f32 %v446, 0.0
        %v479 = vadd.f32 %v447, 0.0
        %v480 = vadd.f32 %v448, 0.0
        %v481 = vadd.f32 %v449, 0.0
        %v482 = vadd.f32 %v450, 0.0
        %v483 = vadd.f32 %v451, 0.0
        %v484 = vadd.f32 %v452, 0.0
        %v485 = vadd.f32 %v453, 0.0
        %v486 = vadd.f32 %v454, 0.0
        %v487 = vadd.f32 %v455, 0.0
        %v488 = vadd.f32 %v456, 0.0
        %v489 = vadd.f32 %v457, 0.0
        %v490 = vadd.f32 %v458, 0.0
        %v491 = vld [vmem:[#allocation2 + $0x1] sm:$0xff]
        %v492 = vld [vmem:[#allocation2 + $0x9] sm:$0xff]
        %v493 = vld [vmem:[#allocation2 + $0x19] sm:$0xff]
        %v494 = vld [vmem:[#allocation2 + $0x21] sm:$0xff]
        %v495 = vld [vmem:[#allocation2 + $0x31] sm:$0xff]
        %v496 = vld [vmem:[#allocation2 + $0x39] sm:$0xff]
        %v497 = vld [vmem:[#allocation2 + $0x49] sm:$0xff]
        %v498 = vld [vmem:[#allocation2 + $0x51] sm:$0xff]
        %v499 = vld [vmem:[#allocation2 + $0x61] sm:$0xff]
        %v500 = vld [vmem:[#allocation2 + $0x69] sm:$0xff]
        %v501 = vld [vmem:[#allocation2 + $0x79] sm:$0xff]
        %v502 = vld [vmem:[#allocation2 + $0x81] sm:$0xff]
        %v503 = vld [vmem:[#allocation2 + $0x91] sm:$0xff]
        %v504 = vld [vmem:[#allocation2 + $0x99] sm:$0xff]
        %v505 = vld [vmem:[#allocation2 + $0xa9] sm:$0xff]
        %v506 = vld [vmem:[#allocation2 + $0xb1] sm:$0xff]
        %v507 = vld [vmem:[#allocation2 + $0xc1] sm:$0xff]
        %v508 = vld [vmem:[#allocation2 + $0xc9] sm:$0xff]
        %v509 = vld [vmem:[#allocation2 + $0xd9] sm:$0xff]
        %v510 = vld [vmem:[#allocation2 + $0xe1] sm:$0xff]
        %v511 = vld [vmem:[#allocation2 + $0xf1] sm:$0xff]
        %v512 = vld [vmem:[#allocation2 + $0xf9] sm:$0xff]
        %v513 = vld [vmem:[#allocation2 + $0x109] sm:$0xff]
        %v514 = vld [vmem:[#allocation2 + $0x111] sm:$0xff]
        %v515 = vld [vmem:[#allocation2 + $0x121] sm:$0xff]
        %v516 = vld [vmem:[#allocation2 + $0x129] sm:$0xff]
        %v517 = vld [vmem:[#allocation2 + $0x139] sm:$0xff]
        %v518 = vld [vmem:[#allocation2 + $0x141] sm:$0xff]
        %v519 = vld [vmem:[#allocation2 + $0x151] sm:$0xff]
        %v520 = vld [vmem:[#allocation2 + $0x159] sm:$0xff]
        %v521 = vld [vmem:[#allocation2 + $0x169] sm:$0xff]
        %v522 = vld [vmem:[#allocation2 + $0x171] sm:$0xff]
        %v523 = vlaneseq
        %v524 = vshrl.u32 %v523, 7
        %v525 = vsub.s32 1, %v524
        %v526 = vrot.slane %v388, %v525
        %v527 = vmul.f32 %v491, %v526
        %v528 = vmul.f32 %v492, %v526
        %v529 = vmul.f32 %v493, %v526
        %v530 = vmul.f32 %v494, %v526
        %v531 = vmul.f32 %v495, %v526
        %v532 = vmul.f32 %v496, %v526
        %v533 = vmul.f32 %v497, %v526
        %v534 = vmul.f32 %v498, %v526
        %v535 = vmul.f32 %v499, %v526
        %v536 = vmul.f32 %v500, %v526
        %v537 = vmul.f32 %v501, %v526
        %v538 = vmul.f32 %v502, %v526
        %v539 = vmul.f32 %v503, %v526
        %v540 = vmul.f32 %v504, %v526
        %v541 = vmul.f32 %v505, %v526
        %v542 = vmul.f32 %v506, %v526
        %v543 = vmul.f32 %v507, %v526
        %v544 = vmul.f32 %v508, %v526
        %v545 = vmul.f32 %v509, %v526
        %v546 = vmul.f32 %v510, %v526
        %v547 = vmul.f32 %v511, %v526
        %v548 = vmul.f32 %v512, %v526
        %v549 = vmul.f32 %v513, %v526
        %v550 = vmul.f32 %v514, %v526
        %v551 = vmul.f32 %v515, %v526
        %v552 = vmul.f32 %v516, %v526
        %v553 = vmul.f32 %v517, %v526
        %v554 = vmul.f32 %v518, %v526
        %v555 = vmul.f32 %v519, %v526
        %v556 = vmul.f32 %v520, %v526
        %v557 = vmul.f32 %v521, %v526
        %v558 = vmul.f32 %v522, %v526
        %v559 = vadd.f32 %v459, %v527
        %v560 = vadd.f32 %v460, %v528
        %v561 = vadd.f32 %v461, %v529
        %v562 = vadd.f32 %v462, %v530
        %v563 = vadd.f32 %v463, %v531
        %v564 = vadd.f32 %v464, %v532
        %v565 = vadd.f32 %v465, %v533
        %v566 = vadd.f32 %v466, %v534
        %v567 = vadd.f32 %v467, %v535
        %v568 = vadd.f32 %v468, %v536
        %v569 = vadd.f32 %v469, %v537
        %v570 = vadd.f32 %v470, %v538
        %v571 = vadd.f32 %v471, %v539
        %v572 = vadd.f32 %v472, %v540
        %v573 = vadd.f32 %v473, %v541
        %v574 = vadd.f32 %v474, %v542
        %v575 = vadd.f32 %v475, %v543
        %v576 = vadd.f32 %v476, %v544
        %v577 = vadd.f32 %v477, %v545
        %v578 = vadd.f32 %v478, %v546
        %v579 = vadd.f32 %v479, %v547
        %v580 = vadd.f32 %v480, %v548
        %v581 = vadd.f32 %v481, %v549
        %v582 = vadd.f32 %v482, %v550
        %v583 = vadd.f32 %v483, %v551
        %v584 = vadd.f32 %v484, %v552
        %v585 = vadd.f32 %v485, %v553
        %v586 = vadd.f32 %v486, %v554
        %v587 = vadd.f32 %v487, %v555
        %v588 = vadd.f32 %v488, %v556
        %v589 = vadd.f32 %v489, %v557
        %v590 = vadd.f32 %v490, %v558
        %v591 = vld [vmem:[#allocation2 + $0x2] sm:$0xff]
        %v592 = vld [vmem:[#allocation2 + $0xa] sm:$0xff]
        %v593 = vld [vmem:[#allocation2 + $0x1a] sm:$0xff]
        %v594 = vld [vmem:[#allocation2 + $0x22] sm:$0xff]
        %v595 = vld [vmem:[#allocation2 + $0x32] sm:$0xff]
        %v596 = vld [vmem:[#allocation2 + $0x3a] sm:$0xff]
        %v597 = vld [vmem:[#allocation2 + $0x4a] sm:$0xff]
        %v598 = vld [vmem:[#allocation2 + $0x52] sm:$0xff]
        %v599 = vld [vmem:[#allocation2 + $0x62] sm:$0xff]
        %v600 = vld [vmem:[#allocation2 + $0x6a] sm:$0xff]
        %v601 = vld [vmem:[#allocation2 + $0x7a] sm:$0xff]
        %v602 = vld [vmem:[#allocation2 + $0x82] sm:$0xff]
        %v603 = vld [vmem:[#allocation2 + $0x92] sm:$0xff]
        %v604 = vld [vmem:[#allocation2 + $0x9a] sm:$0xff]
        %v605 = vld [vmem:[#allocation2 + $0xaa] sm:$0xff]
        %v606 = vld [vmem:[#allocation2 + $0xb2] sm:$0xff]
        %v607 = vld [vmem:[#allocation2 + $0xc2] sm:$0xff]
        %v608 = vld [vmem:[#allocation2 + $0xca] sm:$0xff]
        %v609 = vld [vmem:[#allocation2 + $0xda] sm:$0xff]
        %v610 = vld [vmem:[#allocation2 + $0xe2] sm:$0xff]
        %v611 = vld [vmem:[#allocation2 + $0xf2] sm:$0xff]
        %v612 = vld [vmem:[#allocation2 + $0xfa] sm:$0xff]
        %v613 = vld [vmem:[#allocation2 + $0x10a] sm:$0xff]
        %v614 = vld [vmem:[#allocation2 + $0x112] sm:$0xff]
        %v615 = vld [vmem:[#allocation2 + $0x122] sm:$0xff]
        %v616 = vld [vmem:[#allocation2 + $0x12a] sm:$0xff]
        %v617 = vld [vmem:[#allocation2 + $0x13a] sm:$0xff]
        %v618 = vld [vmem:[#allocation2 + $0x142] sm:$0xff]
        %v619 = vld [vmem:[#allocation2 + $0x152] sm:$0xff]
        %v620 = vld [vmem:[#allocation2 + $0x15a] sm:$0xff]
        %v621 = vld [vmem:[#allocation2 + $0x16a] sm:$0xff]
        %v622 = vld [vmem:[#allocation2 + $0x172] sm:$0xff]
        %v623 = vlaneseq
        %v624 = vshrl.u32 %v623, 7
        %v625 = vsub.s32 2, %v624
        %v626 = vrot.slane %v388, %v625
        %v627 = vmul.f32 %v591, %v626
        %v628 = vmul.f32 %v592, %v626
        %v629 = vmul.f32 %v593, %v626
        %v630 = vmul.f32 %v594, %v626
        %v631 = vmul.f32 %v595, %v626
        %v632 = vmul.f32 %v596, %v626
        %v633 = vmul.f32 %v597, %v626
        %v634 = vmul.f32 %v598, %v626
        %v635 = vmul.f32 %v599, %v626
        %v636 = vmul.f32 %v600, %v626
        %v637 = vmul.f32 %v601, %v626
        %v638 = vmul.f32 %v602, %v626
        %v639 = vmul.f32 %v603, %v626
        %v640 = vmul.f32 %v604, %v626
        %v641 = vmul.f32 %v605, %v626
        %v642 = vmul.f32 %v606, %v626
        %v643 = vmul.f32 %v607, %v626
        %v644 = vmul.f32 %v608, %v626
        %v645 = vmul.f32 %v609, %v626
        %v646 = vmul.f32 %v610, %v626
        %v647 = vmul.f32 %v611, %v626
        %v648 = vmul.f32 %v612, %v626
        %v649 = vmul.f32 %v613, %v626
        %v650 = vmul.f32 %v614, %v626
        %v651 = vmul.f32 %v615, %v626
        %v652 = vmul.f32 %v616, %v626
        %v653 = vmul.f32 %v617, %v626
        %v654 = vmul.f32 %v618, %v626
        %v655 = vmul.f32 %v619, %v626
        %v656 = vmul.f32 %v620, %v626
        %v657 = vmul.f32 %v621, %v626
        %v658 = vmul.f32 %v622, %v626
        %v659 = vadd.f32 %v559, %v627
        %v660 = vadd.f32 %v560, %v628
        %v661 = vadd.f32 %v561, %v629
        %v662 = vadd.f32 %v562, %v630
        %v663 = vadd.f32 %v563, %v631
        %v664 = vadd.f32 %v564, %v632
        %v665 = vadd.f32 %v565, %v633
        %v666 = vadd.f32 %v566, %v634
        %v667 = vadd.f32 %v567, %v635
        %v668 = vadd.f32 %v568, %v636
        %v669 = vadd.f32 %v569, %v637
        %v670 = vadd.f32 %v570, %v638
        %v671 = vadd.f32 %v571, %v639
        %v672 = vadd.f32 %v572, %v640
        %v673 = vadd.f32 %v573, %v641
        %v674 = vadd.f32 %v574, %v642
        %v675 = vadd.f32 %v575, %v643
        %v676 = vadd.f32 %v576, %v644
        %v677 = vadd.f32 %v577, %v645
        %v678 = vadd.f32 %v578, %v646
        %v679 = vadd.f32 %v579, %v647
        %v680 = vadd.f32 %v580, %v648
        %v681 = vadd.f32 %v581, %v649
        %v682 = vadd.f32 %v582, %v650
        %v683 = vadd.f32 %v583, %v651
        %v684 = vadd.f32 %v584, %v652
        %v685 = vadd.f32 %v585, %v653
        %v686 = vadd.f32 %v586, %v654
        %v687 = vadd.f32 %v587, %v655
        %v688 = vadd.f32 %v588, %v656
        %v689 = vadd.f32 %v589, %v657
        %v690 = vadd.f32 %v590, %v658
        %v691 = vld [vmem:[%s355] sm:$0xff]
        %v692 = vld [vmem:[%s355 + $0x8] sm:$0xff]
        %v693 = vld [vmem:[%s355 + $0x18] sm:$0xff]
        %v694 = vld [vmem:[%s355 + $0x20] sm:$0xff]
        %v695 = vld [vmem:[%s355 + $0x30] sm:$0xff]
        %v696 = vld [vmem:[%s355 + $0x38] sm:$0xff]
        %v697 = vld [vmem:[%s355 + $0x48] sm:$0xff]
        %v698 = vld [vmem:[%s355 + $0x50] sm:$0xff]
        %v699 = vld [vmem:[%s355 + $0x60] sm:$0xff]
        %v700 = vld [vmem:[%s355 + $0x68] sm:$0xff]
        %v701 = vld [vmem:[%s355 + $0x78] sm:$0xff]
        %v702 = vld [vmem:[%s355 + $0x80] sm:$0xff]
        %v703 = vld [vmem:[%s355 + $0x90] sm:$0xff]
        %v704 = vld [vmem:[%s355 + $0x98] sm:$0xff]
        %v705 = vld [vmem:[%s355 + $0xa8] sm:$0xff]
        %v706 = vld [vmem:[%s355 + $0xb0] sm:$0xff]
        %v707 = vld [vmem:[%s355 + $0xc0] sm:$0xff]
        %v708 = vld [vmem:[%s355 + $0xc8] sm:$0xff]
        %v709 = vld [vmem:[%s355 + $0xd8] sm:$0xff]
        %v710 = vld [vmem:[%s355 + $0xe0] sm:$0xff]
        %v711 = vld [vmem:[%s355 + $0xf0] sm:$0xff]
        %v712 = vld [vmem:[%s355 + $0xf8] sm:$0xff]
        %v713 = vld [vmem:[%s355 + $0x108] sm:$0xff]
        %v714 = vld [vmem:[%s355 + $0x110] sm:$0xff]
        %v715 = vld [vmem:[%s355 + $0x120] sm:$0xff]
        %v716 = vld [vmem:[%s355 + $0x128] sm:$0xff]
        %v717 = vld [vmem:[%s355 + $0x138] sm:$0xff]
        %v718 = vld [vmem:[%s355 + $0x140] sm:$0xff]
        %v719 = vld [vmem:[%s355 + $0x150] sm:$0xff]
        %v720 = vld [vmem:[%s355 + $0x158] sm:$0xff]
        %v721 = vld [vmem:[%s355 + $0x168] sm:$0xff]
        %v722 = vld [vmem:[%s355 + $0x170] sm:$0xff]
        %v723 = vlaneseq
        %v724 = vshrl.u32 %v723, 7
        %v725 = vsub.s32 0, %v724
        %v726 = vrot.slane %v389, %v725
        %v727 = vmul.f32 %v691, %v726
        %v728 = vmul.f32 %v692, %v726
        %v729 = vmul.f32 %v693, %v726
        %v730 = vmul.f32 %v694, %v726
        %v731 = vmul.f32 %v695, %v726
        %v732 = vmul.f32 %v696, %v726
        %v733 = vmul.f32 %v697, %v726
        %v734 = vmul.f32 %v698, %v726
        %v735 = vmul.f32 %v699, %v726
        %v736 = vmul.f32 %v700, %v726
        %v737 = vmul.f32 %v701, %v726
        %v738 = vmul.f32 %v702, %v726
        %v739 = vmul.f32 %v703, %v726
        %v740 = vmul.f32 %v704, %v726
        %v741 = vmul.f32 %v705, %v726
        %v742 = vmul.f32 %v706, %v726
        %v743 = vmul.f32 %v707, %v726
        %v744 = vmul.f32 %v708, %v726
        %v745 = vmul.f32 %v709, %v726
        %v746 = vmul.f32 %v710, %v726
        %v747 = vmul.f32 %v711, %v726
        %v748 = vmul.f32 %v712, %v726
        %v749 = vmul.f32 %v713, %v726
        %v750 = vmul.f32 %v714, %v726
        %v751 = vmul.f32 %v715, %v726
        %v752 = vmul.f32 %v716, %v726
        %v753 = vmul.f32 %v717, %v726
        %v754 = vmul.f32 %v718, %v726
        %v755 = vmul.f32 %v719, %v726
        %v756 = vmul.f32 %v720, %v726
        %v757 = vmul.f32 %v721, %v726
        %v758 = vmul.f32 %v722, %v726
        %v759 = vadd.f32 %v659, %v727
        %v760 = vadd.f32 %v660, %v728
        %v761 = vadd.f32 %v661, %v729
        %v762 = vadd.f32 %v662, %v730
        %v763 = vadd.f32 %v663, %v731
        %v764 = vadd.f32 %v664, %v732
        %v765 = vadd.f32 %v665, %v733
        %v766 = vadd.f32 %v666, %v734
        %v767 = vadd.f32 %v667, %v735
        %v768 = vadd.f32 %v668, %v736
        %v769 = vadd.f32 %v669, %v737
        %v770 = vadd.f32 %v670, %v738
        %v771 = vadd.f32 %v671, %v739
        %v772 = vadd.f32 %v672, %v740
        %v773 = vadd.f32 %v673, %v741
        %v774 = vadd.f32 %v674, %v742
        %v775 = vadd.f32 %v675, %v743
        %v776 = vadd.f32 %v676, %v744
        %v777 = vadd.f32 %v677, %v745
        %v778 = vadd.f32 %v678, %v746
        %v779 = vadd.f32 %v679, %v747
        %v780 = vadd.f32 %v680, %v748
        %v781 = vadd.f32 %v681, %v749
        %v782 = vadd.f32 %v682, %v750
        %v783 = vadd.f32 %v683, %v751
        %v784 = vadd.f32 %v684, %v752
        %v785 = vadd.f32 %v685, %v753
        %v786 = vadd.f32 %v686, %v754
        %v787 = vadd.f32 %v687, %v755
        %v788 = vadd.f32 %v688, %v756
        %v789 = vadd.f32 %v689, %v757
        %v790 = vadd.f32 %v690, %v758
        %v791 = vld [vmem:[%s355 + $0x1] sm:$0xff]
        %v792 = vld [vmem:[%s355 + $0x9] sm:$0xff]
        %v793 = vld [vmem:[%s355 + $0x19] sm:$0xff]
        %v794 = vld [vmem:[%s355 + $0x21] sm:$0xff]
        %v795 = vld [vmem:[%s355 + $0x31] sm:$0xff]
        %v796 = vld [vmem:[%s355 + $0x39] sm:$0xff]
        %v797 = vld [vmem:[%s355 + $0x49] sm:$0xff]
        %v798 = vld [vmem:[%s355 + $0x51] sm:$0xff]
        %v799 = vld [vmem:[%s355 + $0x61] sm:$0xff]
        %v800 = vld [vmem:[%s355 + $0x69] sm:$0xff]
        %v801 = vld [vmem:[%s355 + $0x79] sm:$0xff]
        %v802 = vld [vmem:[%s355 + $0x81] sm:$0xff]
        %v803 = vld [vmem:[%s355 + $0x91] sm:$0xff]
        %v804 = vld [vmem:[%s355 + $0x99] sm:$0xff]
        %v805 = vld [vmem:[%s355 + $0xa9] sm:$0xff]
        %v806 = vld [vmem:[%s355 + $0xb1] sm:$0xff]
        %v807 = vld [vmem:[%s355 + $0xc1] sm:$0xff]
        %v808 = vld [vmem:[%s355 + $0xc9] sm:$0xff]
        %v809 = vld [vmem:[%s355 + $0xd9] sm:$0xff]
        %v810 = vld [vmem:[%s355 + $0xe1] sm:$0xff]
        %v811 = vld [vmem:[%s355 + $0xf1] sm:$0xff]
        %v812 = vld [vmem:[%s355 + $0xf9] sm:$0xff]
        %v813 = vld [vmem:[%s355 + $0x109] sm:$0xff]
        %v814 = vld [vmem:[%s355 + $0x111] sm:$0xff]
        %v815 = vld [vmem:[%s355 + $0x121] sm:$0xff]
        %v816 = vld [vmem:[%s355 + $0x129] sm:$0xff]
        %v817 = vld [vmem:[%s355 + $0x139] sm:$0xff]
        %v818 = vld [vmem:[%s355 + $0x141] sm:$0xff]
        %v819 = vld [vmem:[%s355 + $0x151] sm:$0xff]
        %v820 = vld [vmem:[%s355 + $0x159] sm:$0xff]
        %v821 = vld [vmem:[%s355 + $0x169] sm:$0xff]
        %v822 = vld [vmem:[%s355 + $0x171] sm:$0xff]
        %v823 = vlaneseq
        %v824 = vshrl.u32 %v823, 7
        %v825 = vsub.s32 1, %v824
        %v826 = vrot.slane %v389, %v825
        %v827 = vmul.f32 %v791, %v826
        %v828 = vmul.f32 %v792, %v826
        %v829 = vmul.f32 %v793, %v826
        %v830 = vmul.f32 %v794, %v826
        %v831 = vmul.f32 %v795, %v826
        %v832 = vmul.f32 %v796, %v826
        %v833 = vmul.f32 %v797, %v826
        %v834 = vmul.f32 %v798, %v826
        %v835 = vmul.f32 %v799, %v826
        %v836 = vmul.f32 %v800, %v826
        %v837 = vmul.f32 %v801, %v826
        %v838 = vmul.f32 %v802, %v826
        %v839 = vmul.f32 %v803, %v826
        %v840 = vmul.f32 %v804, %v826
        %v841 = vmul.f32 %v805, %v826
        %v842 = vmul.f32 %v806, %v826
        %v843 = vmul.f32 %v807, %v826
        %v844 = vmul.f32 %v808, %v826
        %v845 = vmul.f32 %v809, %v826
        %v846 = vmul.f32 %v810, %v826
        %v847 = vmul.f32 %v811, %v826
        %v848 = vmul.f32 %v812, %v826
        %v849 = vmul.f32 %v813, %v826
        %v850 = vmul.f32 %v814, %v826
        %v851 = vmul.f32 %v815, %v826
        %v852 = vmul.f32 %v816, %v826
        %v853 = vmul.f32 %v817, %v826
        %v854 = vmul.f32 %v818, %v826
        %v855 = vmul.f32 %v819, %v826
        %v856 = vmul.f32 %v820, %v826
        %v857 = vmul.f32 %v821, %v826
        %v858 = vmul.f32 %v822, %v826
        %v859 = vadd.f32 %v759, %v827
        %v860 = vadd.f32 %v760, %v828
        %v861 = vadd.f32 %v761, %v829
        %v862 = vadd.f32 %v762, %v830
        %v863 = vadd.f32 %v763, %v831
        %v864 = vadd.f32 %v764, %v832
        %v865 = vadd.f32 %v765, %v833
        %v866 = vadd.f32 %v766, %v834
        %v867 = vadd.f32 %v767, %v835
        %v868 = vadd.f32 %v768, %v836
        %v869 = vadd.f32 %v769, %v837
        %v870 = vadd.f32 %v770, %v838
        %v871 = vadd.f32 %v771, %v839
        %v872 = vadd.f32 %v772, %v840
        %v873 = vadd.f32 %v773, %v841
        %v874 = vadd.f32 %v774, %v842
        %v875 = vadd.f32 %v775, %v843
        %v876 = vadd.f32 %v776, %v844
        %v877 = vadd.f32 %v777, %v845
        %v878 = vadd.f32 %v778, %v846
        %v879 = vadd.f32 %v779, %v847
        %v880 = vadd.f32 %v780, %v848
        %v881 = vadd.f32 %v781, %v849
        %v882 = vadd.f32 %v782, %v850
        %v883 = vadd.f32 %v783, %v851
        %v884 = vadd.f32 %v784, %v852
        %v885 = vadd.f32 %v785, %v853
        %v886 = vadd.f32 %v786, %v854
        %v887 = vadd.f32 %v787, %v855
        %v888 = vadd.f32 %v788, %v856
        %v889 = vadd.f32 %v789, %v857
        %v890 = vadd.f32 %v790, %v858
        %v891 = vld [vmem:[%s355 + $0x2] sm:$0xff]
        %v892 = vld [vmem:[%s355 + $0xa] sm:$0xff]
        %v893 = vld [vmem:[%s355 + $0x1a] sm:$0xff]
        %v894 = vld [vmem:[%s355 + $0x22] sm:$0xff]
        %v895 = vld [vmem:[%s355 + $0x32] sm:$0xff]
        %v896 = vld [vmem:[%s355 + $0x3a] sm:$0xff]
        %v897 = vld [vmem:[%s355 + $0x4a] sm:$0xff]
        %v898 = vld [vmem:[%s355 + $0x52] sm:$0xff]
        %v899 = vld [vmem:[%s355 + $0x62] sm:$0xff]
        %v900 = vld [vmem:[%s355 + $0x6a] sm:$0xff]
        %v901 = vld [vmem:[%s355 + $0x7a] sm:$0xff]
        %v902 = vld [vmem:[%s355 + $0x82] sm:$0xff]
        %v903 = vld [vmem:[%s355 + $0x92] sm:$0xff]
        %v904 = vld [vmem:[%s355 + $0x9a] sm:$0xff]
        %v905 = vld [vmem:[%s355 + $0xaa] sm:$0xff]
        %v906 = vld [vmem:[%s355 + $0xb2] sm:$0xff]
        %v907 = vld [vmem:[%s355 + $0xc2] sm:$0xff]
        %v908 = vld [vmem:[%s355 + $0xca] sm:$0xff]
        %v909 = vld [vmem:[%s355 + $0xda] sm:$0xff]
        %v910 = vld [vmem:[%s355 + $0xe2] sm:$0xff]
        %v911 = vld [vmem:[%s355 + $0xf2] sm:$0xff]
        %v912 = vld [vmem:[%s355 + $0xfa] sm:$0xff]
        %v913 = vld [vmem:[%s355 + $0x10a] sm:$0xff]
        %v914 = vld [vmem:[%s355 + $0x112] sm:$0xff]
        %v915 = vld [vmem:[%s355 + $0x122] sm:$0xff]
        %v916 = vld [vmem:[%s355 + $0x12a] sm:$0xff]
        %v917 = vld [vmem:[%s355 + $0x13a] sm:$0xff]
        %v918 = vld [vmem:[%s355 + $0x142] sm:$0xff]
        %v919 = vld [vmem:[%s355 + $0x152] sm:$0xff]
        %v920 = vld [vmem:[%s355 + $0x15a] sm:$0xff]
        %v921 = vld [vmem:[%s355 + $0x16a] sm:$0xff]
        %v922 = vld [vmem:[%s355 + $0x172] sm:$0xff]
        %v923 = vlaneseq
        %v924 = vshrl.u32 %v923, 7
        %v925 = vsub.s32 2, %v924
        %v926 = vrot.slane %v389, %v925
        %v927 = vmul.f32 %v891, %v926
        %v928 = vmul.f32 %v892, %v926
        %v929 = vmul.f32 %v893, %v926
        %v930 = vmul.f32 %v894, %v926
        %v931 = vmul.f32 %v895, %v926
        %v932 = vmul.f32 %v896, %v926
        %v933 = vmul.f32 %v897, %v926
        %v934 = vmul.f32 %v898, %v926
        %v935 = vmul.f32 %v899, %v926
        %v936 = vmul.f32 %v900, %v926
        %v937 = vmul.f32 %v901, %v926
        %v938 = vmul.f32 %v902, %v926
        %v939 = vmul.f32 %v903, %v926
        %v940 = vmul.f32 %v904, %v926
        %v941 = vmul.f32 %v905, %v926
        %v942 = vmul.f32 %v906, %v926
        %v943 = vmul.f32 %v907, %v926
        %v944 = vmul.f32 %v908, %v926
        %v945 = vmul.f32 %v909, %v926
        %v946 = vmul.f32 %v910, %v926
        %v947 = vmul.f32 %v911, %v926
        %v948 = vmul.f32 %v912, %v926
        %v949 = vmul.f32 %v913, %v926
        %v950 = vmul.f32 %v914, %v926
        %v951 = vmul.f32 %v915, %v926
        %v952 = vmul.f32 %v916, %v926
        %v953 = vmul.f32 %v917, %v926
        %v954 = vmul.f32 %v918, %v926
        %v955 = vmul.f32 %v919, %v926
        %v956 = vmul.f32 %v920, %v926
        %v957 = vmul.f32 %v921, %v926
        %v958 = vmul.f32 %v922, %v926
        %v959 = vadd.f32 %v859, %v927
        %v960 = vadd.f32 %v860, %v928
        %v961 = vadd.f32 %v861, %v929
        %v962 = vadd.f32 %v862, %v930
        %v963 = vadd.f32 %v863, %v931
        %v964 = vadd.f32 %v864, %v932
        %v965 = vadd.f32 %v865, %v933
        %v966 = vadd.f32 %v866, %v934
        %v967 = vadd.f32 %v867, %v935
        %v968 = vadd.f32 %v868, %v936
        %v969 = vadd.f32 %v869, %v937
        %v970 = vadd.f32 %v870, %v938
        %v971 = vadd.f32 %v871, %v939
        %v972 = vadd.f32 %v872, %v940
        %v973 = vadd.f32 %v873, %v941
        %v974 = vadd.f32 %v874, %v942
        %v975 = vadd.f32 %v875, %v943
        %v976 = vadd.f32 %v876, %v944
        %v977 = vadd.f32 %v877, %v945
        %v978 = vadd.f32 %v878, %v946
        %v979 = vadd.f32 %v879, %v947
        %v980 = vadd.f32 %v880, %v948
        %v981 = vadd.f32 %v881, %v949
        %v982 = vadd.f32 %v882, %v950
        %v983 = vadd.f32 %v883, %v951
        %v984 = vadd.f32 %v884, %v952
        %v985 = vadd.f32 %v885, %v953
        %v986 = vadd.f32 %v886, %v954
        %v987 = vadd.f32 %v887, %v955
        %v988 = vadd.f32 %v888, %v956
        %v989 = vadd.f32 %v889, %v957
        %v990 = vadd.f32 %v890, %v958
        %s991 = scalar_lea.vmem [#allocation2], 48
        %v992 = vld [vmem:[%s991] sm:$0xff]
        %v993 = vld [vmem:[%s991 + $0x8] sm:$0xff]
        %v994 = vld [vmem:[%s991 + $0x18] sm:$0xff]
        %v995 = vld [vmem:[%s991 + $0x20] sm:$0xff]
        %v996 = vld [vmem:[%s991 + $0x30] sm:$0xff]
        %v997 = vld [vmem:[%s991 + $0x38] sm:$0xff]
        %v998 = vld [vmem:[%s991 + $0x48] sm:$0xff]
        %v999 = vld [vmem:[%s991 + $0x50] sm:$0xff]
        %v1000 = vld [vmem:[%s991 + $0x60] sm:$0xff]
        %v1001 = vld [vmem:[%s991 + $0x68] sm:$0xff]
        %v1002 = vld [vmem:[%s991 + $0x78] sm:$0xff]
        %v1003 = vld [vmem:[%s991 + $0x80] sm:$0xff]
        %v1004 = vld [vmem:[%s991 + $0x90] sm:$0xff]
        %v1005 = vld [vmem:[%s991 + $0x98] sm:$0xff]
        %v1006 = vld [vmem:[%s991 + $0xa8] sm:$0xff]
        %v1007 = vld [vmem:[%s991 + $0xb0] sm:$0xff]
        %v1008 = vld [vmem:[%s991 + $0xc0] sm:$0xff]
        %v1009 = vld [vmem:[%s991 + $0xc8] sm:$0xff]
        %v1010 = vld [vmem:[%s991 + $0xd8] sm:$0xff]
        %v1011 = vld [vmem:[%s991 + $0xe0] sm:$0xff]
        %v1012 = vld [vmem:[%s991 + $0xf0] sm:$0xff]
        %v1013 = vld [vmem:[%s991 + $0xf8] sm:$0xff]
        %v1014 = vld [vmem:[%s991 + $0x108] sm:$0xff]
        %v1015 = vld [vmem:[%s991 + $0x110] sm:$0xff]
        %v1016 = vld [vmem:[%s991 + $0x120] sm:$0xff]
        %v1017 = vld [vmem:[%s991 + $0x128] sm:$0xff]
        %v1018 = vld [vmem:[%s991 + $0x138] sm:$0xff]
        %v1019 = vld [vmem:[%s991 + $0x140] sm:$0xff]
        %v1020 = vld [vmem:[%s991 + $0x150] sm:$0xff]
        %v1021 = vld [vmem:[%s991 + $0x158] sm:$0xff]
        %v1022 = vld [vmem:[%s991 + $0x168] sm:$0xff]
        %v1023 = vld [vmem:[%s991 + $0x170] sm:$0xff]
        %v1024 = vlaneseq
        %v1025 = vshrl.u32 %v1024, 7
        %v1026 = vsub.s32 0, %v1025
        %v1027 = vrot.slane %v390, %v1026
        %v1028 = vmul.f32 %v992, %v1027
        %v1029 = vmul.f32 %v993, %v1027
        %v1030 = vmul.f32 %v994, %v1027
        %v1031 = vmul.f32 %v995, %v1027
        %v1032 = vmul.f32 %v996, %v1027
        %v1033 = vmul.f32 %v997, %v1027
        %v1034 = vmul.f32 %v998, %v1027
        %v1035 = vmul.f32 %v999, %v1027
        %v1036 = vmul.f32 %v1000, %v1027
        %v1037 = vmul.f32 %v1001, %v1027
        %v1038 = vmul.f32 %v1002, %v1027
        %v1039 = vmul.f32 %v1003, %v1027
        %v1040 = vmul.f32 %v1004, %v1027
        %v1041 = vmul.f32 %v1005, %v1027
        %v1042 = vmul.f32 %v1006, %v1027
        %v1043 = vmul.f32 %v1007, %v1027
        %v1044 = vmul.f32 %v1008, %v1027
        %v1045 = vmul.f32 %v1009, %v1027
        %v1046 = vmul.f32 %v1010, %v1027
        %v1047 = vmul.f32 %v1011, %v1027
        %v1048 = vmul.f32 %v1012, %v1027
        %v1049 = vmul.f32 %v1013, %v1027
        %v1050 = vmul.f32 %v1014, %v1027
        %v1051 = vmul.f32 %v1015, %v1027
        %v1052 = vmul.f32 %v1016, %v1027
        %v1053 = vmul.f32 %v1017, %v1027
        %v1054 = vmul.f32 %v1018, %v1027
        %v1055 = vmul.f32 %v1019, %v1027
        %v1056 = vmul.f32 %v1020, %v1027
        %v1057 = vmul.f32 %v1021, %v1027
        %v1058 = vmul.f32 %v1022, %v1027
        %v1059 = vmul.f32 %v1023, %v1027
        %v1060 = vadd.f32 %v959, %v1028
        %v1061 = vadd.f32 %v960, %v1029
        %v1062 = vadd.f32 %v961, %v1030
        %v1063 = vadd.f32 %v962, %v1031
        %v1064 = vadd.f32 %v963, %v1032
        %v1065 = vadd.f32 %v964, %v1033
        %v1066 = vadd.f32 %v965, %v1034
        %v1067 = vadd.f32 %v966, %v1035
        %v1068 = vadd.f32 %v967, %v1036
        %v1069 = vadd.f32 %v968, %v1037
        %v1070 = vadd.f32 %v969, %v1038
        %v1071 = vadd.f32 %v970, %v1039
        %v1072 = vadd.f32 %v971, %v1040
        %v1073 = vadd.f32 %v972, %v1041
        %v1074 = vadd.f32 %v973, %v1042
        %v1075 = vadd.f32 %v974, %v1043
        %v1076 = vadd.f32 %v975, %v1044
        %v1077 = vadd.f32 %v976, %v1045
        %v1078 = vadd.f32 %v977, %v1046
        %v1079 = vadd.f32 %v978, %v1047
        %v1080 = vadd.f32 %v979, %v1048
        %v1081 = vadd.f32 %v980, %v1049
        %v1082 = vadd.f32 %v981, %v1050
        %v1083 = vadd.f32 %v982, %v1051
        %v1084 = vadd.f32 %v983, %v1052
        %v1085 = vadd.f32 %v984, %v1053
        %v1086 = vadd.f32 %v985, %v1054
        %v1087 = vadd.f32 %v986, %v1055
        %v1088 = vadd.f32 %v987, %v1056
        %v1089 = vadd.f32 %v988, %v1057
        %v1090 = vadd.f32 %v989, %v1058
        %v1091 = vadd.f32 %v990, %v1059
        %v1092 = vld [vmem:[%s991 + $0x1] sm:$0xff]
        %v1093 = vld [vmem:[%s991 + $0x9] sm:$0xff]
        %v1094 = vld [vmem:[%s991 + $0x19] sm:$0xff]
        %v1095 = vld [vmem:[%s991 + $0x21] sm:$0xff]
        %v1096 = vld [vmem:[%s991 + $0x31] sm:$0xff]
        %v1097 = vld [vmem:[%s991 + $0x39] sm:$0xff]
        %v1098 = vld [vmem:[%s991 + $0x49] sm:$0xff]
        %v1099 = vld [vmem:[%s991 + $0x51] sm:$0xff]
        %v1100 = vld [vmem:[%s991 + $0x61] sm:$0xff]
        %v1101 = vld [vmem:[%s991 + $0x69] sm:$0xff]
        %v1102 = vld [vmem:[%s991 + $0x79] sm:$0xff]
        %v1103 = vld [vmem:[%s991 + $0x81] sm:$0xff]
        %v1104 = vld [vmem:[%s991 + $0x91] sm:$0xff]
        %v1105 = vld [vmem:[%s991 + $0x99] sm:$0xff]
        %v1106 = vld [vmem:[%s991 + $0xa9] sm:$0xff]
        %v1107 = vld [vmem:[%s991 + $0xb1] sm:$0xff]
        %v1108 = vld [vmem:[%s991 + $0xc1] sm:$0xff]
        %v1109 = vld [vmem:[%s991 + $0xc9] sm:$0xff]
        %v1110 = vld [vmem:[%s991 + $0xd9] sm:$0xff]
        %v1111 = vld [vmem:[%s991 + $0xe1] sm:$0xff]
        %v1112 = vld [vmem:[%s991 + $0xf1] sm:$0xff]
        %v1113 = vld [vmem:[%s991 + $0xf9] sm:$0xff]
        %v1114 = vld [vmem:[%s991 + $0x109] sm:$0xff]
        %v1115 = vld [vmem:[%s991 + $0x111] sm:$0xff]
        %v1116 = vld [vmem:[%s991 + $0x121] sm:$0xff]
        %v1117 = vld [vmem:[%s991 + $0x129] sm:$0xff]
        %v1118 = vld [vmem:[%s991 + $0x139] sm:$0xff]
        %v1119 = vld [vmem:[%s991 + $0x141] sm:$0xff]
        %v1120 = vld [vmem:[%s991 + $0x151] sm:$0xff]
        %v1121 = vld [vmem:[%s991 + $0x159] sm:$0xff]
        %v1122 = vld [vmem:[%s991 + $0x169] sm:$0xff]
        %v1123 = vld [vmem:[%s991 + $0x171] sm:$0xff]
        %v1124 = vlaneseq
        %v1125 = vshrl.u32 %v1124, 7
        %v1126 = vsub.s32 1, %v1125
        %v1127 = vrot.slane %v390, %v1126
        %v1128 = vmul.f32 %v1092, %v1127
        %v1129 = vmul.f32 %v1093, %v1127
        %v1130 = vmul.f32 %v1094, %v1127
        %v1131 = vmul.f32 %v1095, %v1127
        %v1132 = vmul.f32 %v1096, %v1127
        %v1133 = vmul.f32 %v1097, %v1127
        %v1134 = vmul.f32 %v1098, %v1127
        %v1135 = vmul.f32 %v1099, %v1127
        %v1136 = vmul.f32 %v1100, %v1127
        %v1137 = vmul.f32 %v1101, %v1127
        %v1138 = vmul.f32 %v1102, %v1127
        %v1139 = vmul.f32 %v1103, %v1127
        %v1140 = vmul.f32 %v1104, %v1127
        %v1141 = vmul.f32 %v1105, %v1127
        %v1142 = vmul.f32 %v1106, %v1127
        %v1143 = vmul.f32 %v1107, %v1127
        %v1144 = vmul.f32 %v1108, %v1127
        %v1145 = vmul.f32 %v1109, %v1127
        %v1146 = vmul.f32 %v1110, %v1127
        %v1147 = vmul.f32 %v1111, %v1127
        %v1148 = vmul.f32 %v1112, %v1127
        %v1149 = vmul.f32 %v1113, %v1127
        %v1150 = vmul.f32 %v1114, %v1127
        %v1151 = vmul.f32 %v1115, %v1127
        %v1152 = vmul.f32 %v1116, %v1127
        %v1153 = vmul.f32 %v1117, %v1127
        %v1154 = vmul.f32 %v1118, %v1127
        %v1155 = vmul.f32 %v1119, %v1127
        %v1156 = vmul.f32 %v1120, %v1127
        %v1157 = vmul.f32 %v1121, %v1127
        %v1158 = vmul.f32 %v1122, %v1127
        %v1159 = vmul.f32 %v1123, %v1127
        %v1160 = vadd.f32 %v1060, %v1128
        %v1161 = vadd.f32 %v1061, %v1129
        %v1162 = vadd.f32 %v1062, %v1130
        %v1163 = vadd.f32 %v1063, %v1131
        %v1164 = vadd.f32 %v1064, %v1132
        %v1165 = vadd.f32 %v1065, %v1133
        %v1166 = vadd.f32 %v1066, %v1134
        %v1167 = vadd.f32 %v1067, %v1135
        %v1168 = vadd.f32 %v1068, %v1136
        %v1169 = vadd.f32 %v1069, %v1137
        %v1170 = vadd.f32 %v1070, %v1138
        %v1171 = vadd.f32 %v1071, %v1139
        %v1172 = vadd.f32 %v1072, %v1140
        %v1173 = vadd.f32 %v1073, %v1141
        %v1174 = vadd.f32 %v1074, %v1142
        %v1175 = vadd.f32 %v1075, %v1143
        %v1176 = vadd.f32 %v1076, %v1144
        %v1177 = vadd.f32 %v1077, %v1145
        %v1178 = vadd.f32 %v1078, %v1146
        %v1179 = vadd.f32 %v1079, %v1147
        %v1180 = vadd.f32 %v1080, %v1148
        %v1181 = vadd.f32 %v1081, %v1149
        %v1182 = vadd.f32 %v1082, %v1150
        %v1183 = vadd.f32 %v1083, %v1151
        %v1184 = vadd.f32 %v1084, %v1152
        %v1185 = vadd.f32 %v1085, %v1153
        %v1186 = vadd.f32 %v1086, %v1154
        %v1187 = vadd.f32 %v1087, %v1155
        %v1188 = vadd.f32 %v1088, %v1156
        %v1189 = vadd.f32 %v1089, %v1157
        %v1190 = vadd.f32 %v1090, %v1158
        %v1191 = vadd.f32 %v1091, %v1159
        %v1192 = vld [vmem:[%s991 + $0x2] sm:$0xff]
        %v1193 = vld [vmem:[%s991 + $0xa] sm:$0xff]
        %v1194 = vld [vmem:[%s991 + $0x1a] sm:$0xff]
        %v1195 = vld [vmem:[%s991 + $0x22] sm:$0xff]
        %v1196 = vld [vmem:[%s991 + $0x32] sm:$0xff]
        %v1197 = vld [vmem:[%s991 + $0x3a] sm:$0xff]
        %v1198 = vld [vmem:[%s991 + $0x4a] sm:$0xff]
        %v1199 = vld [vmem:[%s991 + $0x52] sm:$0xff]
        %v1200 = vld [vmem:[%s991 + $0x62] sm:$0xff]
        %v1201 = vld [vmem:[%s991 + $0x6a] sm:$0xff]
        %v1202 = vld [vmem:[%s991 + $0x7a] sm:$0xff]
        %v1203 = vld [vmem:[%s991 + $0x82] sm:$0xff]
        %v1204 = vld [vmem:[%s991 + $0x92] sm:$0xff]
        %v1205 = vld [vmem:[%s991 + $0x9a] sm:$0xff]
        %v1206 = vld [vmem:[%s991 + $0xaa] sm:$0xff]
        %v1207 = vld [vmem:[%s991 + $0xb2] sm:$0xff]
        %v1208 = vld [vmem:[%s991 + $0xc2] sm:$0xff]
        %v1209 = vld [vmem:[%s991 + $0xca] sm:$0xff]
        %v1210 = vld [vmem:[%s991 + $0xda] sm:$0xff]
        %v1211 = vld [vmem:[%s991 + $0xe2] sm:$0xff]
        %v1212 = vld [vmem:[%s991 + $0xf2] sm:$0xff]
        %v1213 = vld [vmem:[%s991 + $0xfa] sm:$0xff]
        %v1214 = vld [vmem:[%s991 + $0x10a] sm:$0xff]
        %v1215 = vld [vmem:[%s991 + $0x112] sm:$0xff]
        %v1216 = vld [vmem:[%s991 + $0x122] sm:$0xff]
        %v1217 = vld [vmem:[%s991 + $0x12a] sm:$0xff]
        %v1218 = vld [vmem:[%s991 + $0x13a] sm:$0xff]
        %v1219 = vld [vmem:[%s991 + $0x142] sm:$0xff]
        %v1220 = vld [vmem:[%s991 + $0x152] sm:$0xff]
        %v1221 = vld [vmem:[%s991 + $0x15a] sm:$0xff]
        %v1222 = vld [vmem:[%s991 + $0x16a] sm:$0xff]
        %v1223 = vld [vmem:[%s991 + $0x172] sm:$0xff]
        %v1224 = vlaneseq
        %v1225 = vshrl.u32 %v1224, 7
        %v1226 = vsub.s32 2, %v1225
        %v1227 = vrot.slane %v390, %v1226
        %v1228 = vmul.f32 %v1192, %v1227
        %v1229 = vmul.f32 %v1193, %v1227
        %v1230 = vmul.f32 %v1194, %v1227
        %v1231 = vmul.f32 %v1195, %v1227
        %v1232 = vmul.f32 %v1196, %v1227
        %v1233 = vmul.f32 %v1197, %v1227
        %v1234 = vmul.f32 %v1198, %v1227
        %v1235 = vmul.f32 %v1199, %v1227
        %v1236 = vmul.f32 %v1200, %v1227
        %v1237 = vmul.f32 %v1201, %v1227
        %v1238 = vmul.f32 %v1202, %v1227
        %v1239 = vmul.f32 %v1203, %v1227
        %v1240 = vmul.f32 %v1204, %v1227
        %v1241 = vmul.f32 %v1205, %v1227
        %v1242 = vmul.f32 %v1206, %v1227
        %v1243 = vmul.f32 %v1207, %v1227
        %v1244 = vmul.f32 %v1208, %v1227
        %v1245 = vmul.f32 %v1209, %v1227
        %v1246 = vmul.f32 %v1210, %v1227
        %v1247 = vmul.f32 %v1211, %v1227
        %v1248 = vmul.f32 %v1212, %v1227
        %v1249 = vmul.f32 %v1213, %v1227
        %v1250 = vmul.f32 %v1214, %v1227
        %v1251 = vmul.f32 %v1215, %v1227
        %v1252 = vmul.f32 %v1216, %v1227
        %v1253 = vmul.f32 %v1217, %v1227
        %v1254 = vmul.f32 %v1218, %v1227
        %v1255 = vmul.f32 %v1219, %v1227
        %v1256 = vmul.f32 %v1220, %v1227
        %v1257 = vmul.f32 %v1221, %v1227
        %v1258 = vmul.f32 %v1222, %v1227
        %v1259 = vmul.f32 %v1223, %v1227
        %v1260 = vadd.f32 %v1160, %v1228
        %v1261 = vadd.f32 %v1161, %v1229
        %v1262 = vadd.f32 %v1162, %v1230
        %v1263 = vadd.f32 %v1163, %v1231
        %v1264 = vadd.f32 %v1164, %v1232
        %v1265 = vadd.f32 %v1165, %v1233
        %v1266 = vadd.f32 %v1166, %v1234
        %v1267 = vadd.f32 %v1167, %v1235
        %v1268 = vadd.f32 %v1168, %v1236
        %v1269 = vadd.f32 %v1169, %v1237
        %v1270 = vadd.f32 %v1170, %v1238
        %v1271 = vadd.f32 %v1171, %v1239
        %v1272 = vadd.f32 %v1172, %v1240
        %v1273 = vadd.f32 %v1173, %v1241
        %v1274 = vadd.f32 %v1174, %v1242
        %v1275 = vadd.f32 %v1175, %v1243
        %v1276 = vadd.f32 %v1176, %v1244
        %v1277 = vadd.f32 %v1177, %v1245
        %v1278 = vadd.f32 %v1178, %v1246
        %v1279 = vadd.f32 %v1179, %v1247
        %v1280 = vadd.f32 %v1180, %v1248
        %v1281 = vadd.f32 %v1181, %v1249
        %v1282 = vadd.f32 %v1182, %v1250
        %v1283 = vadd.f32 %v1183, %v1251
        %v1284 = vadd.f32 %v1184, %v1252
        %v1285 = vadd.f32 %v1185, %v1253
        %v1286 = vadd.f32 %v1186, %v1254
        %v1287 = vadd.f32 %v1187, %v1255
        %v1288 = vadd.f32 %v1188, %v1256
        %v1289 = vadd.f32 %v1189, %v1257
        %v1290 = vadd.f32 %v1190, %v1258
        %v1291 = vadd.f32 %v1191, %v1259
        %v1292 = vld [vmem:[%s2] sm:$0xf]
        %v1293 = vld [vmem:[%s3] sm:$0x1]
        %v1295 = vlaneseq
        %v1296 = vshrl.u32 %v1295, 7
        %v1297 = vsub.s32 0, %v1296
        %v1298 = vrot.slane %v1293, %v1297
        %v1301 = vsel %vm277, %v1260, 0
        %v1304 = vsel %vm277, %v1261, 0
        %v1307 = vsel %vm277, %v1262, 0
        %v1310 = vsel %vm277, %v1263, 0
        %v1313 = vsel %vm277, %v1264, 0
        %v1316 = vsel %vm277, %v1265, 0
        %v1319 = vsel %vm277, %v1266, 0
        %v1322 = vsel %vm277, %v1267, 0
        %v1325 = vsel %vm277, %v1268, 0
        %v1328 = vsel %vm277, %v1269, 0
        %v1331 = vsel %vm277, %v1270, 0
        %v1334 = vsel %vm277, %v1271, 0
        %v1337 = vsel %vm277, %v1272, 0
        %v1340 = vsel %vm277, %v1273, 0
        %v1343 = vsel %vm277, %v1274, 0
        %v1346 = vsel %vm277, %v1275, 0
        %v1349 = vsel %vm277, %v1276, 0
        %v1352 = vsel %vm277, %v1277, 0
        %v1355 = vsel %vm277, %v1278, 0
        %v1358 = vsel %vm277, %v1279, 0
        %v1361 = vsel %vm277, %v1280, 0
        %v1364 = vsel %vm277, %v1281, 0
        %v1367 = vsel %vm277, %v1282, 0
        %v1370 = vsel %vm277, %v1283, 0
        %v1373 = vsel %vm277, %v1284, 0
        %v1376 = vsel %vm277, %v1285, 0
        %v1379 = vsel %vm277, %v1286, 0
        %v1382 = vsel %vm277, %v1287, 0
        %v1385 = vsel %vm277, %v1288, 0
        %v1388 = vsel %vm277, %v1289, 0
        %v1391 = vsel %vm277, %v1290, 0
        %v1394 = vsel %vm277, %v1291, 0
        %vm1396 = vcmask 1043456
        %v1398 = vsel %vm1396, %v1292, 0
        %1400 = vmatprep.subr.mxu0 0.0
        %1401 = vmatpush1.msra.mxu0 %v1398
        %1402 = vmatprep.subr.mxu0 0.0
        %1403 = vmatpush1.msra.mxu0 0.0
        %1404 = vmatprep.subr.mxu0 0.0
        %1405 = vmatpush1.msra.mxu0 0.0
        %1406 = vmatprep.subr.mxu0 0.0
        %1407 = vmatpush1.msra.mxu0 0.0
        %1408 = vmatprep.subr.mxu0 0.0
        %1409 = vmatpush1.msra.mxu0 0.0
        %1410 = vmatprep.subr.mxu0 0.0
        %1411 = vmatpush1.msra.mxu0 0.0
        %1412 = vmatprep.subr.mxu0 0.0
        %1413 = vmatpush1.msra.mxu0 0.0
        %1414 = vmatprep.subr.mxu0 0.0
        %1415 = vmatpush1.msra.mxu0 0.0
        %1416 = vmatprep.subr.mxu0 0.0
        %1417 = vmatpush1.msra.mxu0 0.0
        %1418 = vmatprep.subr.mxu0 0.0
        %1419 = vmatpush1.msra.mxu0 0.0
        %1420 = vmatprep.subr.mxu0 0.0
        %1421 = vmatpush1.msra.mxu0 0.0
        %1422 = vmatprep.subr.mxu0 0.0
        %1423 = vmatpush1.msra.mxu0 0.0
        %1424 = vmatprep.subr.mxu0 0.0
        %1425 = vmatpush1.msra.mxu0 0.0
        %1426 = vmatprep.subr.mxu0 0.0
        %1427 = vmatpush1.msra.mxu0 0.0
        %1428 = vmatprep.subr.mxu0 0.0
        %1429 = vmatpush1.msra.mxu0 0.0
        %1430 = vmatprep.subr.mxu0 0.0
        %1431 = vmatpush1.msra.mxu0 0.0
        %1432 = vmatprep.subr.mxu0 0.0
        %1433 = vmatpush1.msra.mxu0 0.0
        %1434 = vmatprep.subr.mxu0 0.0
        %1435 = vmatpush1.msra.mxu0 0.0
        %1436 = vmatprep.subr.mxu0 0.0
        %1437 = vmatpush1.msra.mxu0 0.0
        %1438 = vmatprep.subr.mxu0 0.0
        %1439 = vmatpush1.msra.mxu0 0.0
        %1440 = vmatprep.subr.mxu0 0.0
        %1441 = vmatpush1.msra.mxu0 0.0
        %1442 = vmatprep.subr.mxu0 0.0
        %1443 = vmatpush1.msra.mxu0 0.0
        %1444 = vmatprep.subr.mxu0 0.0
        %1445 = vmatpush1.msra.mxu0 0.0
        %1446 = vmatprep.subr.mxu0 0.0
        %1447 = vmatpush1.msra.mxu0 0.0
        %1448 = vmatprep.subr.mxu0 0.0
        %1449 = vmatpush1.msra.mxu0 0.0
        %1450 = vmatprep.subr.mxu0 0.0
        %1451 = vmatpush1.msra.mxu0 0.0
        %1452 = vmatprep.subr.mxu0 0.0
        %1453 = vmatpush1.msra.mxu0 0.0
        %1454 = vmatprep.subr.mxu0 0.0
        %1455 = vmatpush1.msra.mxu0 0.0
        %1456 = vmatprep.subr.mxu0 0.0
        %1457 = vmatpush1.msra.mxu0 0.0
        %1458 = vmatprep.subr.mxu0 0.0
        %1459 = vmatpush1.msra.mxu0 0.0
        %1460 = vmatprep.subr.mxu0 0.0
        %1461 = vmatpush1.msra.mxu0 0.0
        %1462 = vmatprep.subr.mxu0 0.0
        %1463 = vmatpush1.msra.mxu0 0.0
        %1464 = vmatprep.mubr.f32.mxu0 0.0
        %1465 = vmatmul.mubr.f32.gmra.mrb[0].mxu0 %v1301
        %v1466 = vpop.f32.mrb[0].mxu0
        %v1467 = vadd.f32 %v1298, %v1466
        %v1468 = vpop.f32.mrb[0].mxu0
        %1469 = vmatprep.mubr.f32.mxu0 0.0
        %1470 = vmatmul.mubr.f32.gmra.mrb[0].mxu0 %v1304
        %v1471 = vpop.f32.mrb[0].mxu0
        %v1472 = vadd.f32 %v1298, %v1471
        %v1473 = vpop.f32.mrb[0].mxu0
        %1474 = vmatprep.mubr.f32.mxu0 0.0
        %1475 = vmatmul.mubr.f32.gmra.mrb[0].mxu0 %v1307
        %v1476 = vpop.f32.mrb[0].mxu0
        %v1477 = vadd.f32 %v1298, %v1476
        %v1478 = vpop.f32.mrb[0].mxu0
        %1479 = vmatprep.mubr.f32.mxu0 0.0
        %1480 = vmatmul.mubr.f32.gmra.mrb[0].mxu0 %v1310
        %v1481 = vpop.f32.mrb[0].mxu0
        %v1482 = vadd.f32 %v1298, %v1481
        %v1483 = vpop.f32.mrb[0].mxu0
        %1484 = vmatprep.mubr.f32.mxu0 0.0
        %1485 = vmatmul.mubr.f32.gmra.mrb[0].mxu0 %v1313
        %v1486 = vpop.f32.mrb[0].mxu0
        %v1487 = vadd.f32 %v1298, %v1486
        %v1488 = vpop.f32.mrb[0].mxu0
        %1489 = vmatprep.mubr.f32.mxu0 0.0
        %1490 = vmatmul.mubr.f32.gmra.mrb[0].mxu0 %v1316
        %v1491 = vpop.f32.mrb[0].mxu0
        %v1492 = vadd.f32 %v1298, %v1491
        %v1493 = vpop.f32.mrb[0].mxu0
        %1494 = vmatprep.mubr.f32.mxu0 0.0
        %1495 = vmatmul.mubr.f32.gmra.mrb[0].mxu0 %v1319
        %v1496 = vpop.f32.mrb[0].mxu0
        %v1497 = vadd.f32 %v1298, %v1496
        %v1498 = vpop.f32.mrb[0].mxu0
        %1499 = vmatprep.mubr.f32.mxu0 0.0
        %1500 = vmatmul.mubr.f32.gmra.mrb[0].mxu0 %v1322
        %v1501 = vpop.f32.mrb[0].mxu0
        %v1502 = vadd.f32 %v1298, %v1501
        %v1503 = vpop.f32.mrb[0].mxu0
        %1504 = vmatprep.mubr.f32.mxu0 0.0
        %1505 = vmatmul.mubr.f32.gmra.mrb[0].mxu0 %v1325
        %v1506 = vpop.f32.mrb[0].mxu0
        %v1507 = vadd.f32 %v1298, %v1506
        %v1508 = vpop.f32.mrb[0].mxu0
        %1509 = vmatprep.mubr.f32.mxu0 0.0
        %1510 = vmatmul.mubr.f32.gmra.mrb[0].mxu0 %v1328
        %v1511 = vpop.f32.mrb[0].mxu0
        %v1512 = vadd.f32 %v1298, %v1511
        %v1513 = vpop.f32.mrb[0].mxu0
        %1514 = vmatprep.mubr.f32.mxu0 0.0
        %1515 = vmatmul.mubr.f32.gmra.mrb[0].mxu0 %v1331
        %v1516 = vpop.f32.mrb[0].mxu0
        %v1517 = vadd.f32 %v1298, %v1516
        %v1518 = vpop.f32.mrb[0].mxu0
        %1519 = vmatprep.mubr.f32.mxu0 0.0
        %1520 = vmatmul.mubr.f32.gmra.mrb[0].mxu0 %v1334
        %v1521 = vpop.f32.mrb[0].mxu0
        %v1522 = vadd.f32 %v1298, %v1521
        %v1523 = vpop.f32.mrb[0].mxu0
        %1524 = vmatprep.mubr.f32.mxu0 0.0
        %1525 = vmatmul.mubr.f32.gmra.mrb[0].mxu0 %v1337
        %v1526 = vpop.f32.mrb[0].mxu0
        %v1527 = vadd.f32 %v1298, %v1526
        %v1528 = vpop.f32.mrb[0].mxu0
        %1529 = vmatprep.mubr.f32.mxu0 0.0
        %1530 = vmatmul.mubr.f32.gmra.mrb[0].mxu0 %v1340
        %v1531 = vpop.f32.mrb[0].mxu0
        %v1532 = vadd.f32 %v1298, %v1531
        %v1533 = vpop.f32.mrb[0].mxu0
        %1534 = vmatprep.mubr.f32.mxu0 0.0
        %1535 = vmatmul.mubr.f32.gmra.mrb[0].mxu0 %v1343
        %v1536 = vpop.f32.mrb[0].mxu0
        %v1537 = vadd.f32 %v1298, %v1536
        %v1538 = vpop.f32.mrb[0].mxu0
        %1539 = vmatprep.mubr.f32.mxu0 0.0
        %1540 = vmatmul.mubr.f32.gmra.mrb[0].mxu0 %v1346
        %v1541 = vpop.f32.mrb[0].mxu0
        %v1542 = vadd.f32 %v1298, %v1541
        %v1543 = vpop.f32.mrb[0].mxu0
        %1544 = vmatprep.mubr.f32.mxu0 0.0
        %1545 = vmatmul.mubr.f32.gmra.mrb[0].mxu0 %v1349
        %v1546 = vpop.f32.mrb[0].mxu0
        %v1547 = vadd.f32 %v1298, %v1546
        %v1548 = vpop.f32.mrb[0].mxu0
        %1549 = vmatprep.mubr.f32.mxu0 0.0
        %1550 = vmatmul.mubr.f32.gmra.mrb[0].mxu0 %v1352
        %v1551 = vpop.f32.mrb[0].mxu0
        %v1552 = vadd.f32 %v1298, %v1551
        %v1553 = vpop.f32.mrb[0].mxu0
        %1554 = vmatprep.mubr.f32.mxu0 0.0
        %1555 = vmatmul.mubr.f32.gmra.mrb[0].mxu0 %v1355
        %v1556 = vpop.f32.mrb[0].mxu0
        %v1557 = vadd.f32 %v1298, %v1556
        %v1558 = vpop.f32.mrb[0].mxu0
        %1559 = vmatprep.mubr.f32.mxu0 0.0
        %1560 = vmatmul.mubr.f32.gmra.mrb[0].mxu0 %v1358
        %v1561 = vpop.f32.mrb[0].mxu0
        %v1562 = vadd.f32 %v1298, %v1561
        %v1563 = vpop.f32.mrb[0].mxu0
        %1564 = vmatprep.mubr.f32.mxu0 0.0
        %1565 = vmatmul.mubr.f32.gmra.mrb[0].mxu0 %v1361
        %v1566 = vpop.f32.mrb[0].mxu0
        %v1567 = vadd.f32 %v1298, %v1566
        %v1568 = vpop.f32.mrb[0].mxu0
        %1569 = vmatprep.mubr.f32.mxu0 0.0
        %1570 = vmatmul.mubr.f32.gmra.mrb[0].mxu0 %v1364
        %v1571 = vpop.f32.mrb[0].mxu0
        %v1572 = vadd.f32 %v1298, %v1571
        %v1573 = vpop.f32.mrb[0].mxu0
        %1574 = vmatprep.mubr.f32.mxu0 0.0
        %1575 = vmatmul.mubr.f32.gmra.mrb[0].mxu0 %v1367
        %v1576 = vpop.f32.mrb[0].mxu0
        %v1577 = vadd.f32 %v1298, %v1576
        %v1578 = vpop.f32.mrb[0].mxu0
        %1579 = vmatprep.mubr.f32.mxu0 0.0
        %1580 = vmatmul.mubr.f32.gmra.mrb[0].mxu0 %v1370
        %v1581 = vpop.f32.mrb[0].mxu0
        %v1582 = vadd.f32 %v1298, %v1581
        %v1583 = vpop.f32.mrb[0].mxu0
        %1584 = vmatprep.mubr.f32.mxu0 0.0
        %1585 = vmatmul.mubr.f32.gmra.mrb[0].mxu0 %v1373
        %v1586 = vpop.f32.mrb[0].mxu0
        %v1587 = vadd.f32 %v1298, %v1586
        %v1588 = vpop.f32.mrb[0].mxu0
        %1589 = vmatprep.mubr.f32.mxu0 0.0
        %1590 = vmatmul.mubr.f32.gmra.mrb[0].mxu0 %v1376
        %v1591 = vpop.f32.mrb[0].mxu0
        %v1592 = vadd.f32 %v1298, %v1591
        %v1593 = vpop.f32.mrb[0].mxu0
        %1594 = vmatprep.mubr.f32.mxu0 0.0
        %1595 = vmatmul.mubr.f32.gmra.mrb[0].mxu0 %v1379
        %v1596 = vpop.f32.mrb[0].mxu0
        %v1597 = vadd.f32 %v1298, %v1596
        %v1598 = vpop.f32.mrb[0].mxu0
        %1599 = vmatprep.mubr.f32.mxu0 0.0
        %1600 = vmatmul.mubr.f32.gmra.mrb[0].mxu0 %v1382
        %v1601 = vpop.f32.mrb[0].mxu0
        %v1602 = vadd.f32 %v1298, %v1601
        %v1603 = vpop.f32.mrb[0].mxu0
        %1604 = vmatprep.mubr.f32.mxu0 0.0
        %1605 = vmatmul.mubr.f32.gmra.mrb[0].mxu0 %v1385
        %v1606 = vpop.f32.mrb[0].mxu0
        %v1607 = vadd.f32 %v1298, %v1606
        %v1608 = vpop.f32.mrb[0].mxu0
        %1609 = vmatprep.mubr.f32.mxu0 0.0
        %1610 = vmatmul.mubr.f32.gmra.mrb[0].mxu0 %v1388
        %v1611 = vpop.f32.mrb[0].mxu0
        %v1612 = vadd.f32 %v1298, %v1611
        %v1613 = vpop.f32.mrb[0].mxu0
        %1614 = vmatprep.mubr.f32.mxu0 0.0
        %1615 = vmatmul.mubr.f32.gmra.mrb[0].mxu0 %v1391
        %v1616 = vpop.f32.mrb[0].mxu0
        %v1617 = vadd.f32 %v1298, %v1616
        %v1618 = vpop.f32.mrb[0].mxu0
        %1619 = vmatprep.mubr.f32.mxu0 0.0
        %1620 = vmatmul.mubr.f32.gmra.mrb[0].mxu0 %v1394
        %v1621 = vpop.f32.mrb[0].mxu0
        %v1622 = vadd.f32 %v1298, %v1621
        %v1623 = vpop.f32.mrb[0].mxu0
        %1624 = vdwg.mxu0
        %v1625 = vmax.f32 %v1467, 0.0
        %v1626 = vmax.f32 %v1472, 0.0
        %v1627 = vmax.f32 %v1477, 0.0
        %v1628 = vmax.f32 %v1482, 0.0
        %v1629 = vmax.f32 %v1487, 0.0
        %v1630 = vmax.f32 %v1492, 0.0
        %v1631 = vmax.f32 %v1497, 0.0
        %v1632 = vmax.f32 %v1502, 0.0
        %v1633 = vmax.f32 %v1507, 0.0
        %v1634 = vmax.f32 %v1512, 0.0
        %v1635 = vmax.f32 %v1517, 0.0
        %v1636 = vmax.f32 %v1522, 0.0
        %v1637 = vmax.f32 %v1527, 0.0
        %v1638 = vmax.f32 %v1532, 0.0
        %v1639 = vmax.f32 %v1537, 0.0
        %v1640 = vmax.f32 %v1542, 0.0
        %v1641 = vmax.f32 %v1547, 0.0
        %v1642 = vmax.f32 %v1552, 0.0
        %v1643 = vmax.f32 %v1557, 0.0
        %v1644 = vmax.f32 %v1562, 0.0
        %v1645 = vmax.f32 %v1567, 0.0
        %v1646 = vmax.f32 %v1572, 0.0
        %v1647 = vmax.f32 %v1577, 0.0
        %v1648 = vmax.f32 %v1582, 0.0
        %v1649 = vmax.f32 %v1587, 0.0
        %v1650 = vmax.f32 %v1592, 0.0
        %v1651 = vmax.f32 %v1597, 0.0
        %v1652 = vmax.f32 %v1602, 0.0
        %v1653 = vmax.f32 %v1607, 0.0
        %v1654 = vmax.f32 %v1612, 0.0
        %v1655 = vmax.f32 %v1617, 0.0
        %v1656 = vmax.f32 %v1622, 0.0
        %vm1657 = vcmask 64512
        %1658 = vst.msk [vmem:[#allocation3] sm:$0xff] %vm1657, 0.0
        %1659 = vst.msk [vmem:[#allocation3 + $0x8] sm:$0xff] %vm1657, 0.0
        %vm1660 = vcmask 58368
        %1661 = vst.msk [vmem:[#allocation3 + $0x10] sm:$0x3] %vm1660, 0.0
        %s1662 = scalar_lea.vmem [#allocation3], 408
        %1663 = vst.msk [vmem:[%s1662] sm:$0xff] %vm1657, 0.0
        %1664 = vst.msk [vmem:[%s1662 + $0x8] sm:$0xff] %vm1657, 0.0
        %1665 = vst.msk [vmem:[%s1662 + $0x10] sm:$0x3] %vm1660, 0.0
        %vm1666 = vcmask 57344
        %1667 = vst.msk [vmem:[#allocation3] sm:$0x1] %vm1666, 0.0
        %1668 = vst.msk [vmem:[#allocation3 + $0x18] sm:$0x1] %vm1666, 0.0
        %1669 = vst.msk [vmem:[#allocation3 + $0x30] sm:$0x1] %vm1666, 0.0
        %1670 = vst.msk [vmem:[#allocation3 + $0x48] sm:$0x1] %vm1666, 0.0
        %1671 = vst.msk [vmem:[#allocation3 + $0x60] sm:$0x1] %vm1666, 0.0
        %1672 = vst.msk [vmem:[#allocation3 + $0x78] sm:$0x1] %vm1666, 0.0
        %1673 = vst.msk [vmem:[#allocation3 + $0x90] sm:$0x1] %vm1666, 0.0
        %1674 = vst.msk [vmem:[#allocation3 + $0xa8] sm:$0x1] %vm1666, 0.0
        %1675 = vst.msk [vmem:[#allocation3 + $0xc0] sm:$0x1] %vm1666, 0.0
        %1676 = vst.msk [vmem:[#allocation3 + $0xd8] sm:$0x1] %vm1666, 0.0
        %1677 = vst.msk [vmem:[#allocation3 + $0xf0] sm:$0x1] %vm1666, 0.0
        %1678 = vst.msk [vmem:[#allocation3 + $0x108] sm:$0x1] %vm1666, 0.0
        %1679 = vst.msk [vmem:[#allocation3 + $0x120] sm:$0x1] %vm1666, 0.0
        %1680 = vst.msk [vmem:[#allocation3 + $0x138] sm:$0x1] %vm1666, 0.0
        %1681 = vst.msk [vmem:[#allocation3 + $0x150] sm:$0x1] %vm1666, 0.0
        %1682 = vst.msk [vmem:[#allocation3 + $0x168] sm:$0x1] %vm1666, 0.0
        %1683 = vst.msk [vmem:[#allocation3 + $0x180] sm:$0x1] %vm1666, 0.0
        %1684 = vst.msk [vmem:[#allocation3 + $0x198] sm:$0x1] %vm1666, 0.0
        %1685 = vst.msk [vmem:[#allocation3 + $0x11] sm:$0x1] %vm1666, 0.0
        %1686 = vst.msk [vmem:[#allocation3 + $0x29] sm:$0x1] %vm1666, 0.0
        %1687 = vst.msk [vmem:[#allocation3 + $0x41] sm:$0x1] %vm1666, 0.0
        %1688 = vst.msk [vmem:[#allocation3 + $0x59] sm:$0x1] %vm1666, 0.0
        %1689 = vst.msk [vmem:[#allocation3 + $0x71] sm:$0x1] %vm1666, 0.0
        %1690 = vst.msk [vmem:[#allocation3 + $0x89] sm:$0x1] %vm1666, 0.0
        %1691 = vst.msk [vmem:[#allocation3 + $0xa1] sm:$0x1] %vm1666, 0.0
        %1692 = vst.msk [vmem:[#allocation3 + $0xb9] sm:$0x1] %vm1666, 0.0
        %1693 = vst.msk [vmem:[#allocation3 + $0xd1] sm:$0x1] %vm1666, 0.0
        %1694 = vst.msk [vmem:[#allocation3 + $0xe9] sm:$0x1] %vm1666, 0.0
        %1695 = vst.msk [vmem:[#allocation3 + $0x101] sm:$0x1] %vm1666, 0.0
        %1696 = vst.msk [vmem:[#allocation3 + $0x119] sm:$0x1] %vm1666, 0.0
        %1697 = vst.msk [vmem:[#allocation3 + $0x131] sm:$0x1] %vm1666, 0.0
        %1698 = vst.msk [vmem:[#allocation3 + $0x149] sm:$0x1] %vm1666, 0.0
        %1699 = vst.msk [vmem:[#allocation3 + $0x161] sm:$0x1] %vm1666, 0.0
        %1700 = vst.msk [vmem:[#allocation3 + $0x179] sm:$0x1] %vm1666, 0.0
        %1701 = vst.msk [vmem:[#allocation3 + $0x191] sm:$0x1] %vm1666, 0.0
        %1702 = vst.msk [vmem:[#allocation3 + $0x1a9] sm:$0x1] %vm1666, 0.0
        %s1703 = scalar_lea.vmem [#allocation3], 24
        %1704 = vst.msk [vmem:[%s1703 + $0x1] sm:$0xff] %vm1657, %v1625
        %1705 = vst.msk [vmem:[%s1703 + $0x9] sm:$0xff] %vm1657, %v1626
        %1706 = vst.msk [vmem:[%s1703 + $0x19] sm:$0xff] %vm1657, %v1627
        %1707 = vst.msk [vmem:[%s1703 + $0x21] sm:$0xff] %vm1657, %v1628
        %1708 = vst.msk [vmem:[%s1703 + $0x31] sm:$0xff] %vm1657, %v1629
        %1709 = vst.msk [vmem:[%s1703 + $0x39] sm:$0xff] %vm1657, %v1630
        %1710 = vst.msk [vmem:[%s1703 + $0x49] sm:$0xff] %vm1657, %v1631
        %1711 = vst.msk [vmem:[%s1703 + $0x51] sm:$0xff] %vm1657, %v1632
        %1712 = vst.msk [vmem:[%s1703 + $0x61] sm:$0xff] %vm1657, %v1633
        %1713 = vst.msk [vmem:[%s1703 + $0x69] sm:$0xff] %vm1657, %v1634
        %1714 = vst.msk [vmem:[%s1703 + $0x79] sm:$0xff] %vm1657, %v1635
        %1715 = vst.msk [vmem:[%s1703 + $0x81] sm:$0xff] %vm1657, %v1636
        %1716 = vst.msk [vmem:[%s1703 + $0x91] sm:$0xff] %vm1657, %v1637
        %1717 = vst.msk [vmem:[%s1703 + $0x99] sm:$0xff] %vm1657, %v1638
        %1718 = vst.msk [vmem:[%s1703 + $0xa9] sm:$0xff] %vm1657, %v1639
        %1719 = vst.msk [vmem:[%s1703 + $0xb1] sm:$0xff] %vm1657, %v1640
        %1720 = vst.msk [vmem:[%s1703 + $0xc1] sm:$0xff] %vm1657, %v1641
        %1721 = vst.msk [vmem:[%s1703 + $0xc9] sm:$0xff] %vm1657, %v1642
        %1722 = vst.msk [vmem:[%s1703 + $0xd9] sm:$0xff] %vm1657, %v1643
        %1723 = vst.msk [vmem:[%s1703 + $0xe1] sm:$0xff] %vm1657, %v1644
        %1724 = vst.msk [vmem:[%s1703 + $0xf1] sm:$0xff] %vm1657, %v1645
        %1725 = vst.msk [vmem:[%s1703 + $0xf9] sm:$0xff] %vm1657, %v1646
        %1726 = vst.msk [vmem:[%s1703 + $0x109] sm:$0xff] %vm1657, %v1647
        %1727 = vst.msk [vmem:[%s1703 + $0x111] sm:$0xff] %vm1657, %v1648
        %1728 = vst.msk [vmem:[%s1703 + $0x121] sm:$0xff] %vm1657, %v1649
        %1729 = vst.msk [vmem:[%s1703 + $0x129] sm:$0xff] %vm1657, %v1650
        %1730 = vst.msk [vmem:[%s1703 + $0x139] sm:$0xff] %vm1657, %v1651
        %1731 = vst.msk [vmem:[%s1703 + $0x141] sm:$0xff] %vm1657, %v1652
        %1732 = vst.msk [vmem:[%s1703 + $0x151] sm:$0xff] %vm1657, %v1653
        %1733 = vst.msk [vmem:[%s1703 + $0x159] sm:$0xff] %vm1657, %v1654
        %1734 = vst.msk [vmem:[%s1703 + $0x169] sm:$0xff] %vm1657, %v1655
        %1735 = vst.msk [vmem:[%s1703 + $0x171] sm:$0xff] %vm1657, %v1656
        %v1736 = vld [vmem:[%s4] sm:$0x7]
        %v1737 = vld [vmem:[%s4 + $0x4] sm:$0x7]
        %v1738 = vld [vmem:[%s4 + $0x8] sm:$0x7]
        %v1739 = vld [vmem:[#allocation3] sm:$0xff]
        %v1740 = vld [vmem:[#allocation3 + $0x8] sm:$0xff]
        %v1741 = vld [vmem:[#allocation3 + $0x18] sm:$0xff]
        %v1742 = vld [vmem:[#allocation3 + $0x20] sm:$0xff]
        %v1743 = vld [vmem:[#allocation3 + $0x30] sm:$0xff]
        %v1744 = vld [vmem:[#allocation3 + $0x38] sm:$0xff]
        %v1745 = vld [vmem:[#allocation3 + $0x48] sm:$0xff]
        %v1746 = vld [vmem:[#allocation3 + $0x50] sm:$0xff]
        %v1747 = vld [vmem:[#allocation3 + $0x60] sm:$0xff]
        %v1748 = vld [vmem:[#allocation3 + $0x68] sm:$0xff]
        %v1749 = vld [vmem:[#allocation3 + $0x78] sm:$0xff]
        %v1750 = vld [vmem:[#allocation3 + $0x80] sm:$0xff]
        %v1751 = vld [vmem:[#allocation3 + $0x90] sm:$0xff]
        %v1752 = vld [vmem:[#allocation3 + $0x98] sm:$0xff]
        %v1753 = vld [vmem:[#allocation3 + $0xa8] sm:$0xff]
        %v1754 = vld [vmem:[#allocation3 + $0xb0] sm:$0xff]
        %v1755 = vld [vmem:[#allocation3 + $0xc0] sm:$0xff]
        %v1756 = vld [vmem:[#allocation3 + $0xc8] sm:$0xff]
        %v1757 = vld [vmem:[#allocation3 + $0xd8] sm:$0xff]
        %v1758 = vld [vmem:[#allocation3 + $0xe0] sm:$0xff]
        %v1759 = vld [vmem:[#allocation3 + $0xf0] sm:$0xff]
        %v1760 = vld [vmem:[#allocation3 + $0xf8] sm:$0xff]
        %v1761 = vld [vmem:[#allocation3 + $0x108] sm:$0xff]
        %v1762 = vld [vmem:[#allocation3 + $0x110] sm:$0xff]
        %v1763 = vld [vmem:[#allocation3 + $0x120] sm:$0xff]
        %v1764 = vld [vmem:[#allocation3 + $0x128] sm:$0xff]
        %v1765 = vld [vmem:[#allocation3 + $0x138] sm:$0xff]
        %v1766 = vld [vmem:[#allocation3 + $0x140] sm:$0xff]
        %v1767 = vld [vmem:[#allocation3 + $0x150] sm:$0xff]
        %v1768 = vld [vmem:[#allocation3 + $0x158] sm:$0xff]
        %v1769 = vld [vmem:[#allocation3 + $0x168] sm:$0xff]
        %v1770 = vld [vmem:[#allocation3 + $0x170] sm:$0xff]
        %v1771 = vlaneseq
        %v1772 = vshrl.u32 %v1771, 7
        %v1773 = vsub.s32 0, %v1772
        %v1774 = vrot.slane %v1736, %v1773
        %v1775 = vmul.f32 %v1739, %v1774
        %v1776 = vmul.f32 %v1740, %v1774
        %v1777 = vmul.f32 %v1741, %v1774
        %v1778 = vmul.f32 %v1742, %v1774
        %v1779 = vmul.f32 %v1743, %v1774
        %v1780 = vmul.f32 %v1744, %v1774
        %v1781 = vmul.f32 %v1745, %v1774
        %v1782 = vmul.f32 %v1746, %v1774
        %v1783 = vmul.f32 %v1747, %v1774
        %v1784 = vmul.f32 %v1748, %v1774
        %v1785 = vmul.f32 %v1749, %v1774
        %v1786 = vmul.f32 %v1750, %v1774
        %v1787 = vmul.f32 %v1751, %v1774
        %v1788 = vmul.f32 %v1752, %v1774
        %v1789 = vmul.f32 %v1753, %v1774
        %v1790 = vmul.f32 %v1754, %v1774
        %v1791 = vmul.f32 %v1755, %v1774
        %v1792 = vmul.f32 %v1756, %v1774
        %v1793 = vmul.f32 %v1757, %v1774
        %v1794 = vmul.f32 %v1758, %v1774
        %v1795 = vmul.f32 %v1759, %v1774
        %v1796 = vmul.f32 %v1760, %v1774
        %v1797 = vmul.f32 %v1761, %v1774
        %v1798 = vmul.f32 %v1762, %v1774
        %v1799 = vmul.f32 %v1763, %v1774
        %v1800 = vmul.f32 %v1764, %v1774
        %v1801 = vmul.f32 %v1765, %v1774
        %v1802 = vmul.f32 %v1766, %v1774
        %v1803 = vmul.f32 %v1767, %v1774
        %v1804 = vmul.f32 %v1768, %v1774
        %v1805 = vmul.f32 %v1769, %v1774
        %v1806 = vmul.f32 %v1770, %v1774
        %v1807 = vadd.f32 %v1775, 0.0
        %v1808 = vadd.f32 %v1776, 0.0
        %v1809 = vadd.f32 %v1777, 0.0
        %v1810 = vadd.f32 %v1778, 0.0
        %v1811 = vadd.f32 %v1779, 0.0
        %v1812 = vadd.f32 %v1780, 0.0
        %v1813 = vadd.f32 %v1781, 0.0
        %v1814 = vadd.f32 %v1782, 0.0
        %v1815 = vadd.f32 %v1783, 0.0
        %v1816 = vadd.f32 %v1784, 0.0
        %v1817 = vadd.f32 %v1785, 0.0
        %v1818 = vadd.f32 %v1786, 0.0
        %v1819 = vadd.f32 %v1787, 0.0
        %v1820 = vadd.f32 %v1788, 0.0
        %v1821 = vadd.f32 %v1789, 0.0
        %v1822 = vadd.f32 %v1790, 0.0
        %v1823 = vadd.f32 %v1791, 0.0
        %v1824 = vadd.f32 %v1792, 0.0
        %v1825 = vadd.f32 %v1793, 0.0
        %v1826 = vadd.f32 %v1794, 0.0
        %v1827 = vadd.f32 %v1795, 0.0
        %v1828 = vadd.f32 %v1796, 0.0
        %v1829 = vadd.f32 %v1797, 0.0
        %v1830 = vadd.f32 %v1798, 0.0
        %v1831 = vadd.f32 %v1799, 0.0
        %v1832 = vadd.f32 %v1800, 0.0
        %v1833 = vadd.f32 %v1801, 0.0
        %v1834 = vadd.f32 %v1802, 0.0
        %v1835 = vadd.f32 %v1803, 0.0
        %v1836 = vadd.f32 %v1804, 0.0
        %v1837 = vadd.f32 %v1805, 0.0
        %v1838 = vadd.f32 %v1806, 0.0
        %v1839 = vld [vmem:[#allocation3 + $0x1] sm:$0xff]
        %v1840 = vld [vmem:[#allocation3 + $0x9] sm:$0xff]
        %v1841 = vld [vmem:[#allocation3 + $0x19] sm:$0xff]
        %v1842 = vld [vmem:[#allocation3 + $0x21] sm:$0xff]
        %v1843 = vld [vmem:[#allocation3 + $0x31] sm:$0xff]
        %v1844 = vld [vmem:[#allocation3 + $0x39] sm:$0xff]
        %v1845 = vld [vmem:[#allocation3 + $0x49] sm:$0xff]
        %v1846 = vld [vmem:[#allocation3 + $0x51] sm:$0xff]
        %v1847 = vld [vmem:[#allocation3 + $0x61] sm:$0xff]
        %v1848 = vld [vmem:[#allocation3 + $0x69] sm:$0xff]
        %v1849 = vld [vmem:[#allocation3 + $0x79] sm:$0xff]
        %v1850 = vld [vmem:[#allocation3 + $0x81] sm:$0xff]
        %v1851 = vld [vmem:[#allocation3 + $0x91] sm:$0xff]
        %v1852 = vld [vmem:[#allocation3 + $0x99] sm:$0xff]
        %v1853 = vld [vmem:[#allocation3 + $0xa9] sm:$0xff]
        %v1854 = vld [vmem:[#allocation3 + $0xb1] sm:$0xff]
        %v1855 = vld [vmem:[#allocation3 + $0xc1] sm:$0xff]
        %v1856 = vld [vmem:[#allocation3 + $0xc9] sm:$0xff]
        %v1857 = vld [vmem:[#allocation3 + $0xd9] sm:$0xff]
        %v1858 = vld [vmem:[#allocation3 + $0xe1] sm:$0xff]
        %v1859 = vld [vmem:[#allocation3 + $0xf1] sm:$0xff]
        %v1860 = vld [vmem:[#allocation3 + $0xf9] sm:$0xff]
        %v1861 = vld [vmem:[#allocation3 + $0x109] sm:$0xff]
        %v1862 = vld [vmem:[#allocation3 + $0x111] sm:$0xff]
        %v1863 = vld [vmem:[#allocation3 + $0x121] sm:$0xff]
        %v1864 = vld [vmem:[#allocation3 + $0x129] sm:$0xff]
        %v1865 = vld [vmem:[#allocation3 + $0x139] sm:$0xff]
        %v1866 = vld [vmem:[#allocation3 + $0x141] sm:$0xff]
        %v1867 = vld [vmem:[#allocation3 + $0x151] sm:$0xff]
        %v1868 = vld [vmem:[#allocation3 + $0x159] sm:$0xff]
        %v1869 = vld [vmem:[#allocation3 + $0x169] sm:$0xff]
        %v1870 = vld [vmem:[#allocation3 + $0x171] sm:$0xff]
        %v1871 = vlaneseq
        %v1872 = vshrl.u32 %v1871, 7
        %v1873 = vsub.s32 1, %v1872
        %v1874 = vrot.slane %v1736, %v1873
        %v1875 = vmul.f32 %v1839, %v1874
        %v1876 = vmul.f32 %v1840, %v1874
        %v1877 = vmul.f32 %v1841, %v1874
        %v1878 = vmul.f32 %v1842, %v1874
        %v1879 = vmul.f32 %v1843, %v1874
        %v1880 = vmul.f32 %v1844, %v1874
        %v1881 = vmul.f32 %v1845, %v1874
        %v1882 = vmul.f32 %v1846, %v1874
        %v1883 = vmul.f32 %v1847, %v1874
        %v1884 = vmul.f32 %v1848, %v1874
        %v1885 = vmul.f32 %v1849, %v1874
        %v1886 = vmul.f32 %v1850, %v1874
        %v1887 = vmul.f32 %v1851, %v1874
        %v1888 = vmul.f32 %v1852, %v1874
        %v1889 = vmul.f32 %v1853, %v1874
        %v1890 = vmul.f32 %v1854, %v1874
        %v1891 = vmul.f32 %v1855, %v1874
        %v1892 = vmul.f32 %v1856, %v1874
        %v1893 = vmul.f32 %v1857, %v1874
        %v1894 = vmul.f32 %v1858, %v1874
        %v1895 = vmul.f32 %v1859, %v1874
        %v1896 = vmul.f32 %v1860, %v1874
        %v1897 = vmul.f32 %v1861, %v1874
        %v1898 = vmul.f32 %v1862, %v1874
        %v1899 = vmul.f32 %v1863, %v1874
        %v1900 = vmul.f32 %v1864, %v1874
        %v1901 = vmul.f32 %v1865, %v1874
        %v1902 = vmul.f32 %v1866, %v1874
        %v1903 = vmul.f32 %v1867, %v1874
        %v1904 = vmul.f32 %v1868, %v1874
        %v1905 = vmul.f32 %v1869, %v1874
        %v1906 = vmul.f32 %v1870, %v1874
        %v1907 = vadd.f32 %v1807, %v1875
        %v1908 = vadd.f32 %v1808, %v1876
        %v1909 = vadd.f32 %v1809, %v1877
        %v1910 = vadd.f32 %v1810, %v1878
        %v1911 = vadd.f32 %v1811, %v1879
        %v1912 = vadd.f32 %v1812, %v1880
        %v1913 = vadd.f32 %v1813, %v1881
        %v1914 = vadd.f32 %v1814, %v1882
        %v1915 = vadd.f32 %v1815, %v1883
        %v1916 = vadd.f32 %v1816, %v1884
        %v1917 = vadd.f32 %v1817, %v1885
        %v1918 = vadd.f32 %v1818, %v1886
        %v1919 = vadd.f32 %v1819, %v1887
        %v1920 = vadd.f32 %v1820, %v1888
        %v1921 = vadd.f32 %v1821, %v1889
        %v1922 = vadd.f32 %v1822, %v1890
        %v1923 = vadd.f32 %v1823, %v1891
        %v1924 = vadd.f32 %v1824, %v1892
        %v1925 = vadd.f32 %v1825, %v1893
        %v1926 = vadd.f32 %v1826, %v1894
        %v1927 = vadd.f32 %v1827, %v1895
        %v1928 = vadd.f32 %v1828, %v1896
        %v1929 = vadd.f32 %v1829, %v1897
        %v1930 = vadd.f32 %v1830, %v1898
        %v1931 = vadd.f32 %v1831, %v1899
        %v1932 = vadd.f32 %v1832, %v1900
        %v1933 = vadd.f32 %v1833, %v1901
        %v1934 = vadd.f32 %v1834, %v1902
        %v1935 = vadd.f32 %v1835, %v1903
        %v1936 = vadd.f32 %v1836, %v1904
        %v1937 = vadd.f32 %v1837, %v1905
        %v1938 = vadd.f32 %v1838, %v1906
        %v1939 = vld [vmem:[#allocation3 + $0x2] sm:$0xff]
        %v1940 = vld [vmem:[#allocation3 + $0xa] sm:$0xff]
        %v1941 = vld [vmem:[#allocation3 + $0x1a] sm:$0xff]
        %v1942 = vld [vmem:[#allocation3 + $0x22] sm:$0xff]
        %v1943 = vld [vmem:[#allocation3 + $0x32] sm:$0xff]
        %v1944 = vld [vmem:[#allocation3 + $0x3a] sm:$0xff]
        %v1945 = vld [vmem:[#allocation3 + $0x4a] sm:$0xff]
        %v1946 = vld [vmem:[#allocation3 + $0x52] sm:$0xff]
        %v1947 = vld [vmem:[#allocation3 + $0x62] sm:$0xff]
        %v1948 = vld [vmem:[#allocation3 + $0x6a] sm:$0xff]
        %v1949 = vld [vmem:[#allocation3 + $0x7a] sm:$0xff]
        %v1950 = vld [vmem:[#allocation3 + $0x82] sm:$0xff]
        %v1951 = vld [vmem:[#allocation3 + $0x92] sm:$0xff]
        %v1952 = vld [vmem:[#allocation3 + $0x9a] sm:$0xff]
        %v1953 = vld [vmem:[#allocation3 + $0xaa] sm:$0xff]
        %v1954 = vld [vmem:[#allocation3 + $0xb2] sm:$0xff]
        %v1955 = vld [vmem:[#allocation3 + $0xc2] sm:$0xff]
        %v1956 = vld [vmem:[#allocation3 + $0xca] sm:$0xff]
        %v1957 = vld [vmem:[#allocation3 + $0xda] sm:$0xff]
        %v1958 = vld [vmem:[#allocation3 + $0xe2] sm:$0xff]
        %v1959 = vld [vmem:[#allocation3 + $0xf2] sm:$0xff]
        %v1960 = vld [vmem:[#allocation3 + $0xfa] sm:$0xff]
        %v1961 = vld [vmem:[#allocation3 + $0x10a] sm:$0xff]
        %v1962 = vld [vmem:[#allocation3 + $0x112] sm:$0xff]
        %v1963 = vld [vmem:[#allocation3 + $0x122] sm:$0xff]
        %v1964 = vld [vmem:[#allocation3 + $0x12a] sm:$0xff]
        %v1965 = vld [vmem:[#allocation3 + $0x13a] sm:$0xff]
        %v1966 = vld [vmem:[#allocation3 + $0x142] sm:$0xff]
        %v1967 = vld [vmem:[#allocation3 + $0x152] sm:$0xff]
        %v1968 = vld [vmem:[#allocation3 + $0x15a] sm:$0xff]
        %v1969 = vld [vmem:[#allocation3 + $0x16a] sm:$0xff]
        %v1970 = vld [vmem:[#allocation3 + $0x172] sm:$0xff]
        %v1971 = vlaneseq
        %v1972 = vshrl.u32 %v1971, 7
        %v1973 = vsub.s32 2, %v1972
        %v1974 = vrot.slane %v1736, %v1973
        %v1975 = vmul.f32 %v1939, %v1974
        %v1976 = vmul.f32 %v1940, %v1974
        %v1977 = vmul.f32 %v1941, %v1974
        %v1978 = vmul.f32 %v1942, %v1974
        %v1979 = vmul.f32 %v1943, %v1974
        %v1980 = vmul.f32 %v1944, %v1974
        %v1981 = vmul.f32 %v1945, %v1974
        %v1982 = vmul.f32 %v1946, %v1974
        %v1983 = vmul.f32 %v1947, %v1974
        %v1984 = vmul.f32 %v1948, %v1974
        %v1985 = vmul.f32 %v1949, %v1974
        %v1986 = vmul.f32 %v1950, %v1974
        %v1987 = vmul.f32 %v1951, %v1974
        %v1988 = vmul.f32 %v1952, %v1974
        %v1989 = vmul.f32 %v1953, %v1974
        %v1990 = vmul.f32 %v1954, %v1974
        %v1991 = vmul.f32 %v1955, %v1974
        %v1992 = vmul.f32 %v1956, %v1974
        %v1993 = vmul.f32 %v1957, %v1974
        %v1994 = vmul.f32 %v1958, %v1974
        %v1995 = vmul.f32 %v1959, %v1974
        %v1996 = vmul.f32 %v1960, %v1974
        %v1997 = vmul.f32 %v1961, %v1974
        %v1998 = vmul.f32 %v1962, %v1974
        %v1999 = vmul.f32 %v1963, %v1974
        %v2000 = vmul.f32 %v1964, %v1974
        %v2001 = vmul.f32 %v1965, %v1974
        %v2002 = vmul.f32 %v1966, %v1974
        %v2003 = vmul.f32 %v1967, %v1974
        %v2004 = vmul.f32 %v1968, %v1974
        %v2005 = vmul.f32 %v1969, %v1974
        %v2006 = vmul.f32 %v1970, %v1974
        %v2007 = vadd.f32 %v1907, %v1975
        %v2008 = vadd.f32 %v1908, %v1976
        %v2009 = vadd.f32 %v1909, %v1977
        %v2010 = vadd.f32 %v1910, %v1978
        %v2011 = vadd.f32 %v1911, %v1979
        %v2012 = vadd.f32 %v1912, %v1980
        %v2013 = vadd.f32 %v1913, %v1981
        %v2014 = vadd.f32 %v1914, %v1982
        %v2015 = vadd.f32 %v1915, %v1983
        %v2016 = vadd.f32 %v1916, %v1984
        %v2017 = vadd.f32 %v1917, %v1985
        %v2018 = vadd.f32 %v1918, %v1986
        %v2019 = vadd.f32 %v1919, %v1987
        %v2020 = vadd.f32 %v1920, %v1988
        %v2021 = vadd.f32 %v1921, %v1989
        %v2022 = vadd.f32 %v1922, %v1990
        %v2023 = vadd.f32 %v1923, %v1991
        %v2024 = vadd.f32 %v1924, %v1992
        %v2025 = vadd.f32 %v1925, %v1993
        %v2026 = vadd.f32 %v1926, %v1994
        %v2027 = vadd.f32 %v1927, %v1995
        %v2028 = vadd.f32 %v1928, %v1996
        %v2029 = vadd.f32 %v1929, %v1997
        %v2030 = vadd.f32 %v1930, %v1998
        %v2031 = vadd.f32 %v1931, %v1999
        %v2032 = vadd.f32 %v1932, %v2000
        %v2033 = vadd.f32 %v1933, %v2001
        %v2034 = vadd.f32 %v1934, %v2002
        %v2035 = vadd.f32 %v1935, %v2003
        %v2036 = vadd.f32 %v1936, %v2004
        %v2037 = vadd.f32 %v1937, %v2005
        %v2038 = vadd.f32 %v1938, %v2006
        %v2039 = vld [vmem:[%s1703] sm:$0xff]
        %v2040 = vld [vmem:[%s1703 + $0x8] sm:$0xff]
        %v2041 = vld [vmem:[%s1703 + $0x18] sm:$0xff]
        %v2042 = vld [vmem:[%s1703 + $0x20] sm:$0xff]
        %v2043 = vld [vmem:[%s1703 + $0x30] sm:$0xff]
        %v2044 = vld [vmem:[%s1703 + $0x38] sm:$0xff]
        %v2045 = vld [vmem:[%s1703 + $0x48] sm:$0xff]
        %v2046 = vld [vmem:[%s1703 + $0x50] sm:$0xff]
        %v2047 = vld [vmem:[%s1703 + $0x60] sm:$0xff]
        %v2048 = vld [vmem:[%s1703 + $0x68] sm:$0xff]
        %v2049 = vld [vmem:[%s1703 + $0x78] sm:$0xff]
        %v2050 = vld [vmem:[%s1703 + $0x80] sm:$0xff]
        %v2051 = vld [vmem:[%s1703 + $0x90] sm:$0xff]
        %v2052 = vld [vmem:[%s1703 + $0x98] sm:$0xff]
        %v2053 = vld [vmem:[%s1703 + $0xa8] sm:$0xff]
        %v2054 = vld [vmem:[%s1703 + $0xb0] sm:$0xff]
        %v2055 = vld [vmem:[%s1703 + $0xc0] sm:$0xff]
        %v2056 = vld [vmem:[%s1703 + $0xc8] sm:$0xff]
        %v2057 = vld [vmem:[%s1703 + $0xd8] sm:$0xff]
        %v2058 = vld [vmem:[%s1703 + $0xe0] sm:$0xff]
        %v2059 = vld [vmem:[%s1703 + $0xf0] sm:$0xff]
        %v2060 = vld [vmem:[%s1703 + $0xf8] sm:$0xff]
        %v2061 = vld [vmem:[%s1703 + $0x108] sm:$0xff]
        %v2062 = vld [vmem:[%s1703 + $0x110] sm:$0xff]
        %v2063 = vld [vmem:[%s1703 + $0x120] sm:$0xff]
        %v2064 = vld [vmem:[%s1703 + $0x128] sm:$0xff]
        %v2065 = vld [vmem:[%s1703 + $0x138] sm:$0xff]
        %v2066 = vld [vmem:[%s1703 + $0x140] sm:$0xff]
        %v2067 = vld [vmem:[%s1703 + $0x150] sm:$0xff]
        %v2068 = vld [vmem:[%s1703 + $0x158] sm:$0xff]
        %v2069 = vld [vmem:[%s1703 + $0x168] sm:$0xff]
        %v2070 = vld [vmem:[%s1703 + $0x170] sm:$0xff]
        %v2071 = vlaneseq
        %v2072 = vshrl.u32 %v2071, 7
        %v2073 = vsub.s32 0, %v2072
        %v2074 = vrot.slane %v1737, %v2073
        %v2075 = vmul.f32 %v2039, %v2074
        %v2076 = vmul.f32 %v2040, %v2074
        %v2077 = vmul.f32 %v2041, %v2074
        %v2078 = vmul.f32 %v2042, %v2074
        %v2079 = vmul.f32 %v2043, %v2074
        %v2080 = vmul.f32 %v2044, %v2074
        %v2081 = vmul.f32 %v2045, %v2074
        %v2082 = vmul.f32 %v2046, %v2074
        %v2083 = vmul.f32 %v2047, %v2074
        %v2084 = vmul.f32 %v2048, %v2074
        %v2085 = vmul.f32 %v2049, %v2074
        %v2086 = vmul.f32 %v2050, %v2074
        %v2087 = vmul.f32 %v2051, %v2074
        %v2088 = vmul.f32 %v2052, %v2074
        %v2089 = vmul.f32 %v2053, %v2074
        %v2090 = vmul.f32 %v2054, %v2074
        %v2091 = vmul.f32 %v2055, %v2074
        %v2092 = vmul.f32 %v2056, %v2074
        %v2093 = vmul.f32 %v2057, %v2074
        %v2094 = vmul.f32 %v2058, %v2074
        %v2095 = vmul.f32 %v2059, %v2074
        %v2096 = vmul.f32 %v2060, %v2074
        %v2097 = vmul.f32 %v2061, %v2074
        %v2098 = vmul.f32 %v2062, %v2074
        %v2099 = vmul.f32 %v2063, %v2074
        %v2100 = vmul.f32 %v2064, %v2074
        %v2101 = vmul.f32 %v2065, %v2074
        %v2102 = vmul.f32 %v2066, %v2074
        %v2103 = vmul.f32 %v2067, %v2074
        %v2104 = vmul.f32 %v2068, %v2074
        %v2105 = vmul.f32 %v2069, %v2074
        %v2106 = vmul.f32 %v2070, %v2074
        %v2107 = vadd.f32 %v2007, %v2075
        %v2108 = vadd.f32 %v2008, %v2076
        %v2109 = vadd.f32 %v2009, %v2077
        %v2110 = vadd.f32 %v2010, %v2078
        %v2111 = vadd.f32 %v2011, %v2079
        %v2112 = vadd.f32 %v2012, %v2080
        %v2113 = vadd.f32 %v2013, %v2081
        %v2114 = vadd.f32 %v2014, %v2082
        %v2115 = vadd.f32 %v2015, %v2083
        %v2116 = vadd.f32 %v2016, %v2084
        %v2117 = vadd.f32 %v2017, %v2085
        %v2118 = vadd.f32 %v2018, %v2086
        %v2119 = vadd.f32 %v2019, %v2087
        %v2120 = vadd.f32 %v2020, %v2088
        %v2121 = vadd.f32 %v2021, %v2089
        %v2122 = vadd.f32 %v2022, %v2090
        %v2123 = vadd.f32 %v2023, %v2091
        %v2124 = vadd.f32 %v2024, %v2092
        %v2125 = vadd.f32 %v2025, %v2093
        %v2126 = vadd.f32 %v2026, %v2094
        %v2127 = vadd.f32 %v2027, %v2095
        %v2128 = vadd.f32 %v2028, %v2096
        %v2129 = vadd.f32 %v2029, %v2097
        %v2130 = vadd.f32 %v2030, %v2098
        %v2131 = vadd.f32 %v2031, %v2099
        %v2132 = vadd.f32 %v2032, %v2100
        %v2133 = vadd.f32 %v2033, %v2101
        %v2134 = vadd.f32 %v2034, %v2102
        %v2135 = vadd.f32 %v2035, %v2103
        %v2136 = vadd.f32 %v2036, %v2104
        %v2137 = vadd.f32 %v2037, %v2105
        %v2138 = vadd.f32 %v2038, %v2106
        %v2139 = vld [vmem:[%s1703 + $0x1] sm:$0xff]
        %v2140 = vld [vmem:[%s1703 + $0x9] sm:$0xff]
        %v2141 = vld [vmem:[%s1703 + $0x19] sm:$0xff]
        %v2142 = vld [vmem:[%s1703 + $0x21] sm:$0xff]
        %v2143 = vld [vmem:[%s1703 + $0x31] sm:$0xff]
        %v2144 = vld [vmem:[%s1703 + $0x39] sm:$0xff]
        %v2145 = vld [vmem:[%s1703 + $0x49] sm:$0xff]
        %v2146 = vld [vmem:[%s1703 + $0x51] sm:$0xff]
        %v2147 = vld [vmem:[%s1703 + $0x61] sm:$0xff]
        %v2148 = vld [vmem:[%s1703 + $0x69] sm:$0xff]
        %v2149 = vld [vmem:[%s1703 + $0x79] sm:$0xff]
        %v2150 = vld [vmem:[%s1703 + $0x81] sm:$0xff]
        %v2151 = vld [vmem:[%s1703 + $0x91] sm:$0xff]
        %v2152 = vld [vmem:[%s1703 + $0x99] sm:$0xff]
        %v2153 = vld [vmem:[%s1703 + $0xa9] sm:$0xff]
        %v2154 = vld [vmem:[%s1703 + $0xb1] sm:$0xff]
        %v2155 = vld [vmem:[%s1703 + $0xc1] sm:$0xff]
        %v2156 = vld [vmem:[%s1703 + $0xc9] sm:$0xff]
        %v2157 = vld [vmem:[%s1703 + $0xd9] sm:$0xff]
        %v2158 = vld [vmem:[%s1703 + $0xe1] sm:$0xff]
        %v2159 = vld [vmem:[%s1703 + $0xf1] sm:$0xff]
        %v2160 = vld [vmem:[%s1703 + $0xf9] sm:$0xff]
        %v2161 = vld [vmem:[%s1703 + $0x109] sm:$0xff]
        %v2162 = vld [vmem:[%s1703 + $0x111] sm:$0xff]
        %v2163 = vld [vmem:[%s1703 + $0x121] sm:$0xff]
        %v2164 = vld [vmem:[%s1703 + $0x129] sm:$0xff]
        %v2165 = vld [vmem:[%s1703 + $0x139] sm:$0xff]
        %v2166 = vld [vmem:[%s1703 + $0x141] sm:$0xff]
        %v2167 = vld [vmem:[%s1703 + $0x151] sm:$0xff]
        %v2168 = vld [vmem:[%s1703 + $0x159] sm:$0xff]
        %v2169 = vld [vmem:[%s1703 + $0x169] sm:$0xff]
        %v2170 = vld [vmem:[%s1703 + $0x171] sm:$0xff]
        %v2171 = vlaneseq
        %v2172 = vshrl.u32 %v2171, 7
        %v2173 = vsub.s32 1, %v2172
        %v2174 = vrot.slane %v1737, %v2173
        %v2175 = vmul.f32 %v2139, %v2174
        %v2176 = vmul.f32 %v2140, %v2174
        %v2177 = vmul.f32 %v2141, %v2174
        %v2178 = vmul.f32 %v2142, %v2174
        %v2179 = vmul.f32 %v2143, %v2174
        %v2180 = vmul.f32 %v2144, %v2174
        %v2181 = vmul.f32 %v2145, %v2174
        %v2182 = vmul.f32 %v2146, %v2174
        %v2183 = vmul.f32 %v2147, %v2174
        %v2184 = vmul.f32 %v2148, %v2174
        %v2185 = vmul.f32 %v2149, %v2174
        %v2186 = vmul.f32 %v2150, %v2174
        %v2187 = vmul.f32 %v2151, %v2174
        %v2188 = vmul.f32 %v2152, %v2174
        %v2189 = vmul.f32 %v2153, %v2174
        %v2190 = vmul.f32 %v2154, %v2174
        %v2191 = vmul.f32 %v2155, %v2174
        %v2192 = vmul.f32 %v2156, %v2174
        %v2193 = vmul.f32 %v2157, %v2174
        %v2194 = vmul.f32 %v2158, %v2174
        %v2195 = vmul.f32 %v2159, %v2174
        %v2196 = vmul.f32 %v2160, %v2174
        %v2197 = vmul.f32 %v2161, %v2174
        %v2198 = vmul.f32 %v2162, %v2174
        %v2199 = vmul.f32 %v2163, %v2174
        %v2200 = vmul.f32 %v2164, %v2174
        %v2201 = vmul.f32 %v2165, %v2174
        %v2202 = vmul.f32 %v2166, %v2174
        %v2203 = vmul.f32 %v2167, %v2174
        %v2204 = vmul.f32 %v2168, %v2174
        %v2205 = vmul.f32 %v2169, %v2174
        %v2206 = vmul.f32 %v2170, %v2174
        %v2207 = vadd.f32 %v2107, %v2175
        %v2208 = vadd.f32 %v2108, %v2176
        %v2209 = vadd.f32 %v2109, %v2177
        %v2210 = vadd.f32 %v2110, %v2178
        %v2211 = vadd.f32 %v2111, %v2179
        %v2212 = vadd.f32 %v2112, %v2180
        %v2213 = vadd.f32 %v2113, %v2181
        %v2214 = vadd.f32 %v2114, %v2182
        %v2215 = vadd.f32 %v2115, %v2183
        %v2216 = vadd.f32 %v2116, %v2184
        %v2217 = vadd.f32 %v2117, %v2185
        %v2218 = vadd.f32 %v2118, %v2186
        %v2219 = vadd.f32 %v2119, %v2187
        %v2220 = vadd.f32 %v2120, %v2188
        %v2221 = vadd.f32 %v2121, %v2189
        %v2222 = vadd.f32 %v2122, %v2190
        %v2223 = vadd.f32 %v2123, %v2191
        %v2224 = vadd.f32 %v2124, %v2192
        %v2225 = vadd.f32 %v2125, %v2193
        %v2226 = vadd.f32 %v2126, %v2194
        %v2227 = vadd.f32 %v2127, %v2195
        %v2228 = vadd.f32 %v2128, %v2196
        %v2229 = vadd.f32 %v2129, %v2197
        %v2230 = vadd.f32 %v2130, %v2198
        %v2231 = vadd.f32 %v2131, %v2199
        %v2232 = vadd.f32 %v2132, %v2200
        %v2233 = vadd.f32 %v2133, %v2201
        %v2234 = vadd.f32 %v2134, %v2202
        %v2235 = vadd.f32 %v2135, %v2203
        %v2236 = vadd.f32 %v2136, %v2204
        %v2237 = vadd.f32 %v2137, %v2205
        %v2238 = vadd.f32 %v2138, %v2206
        %v2239 = vld [vmem:[%s1703 + $0x2] sm:$0xff]
        %v2240 = vld [vmem:[%s1703 + $0xa] sm:$0xff]
        %v2241 = vld [vmem:[%s1703 + $0x1a] sm:$0xff]
        %v2242 = vld [vmem:[%s1703 + $0x22] sm:$0xff]
        %v2243 = vld [vmem:[%s1703 + $0x32] sm:$0xff]
        %v2244 = vld [vmem:[%s1703 + $0x3a] sm:$0xff]
        %v2245 = vld [vmem:[%s1703 + $0x4a] sm:$0xff]
        %v2246 = vld [vmem:[%s1703 + $0x52] sm:$0xff]
        %v2247 = vld [vmem:[%s1703 + $0x62] sm:$0xff]
        %v2248 = vld [vmem:[%s1703 + $0x6a] sm:$0xff]
        %v2249 = vld [vmem:[%s1703 + $0x7a] sm:$0xff]
        %v2250 = vld [vmem:[%s1703 + $0x82] sm:$0xff]
        %v2251 = vld [vmem:[%s1703 + $0x92] sm:$0xff]
        %v2252 = vld [vmem:[%s1703 + $0x9a] sm:$0xff]
        %v2253 = vld [vmem:[%s1703 + $0xaa] sm:$0xff]
        %v2254 = vld [vmem:[%s1703 + $0xb2] sm:$0xff]
        %v2255 = vld [vmem:[%s1703 + $0xc2] sm:$0xff]
        %v2256 = vld [vmem:[%s1703 + $0xca] sm:$0xff]
        %v2257 = vld [vmem:[%s1703 + $0xda] sm:$0xff]
        %v2258 = vld [vmem:[%s1703 + $0xe2] sm:$0xff]
        %v2259 = vld [vmem:[%s1703 + $0xf2] sm:$0xff]
        %v2260 = vld [vmem:[%s1703 + $0xfa] sm:$0xff]
        %v2261 = vld [vmem:[%s1703 + $0x10a] sm:$0xff]
        %v2262 = vld [vmem:[%s1703 + $0x112] sm:$0xff]
        %v2263 = vld [vmem:[%s1703 + $0x122] sm:$0xff]
        %v2264 = vld [vmem:[%s1703 + $0x12a] sm:$0xff]
        %v2265 = vld [vmem:[%s1703 + $0x13a] sm:$0xff]
        %v2266 = vld [vmem:[%s1703 + $0x142] sm:$0xff]
        %v2267 = vld [vmem:[%s1703 + $0x152] sm:$0xff]
        %v2268 = vld [vmem:[%s1703 + $0x15a] sm:$0xff]
        %v2269 = vld [vmem:[%s1703 + $0x16a] sm:$0xff]
        %v2270 = vld [vmem:[%s1703 + $0x172] sm:$0xff]
        %v2271 = vlaneseq
        %v2272 = vshrl.u32 %v2271, 7
        %v2273 = vsub.s32 2, %v2272
        %v2274 = vrot.slane %v1737, %v2273
        %v2275 = vmul.f32 %v2239, %v2274
        %v2276 = vmul.f32 %v2240, %v2274
        %v2277 = vmul.f32 %v2241, %v2274
        %v2278 = vmul.f32 %v2242, %v2274
        %v2279 = vmul.f32 %v2243, %v2274
        %v2280 = vmul.f32 %v2244, %v2274
        %v2281 = vmul.f32 %v2245, %v2274
        %v2282 = vmul.f32 %v2246, %v2274
        %v2283 = vmul.f32 %v2247, %v2274
        %v2284 = vmul.f32 %v2248, %v2274
        %v2285 = vmul.f32 %v2249, %v2274
        %v2286 = vmul.f32 %v2250, %v2274
        %v2287 = vmul.f32 %v2251, %v2274
        %v2288 = vmul.f32 %v2252, %v2274
        %v2289 = vmul.f32 %v2253, %v2274
        %v2290 = vmul.f32 %v2254, %v2274
        %v2291 = vmul.f32 %v2255, %v2274
        %v2292 = vmul.f32 %v2256, %v2274
        %v2293 = vmul.f32 %v2257, %v2274
        %v2294 = vmul.f32 %v2258, %v2274
        %v2295 = vmul.f32 %v2259, %v2274
        %v2296 = vmul.f32 %v2260, %v2274
        %v2297 = vmul.f32 %v2261, %v2274
        %v2298 = vmul.f32 %v2262, %v2274
        %v2299 = vmul.f32 %v2263, %v2274
        %v2300 = vmul.f32 %v2264, %v2274
        %v2301 = vmul.f32 %v2265, %v2274
        %v2302 = vmul.f32 %v2266, %v2274
        %v2303 = vmul.f32 %v2267, %v2274
        %v2304 = vmul.f32 %v2268, %v2274
        %v2305 = vmul.f32 %v2269, %v2274
        %v2306 = vmul.f32 %v2270, %v2274
        %v2307 = vadd.f32 %v2207, %v2275
        %v2308 = vadd.f32 %v2208, %v2276
        %v2309 = vadd.f32 %v2209, %v2277
        %v2310 = vadd.f32 %v2210, %v2278
        %v2311 = vadd.f32 %v2211, %v2279
        %v2312 = vadd.f32 %v2212, %v2280
        %v2313 = vadd.f32 %v2213, %v2281
        %v2314 = vadd.f32 %v2214, %v2282
        %v2315 = vadd.f32 %v2215, %v2283
        %v2316 = vadd.f32 %v2216, %v2284
        %v2317 = vadd.f32 %v2217, %v2285
        %v2318 = vadd.f32 %v2218, %v2286
        %v2319 = vadd.f32 %v2219, %v2287
        %v2320 = vadd.f32 %v2220, %v2288
        %v2321 = vadd.f32 %v2221, %v2289
        %v2322 = vadd.f32 %v2222, %v2290
        %v2323 = vadd.f32 %v2223, %v2291
        %v2324 = vadd.f32 %v2224, %v2292
        %v2325 = vadd.f32 %v2225, %v2293
        %v2326 = vadd.f32 %v2226, %v2294
        %v2327 = vadd.f32 %v2227, %v2295
        %v2328 = vadd.f32 %v2228, %v2296
        %v2329 = vadd.f32 %v2229, %v2297
        %v2330 = vadd.f32 %v2230, %v2298
        %v2331 = vadd.f32 %v2231, %v2299
        %v2332 = vadd.f32 %v2232, %v2300
        %v2333 = vadd.f32 %v2233, %v2301
        %v2334 = vadd.f32 %v2234, %v2302
        %v2335 = vadd.f32 %v2235, %v2303
        %v2336 = vadd.f32 %v2236, %v2304
        %v2337 = vadd.f32 %v2237, %v2305
        %v2338 = vadd.f32 %v2238, %v2306
        %s2339 = scalar_lea.vmem [#allocation3], 48
        %v2340 = vld [vmem:[%s2339] sm:$0xff]
        %v2341 = vld [vmem:[%s2339 + $0x8] sm:$0xff]
        %v2342 = vld [vmem:[%s2339 + $0x18] sm:$0xff]
        %v2343 = vld [vmem:[%s2339 + $0x20] sm:$0xff]
        %v2344 = vld [vmem:[%s2339 + $0x30] sm:$0xff]
        %v2345 = vld [vmem:[%s2339 + $0x38] sm:$0xff]
        %v2346 = vld [vmem:[%s2339 + $0x48] sm:$0xff]
        %v2347 = vld [vmem:[%s2339 + $0x50] sm:$0xff]
        %v2348 = vld [vmem:[%s2339 + $0x60] sm:$0xff]
        %v2349 = vld [vmem:[%s2339 + $0x68] sm:$0xff]
        %v2350 = vld [vmem:[%s2339 + $0x78] sm:$0xff]
        %v2351 = vld [vmem:[%s2339 + $0x80] sm:$0xff]
        %v2352 = vld [vmem:[%s2339 + $0x90] sm:$0xff]
        %v2353 = vld [vmem:[%s2339 + $0x98] sm:$0xff]
        %v2354 = vld [vmem:[%s2339 + $0xa8] sm:$0xff]
        %v2355 = vld [vmem:[%s2339 + $0xb0] sm:$0xff]
        %v2356 = vld [vmem:[%s2339 + $0xc0] sm:$0xff]
        %v2357 = vld [vmem:[%s2339 + $0xc8] sm:$0xff]
        %v2358 = vld [vmem:[%s2339 + $0xd8] sm:$0xff]
        %v2359 = vld [vmem:[%s2339 + $0xe0] sm:$0xff]
        %v2360 = vld [vmem:[%s2339 + $0xf0] sm:$0xff]
        %v2361 = vld [vmem:[%s2339 + $0xf8] sm:$0xff]
        %v2362 = vld [vmem:[%s2339 + $0x108] sm:$0xff]
        %v2363 = vld [vmem:[%s2339 + $0x110] sm:$0xff]
        %v2364 = vld [vmem:[%s2339 + $0x120] sm:$0xff]
        %v2365 = vld [vmem:[%s2339 + $0x128] sm:$0xff]
        %v2366 = vld [vmem:[%s2339 + $0x138] sm:$0xff]
        %v2367 = vld [vmem:[%s2339 + $0x140] sm:$0xff]
        %v2368 = vld [vmem:[%s2339 + $0x150] sm:$0xff]
        %v2369 = vld [vmem:[%s2339 + $0x158] sm:$0xff]
        %v2370 = vld [vmem:[%s2339 + $0x168] sm:$0xff]
        %v2371 = vld [vmem:[%s2339 + $0x170] sm:$0xff]
        %v2372 = vlaneseq
        %v2373 = vshrl.u32 %v2372, 7
        %v2374 = vsub.s32 0, %v2373
        %v2375 = vrot.slane %v1738, %v2374
        %v2376 = vmul.f32 %v2340, %v2375
        %v2377 = vmul.f32 %v2341, %v2375
        %v2378 = vmul.f32 %v2342, %v2375
        %v2379 = vmul.f32 %v2343, %v2375
        %v2380 = vmul.f32 %v2344, %v2375
        %v2381 = vmul.f32 %v2345, %v2375
        %v2382 = vmul.f32 %v2346, %v2375
        %v2383 = vmul.f32 %v2347, %v2375
        %v2384 = vmul.f32 %v2348, %v2375
        %v2385 = vmul.f32 %v2349, %v2375
        %v2386 = vmul.f32 %v2350, %v2375
        %v2387 = vmul.f32 %v2351, %v2375
        %v2388 = vmul.f32 %v2352, %v2375
        %v2389 = vmul.f32 %v2353, %v2375
        %v2390 = vmul.f32 %v2354, %v2375
        %v2391 = vmul.f32 %v2355, %v2375
        %v2392 = vmul.f32 %v2356, %v2375
        %v2393 = vmul.f32 %v2357, %v2375
        %v2394 = vmul.f32 %v2358, %v2375
        %v2395 = vmul.f32 %v2359, %v2375
        %v2396 = vmul.f32 %v2360, %v2375
        %v2397 = vmul.f32 %v2361, %v2375
        %v2398 = vmul.f32 %v2362, %v2375
        %v2399 = vmul.f32 %v2363, %v2375
        %v2400 = vmul.f32 %v2364, %v2375
        %v2401 = vmul.f32 %v2365, %v2375
        %v2402 = vmul.f32 %v2366, %v2375
        %v2403 = vmul.f32 %v2367, %v2375
        %v2404 = vmul.f32 %v2368, %v2375
        %v2405 = vmul.f32 %v2369, %v2375
        %v2406 = vmul.f32 %v2370, %v2375
        %v2407 = vmul.f32 %v2371, %v2375
        %v2408 = vadd.f32 %v2307, %v2376
        %v2409 = vadd.f32 %v2308, %v2377
        %v2410 = vadd.f32 %v2309, %v2378
        %v2411 = vadd.f32 %v2310, %v2379
        %v2412 = vadd.f32 %v2311, %v2380
        %v2413 = vadd.f32 %v2312, %v2381
        %v2414 = vadd.f32 %v2313, %v2382
        %v2415 = vadd.f32 %v2314, %v2383
        %v2416 = vadd.f32 %v2315, %v2384
        %v2417 = vadd.f32 %v2316, %v2385
        %v2418 = vadd.f32 %v2317, %v2386
        %v2419 = vadd.f32 %v2318, %v2387
        %v2420 = vadd.f32 %v2319, %v2388
        %v2421 = vadd.f32 %v2320, %v2389
        %v2422 = vadd.f32 %v2321, %v2390
        %v2423 = vadd.f32 %v2322, %v2391
        %v2424 = vadd.f32 %v2323, %v2392
        %v2425 = vadd.f32 %v2324, %v2393
        %v2426 = vadd.f32 %v2325, %v2394
        %v2427 = vadd.f32 %v2326, %v2395
        %v2428 = vadd.f32 %v2327, %v2396
        %v2429 = vadd.f32 %v2328, %v2397
        %v2430 = vadd.f32 %v2329, %v2398
        %v2431 = vadd.f32 %v2330, %v2399
        %v2432 = vadd.f32 %v2331, %v2400
        %v2433 = vadd.f32 %v2332, %v2401
        %v2434 = vadd.f32 %v2333, %v2402
        %v2435 = vadd.f32 %v2334, %v2403
        %v2436 = vadd.f32 %v2335, %v2404
        %v2437 = vadd.f32 %v2336, %v2405
        %v2438 = vadd.f32 %v2337, %v2406
        %v2439 = vadd.f32 %v2338, %v2407
        %v2440 = vld [vmem:[%s2339 + $0x1] sm:$0xff]
        %v2441 = vld [vmem:[%s2339 + $0x9] sm:$0xff]
        %v2442 = vld [vmem:[%s2339 + $0x19] sm:$0xff]
        %v2443 = vld [vmem:[%s2339 + $0x21] sm:$0xff]
        %v2444 = vld [vmem:[%s2339 + $0x31] sm:$0xff]
        %v2445 = vld [vmem:[%s2339 + $0x39] sm:$0xff]
        %v2446 = vld [vmem:[%s2339 + $0x49] sm:$0xff]
        %v2447 = vld [vmem:[%s2339 + $0x51] sm:$0xff]
        %v2448 = vld [vmem:[%s2339 + $0x61] sm:$0xff]
        %v2449 = vld [vmem:[%s2339 + $0x69] sm:$0xff]
        %v2450 = vld [vmem:[%s2339 + $0x79] sm:$0xff]
        %v2451 = vld [vmem:[%s2339 + $0x81] sm:$0xff]
        %v2452 = vld [vmem:[%s2339 + $0x91] sm:$0xff]
        %v2453 = vld [vmem:[%s2339 + $0x99] sm:$0xff]
        %v2454 = vld [vmem:[%s2339 + $0xa9] sm:$0xff]
        %v2455 = vld [vmem:[%s2339 + $0xb1] sm:$0xff]
        %v2456 = vld [vmem:[%s2339 + $0xc1] sm:$0xff]
        %v2457 = vld [vmem:[%s2339 + $0xc9] sm:$0xff]
        %v2458 = vld [vmem:[%s2339 + $0xd9] sm:$0xff]
        %v2459 = vld [vmem:[%s2339 + $0xe1] sm:$0xff]
        %v2460 = vld [vmem:[%s2339 + $0xf1] sm:$0xff]
        %v2461 = vld [vmem:[%s2339 + $0xf9] sm:$0xff]
        %v2462 = vld [vmem:[%s2339 + $0x109] sm:$0xff]
        %v2463 = vld [vmem:[%s2339 + $0x111] sm:$0xff]
        %v2464 = vld [vmem:[%s2339 + $0x121] sm:$0xff]
        %v2465 = vld [vmem:[%s2339 + $0x129] sm:$0xff]
        %v2466 = vld [vmem:[%s2339 + $0x139] sm:$0xff]
        %v2467 = vld [vmem:[%s2339 + $0x141] sm:$0xff]
        %v2468 = vld [vmem:[%s2339 + $0x151] sm:$0xff]
        %v2469 = vld [vmem:[%s2339 + $0x159] sm:$0xff]
        %v2470 = vld [vmem:[%s2339 + $0x169] sm:$0xff]
        %v2471 = vld [vmem:[%s2339 + $0x171] sm:$0xff]
        %v2472 = vlaneseq
        %v2473 = vshrl.u32 %v2472, 7
        %v2474 = vsub.s32 1, %v2473
        %v2475 = vrot.slane %v1738, %v2474
        %v2476 = vmul.f32 %v2440, %v2475
        %v2477 = vmul.f32 %v2441, %v2475
        %v2478 = vmul.f32 %v2442, %v2475
        %v2479 = vmul.f32 %v2443, %v2475
        %v2480 = vmul.f32 %v2444, %v2475
        %v2481 = vmul.f32 %v2445, %v2475
        %v2482 = vmul.f32 %v2446, %v2475
        %v2483 = vmul.f32 %v2447, %v2475
        %v2484 = vmul.f32 %v2448, %v2475
        %v2485 = vmul.f32 %v2449, %v2475
        %v2486 = vmul.f32 %v2450, %v2475
        %v2487 = vmul.f32 %v2451, %v2475
        %v2488 = vmul.f32 %v2452, %v2475
        %v2489 = vmul.f32 %v2453, %v2475
        %v2490 = vmul.f32 %v2454, %v2475
        %v2491 = vmul.f32 %v2455, %v2475
        %v2492 = vmul.f32 %v2456, %v2475
        %v2493 = vmul.f32 %v2457, %v2475
        %v2494 = vmul.f32 %v2458, %v2475
        %v2495 = vmul.f32 %v2459, %v2475
        %v2496 = vmul.f32 %v2460, %v2475
        %v2497 = vmul.f32 %v2461, %v2475
        %v2498 = vmul.f32 %v2462, %v2475
        %v2499 = vmul.f32 %v2463, %v2475
        %v2500 = vmul.f32 %v2464, %v2475
        %v2501 = vmul.f32 %v2465, %v2475
        %v2502 = vmul.f32 %v2466, %v2475
        %v2503 = vmul.f32 %v2467, %v2475
        %v2504 = vmul.f32 %v2468, %v2475
        %v2505 = vmul.f32 %v2469, %v2475
        %v2506 = vmul.f32 %v2470, %v2475
        %v2507 = vmul.f32 %v2471, %v2475
        %v2508 = vadd.f32 %v2408, %v2476
        %v2509 = vadd.f32 %v2409, %v2477
        %v2510 = vadd.f32 %v2410, %v2478
        %v2511 = vadd.f32 %v2411, %v2479
        %v2512 = vadd.f32 %v2412, %v2480
        %v2513 = vadd.f32 %v2413, %v2481
        %v2514 = vadd.f32 %v2414, %v2482
        %v2515 = vadd.f32 %v2415, %v2483
        %v2516 = vadd.f32 %v2416, %v2484
        %v2517 = vadd.f32 %v2417, %v2485
        %v2518 = vadd.f32 %v2418, %v2486
        %v2519 = vadd.f32 %v2419, %v2487
        %v2520 = vadd.f32 %v2420, %v2488
        %v2521 = vadd.f32 %v2421, %v2489
        %v2522 = vadd.f32 %v2422, %v2490
        %v2523 = vadd.f32 %v2423, %v2491
        %v2524 = vadd.f32 %v2424, %v2492
        %v2525 = vadd.f32 %v2425, %v2493
        %v2526 = vadd.f32 %v2426, %v2494
        %v2527 = vadd.f32 %v2427, %v2495
        %v2528 = vadd.f32 %v2428, %v2496
        %v2529 = vadd.f32 %v2429, %v2497
        %v2530 = vadd.f32 %v2430, %v2498
        %v2531 = vadd.f32 %v2431, %v2499
        %v2532 = vadd.f32 %v2432, %v2500
        %v2533 = vadd.f32 %v2433, %v2501
        %v2534 = vadd.f32 %v2434, %v2502
        %v2535 = vadd.f32 %v2435, %v2503
        %v2536 = vadd.f32 %v2436, %v2504
        %v2537 = vadd.f32 %v2437, %v2505
        %v2538 = vadd.f32 %v2438, %v2506
        %v2539 = vadd.f32 %v2439, %v2507
        %v2540 = vld [vmem:[%s2339 + $0x2] sm:$0xff]
        %v2541 = vld [vmem:[%s2339 + $0xa] sm:$0xff]
        %v2542 = vld [vmem:[%s2339 + $0x1a] sm:$0xff]
        %v2543 = vld [vmem:[%s2339 + $0x22] sm:$0xff]
        %v2544 = vld [vmem:[%s2339 + $0x32] sm:$0xff]
        %v2545 = vld [vmem:[%s2339 + $0x3a] sm:$0xff]
        %v2546 = vld [vmem:[%s2339 + $0x4a] sm:$0xff]
        %v2547 = vld [vmem:[%s2339 + $0x52] sm:$0xff]
        %v2548 = vld [vmem:[%s2339 + $0x62] sm:$0xff]
        %v2549 = vld [vmem:[%s2339 + $0x6a] sm:$0xff]
        %v2550 = vld [vmem:[%s2339 + $0x7a] sm:$0xff]
        %v2551 = vld [vmem:[%s2339 + $0x82] sm:$0xff]
        %v2552 = vld [vmem:[%s2339 + $0x92] sm:$0xff]
        %v2553 = vld [vmem:[%s2339 + $0x9a] sm:$0xff]
        %v2554 = vld [vmem:[%s2339 + $0xaa] sm:$0xff]
        %v2555 = vld [vmem:[%s2339 + $0xb2] sm:$0xff]
        %v2556 = vld [vmem:[%s2339 + $0xc2] sm:$0xff]
        %v2557 = vld [vmem:[%s2339 + $0xca] sm:$0xff]
        %v2558 = vld [vmem:[%s2339 + $0xda] sm:$0xff]
        %v2559 = vld [vmem:[%s2339 + $0xe2] sm:$0xff]
        %v2560 = vld [vmem:[%s2339 + $0xf2] sm:$0xff]
        %v2561 = vld [vmem:[%s2339 + $0xfa] sm:$0xff]
        %v2562 = vld [vmem:[%s2339 + $0x10a] sm:$0xff]
        %v2563 = vld [vmem:[%s2339 + $0x112] sm:$0xff]
        %v2564 = vld [vmem:[%s2339 + $0x122] sm:$0xff]
        %v2565 = vld [vmem:[%s2339 + $0x12a] sm:$0xff]
        %v2566 = vld [vmem:[%s2339 + $0x13a] sm:$0xff]
        %v2567 = vld [vmem:[%s2339 + $0x142] sm:$0xff]
        %v2568 = vld [vmem:[%s2339 + $0x152] sm:$0xff]
        %v2569 = vld [vmem:[%s2339 + $0x15a] sm:$0xff]
        %v2570 = vld [vmem:[%s2339 + $0x16a] sm:$0xff]
        %v2571 = vld [vmem:[%s2339 + $0x172] sm:$0xff]
        %v2572 = vlaneseq
        %v2573 = vshrl.u32 %v2572, 7
        %v2574 = vsub.s32 2, %v2573
        %v2575 = vrot.slane %v1738, %v2574
        %v2576 = vmul.f32 %v2540, %v2575
        %v2577 = vmul.f32 %v2541, %v2575
        %v2578 = vmul.f32 %v2542, %v2575
        %v2579 = vmul.f32 %v2543, %v2575
        %v2580 = vmul.f32 %v2544, %v2575
        %v2581 = vmul.f32 %v2545, %v2575
        %v2582 = vmul.f32 %v2546, %v2575
        %v2583 = vmul.f32 %v2547, %v2575
        %v2584 = vmul.f32 %v2548, %v2575
        %v2585 = vmul.f32 %v2549, %v2575
        %v2586 = vmul.f32 %v2550, %v2575
        %v2587 = vmul.f32 %v2551, %v2575
        %v2588 = vmul.f32 %v2552, %v2575
        %v2589 = vmul.f32 %v2553, %v2575
        %v2590 = vmul.f32 %v2554, %v2575
        %v2591 = vmul.f32 %v2555, %v2575
        %v2592 = vmul.f32 %v2556, %v2575
        %v2593 = vmul.f32 %v2557, %v2575
        %v2594 = vmul.f32 %v2558, %v2575
        %v2595 = vmul.f32 %v2559, %v2575
        %v2596 = vmul.f32 %v2560, %v2575
        %v2597 = vmul.f32 %v2561, %v2575
        %v2598 = vmul.f32 %v2562, %v2575
        %v2599 = vmul.f32 %v2563, %v2575
        %v2600 = vmul.f32 %v2564, %v2575
        %v2601 = vmul.f32 %v2565, %v2575
        %v2602 = vmul.f32 %v2566, %v2575
        %v2603 = vmul.f32 %v2567, %v2575
        %v2604 = vmul.f32 %v2568, %v2575
        %v2605 = vmul.f32 %v2569, %v2575
        %v2606 = vmul.f32 %v2570, %v2575
        %v2607 = vmul.f32 %v2571, %v2575
        %v2608 = vadd.f32 %v2508, %v2576
        %v2609 = vadd.f32 %v2509, %v2577
        %v2610 = vadd.f32 %v2510, %v2578
        %v2611 = vadd.f32 %v2511, %v2579
        %v2612 = vadd.f32 %v2512, %v2580
        %v2613 = vadd.f32 %v2513, %v2581
        %v2614 = vadd.f32 %v2514, %v2582
        %v2615 = vadd.f32 %v2515, %v2583
        %v2616 = vadd.f32 %v2516, %v2584
        %v2617 = vadd.f32 %v2517, %v2585
        %v2618 = vadd.f32 %v2518, %v2586
        %v2619 = vadd.f32 %v2519, %v2587
        %v2620 = vadd.f32 %v2520, %v2588
        %v2621 = vadd.f32 %v2521, %v2589
        %v2622 = vadd.f32 %v2522, %v2590
        %v2623 = vadd.f32 %v2523, %v2591
        %v2624 = vadd.f32 %v2524, %v2592
        %v2625 = vadd.f32 %v2525, %v2593
        %v2626 = vadd.f32 %v2526, %v2594
        %v2627 = vadd.f32 %v2527, %v2595
        %v2628 = vadd.f32 %v2528, %v2596
        %v2629 = vadd.f32 %v2529, %v2597
        %v2630 = vadd.f32 %v2530, %v2598
        %v2631 = vadd.f32 %v2531, %v2599
        %v2632 = vadd.f32 %v2532, %v2600
        %v2633 = vadd.f32 %v2533, %v2601
        %v2634 = vadd.f32 %v2534, %v2602
        %v2635 = vadd.f32 %v2535, %v2603
        %v2636 = vadd.f32 %v2536, %v2604
        %v2637 = vadd.f32 %v2537, %v2605
        %v2638 = vadd.f32 %v2538, %v2606
        %v2639 = vadd.f32 %v2539, %v2607
        %v2640 = vld [vmem:[%s5] sm:$0xff]
        %v2641 = vld [vmem:[%s6] sm:$0xff]
        %2643 = vset.pattern.permute.xlu0 0
        %2644 = vperm.xlu0 %2643, %v2641
        %v2645 = vpop.permute.xlu0 %2644
        %v2648 = vsel %vm1657, %v2640, 0
        %v2651 = vsel %vm1657, %v2608, 0
        %v2654 = vsel %vm1657, %v2609, 0
        %v2657 = vsel %vm1657, %v2610, 0
        %v2660 = vsel %vm1657, %v2611, 0
        %v2663 = vsel %vm1657, %v2612, 0
        %v2666 = vsel %vm1657, %v2613, 0
        %v2669 = vsel %vm1657, %v2614, 0
        %v2672 = vsel %vm1657, %v2615, 0
        %v2675 = vsel %vm1657, %v2616, 0
        %v2678 = vsel %vm1657, %v2617, 0
        %v2681 = vsel %vm1657, %v2618, 0
        %v2684 = vsel %vm1657, %v2619, 0
        %v2687 = vsel %vm1657, %v2620, 0
        %v2690 = vsel %vm1657, %v2621, 0
        %v2693 = vsel %vm1657, %v2622, 0
        %v2696 = vsel %vm1657, %v2623, 0
        %v2699 = vsel %vm1657, %v2624, 0
        %v2702 = vsel %vm1657, %v2625, 0
        %v2705 = vsel %vm1657, %v2626, 0
        %v2708 = vsel %vm1657, %v2627, 0
        %v2711 = vsel %vm1657, %v2628, 0
        %v2714 = vsel %vm1657, %v2629, 0
        %v2717 = vsel %vm1657, %v2630, 0
        %v2720 = vsel %vm1657, %v2631, 0
        %v2723 = vsel %vm1657, %v2632, 0
        %v2726 = vsel %vm1657, %v2633, 0
        %v2729 = vsel %vm1657, %v2634, 0
        %v2732 = vsel %vm1657, %v2635, 0
        %v2735 = vsel %vm1657, %v2636, 0
        %v2738 = vsel %vm1657, %v2637, 0
        %v2741 = vsel %vm1657, %v2638, 0
        %v2744 = vsel %vm1657, %v2639, 0
        %2746 = vmatprep.subr.mxu0 0.0
        %2747 = vmatpush1.xpose.msra.mxu0 %v2651
        %2748 = vmatprep.subr.mxu0 0.0
        %2749 = vmatpush1.xpose.msra.mxu0 %v2654
        %2750 = vmatprep.subr.mxu0 0.0
        %2751 = vmatpush1.xpose.msra.mxu0 %v2657
        %2752 = vmatprep.subr.mxu0 0.0
        %2753 = vmatpush1.xpose.msra.mxu0 %v2660
        %2754 = vmatprep.subr.mxu0 0.0
        %2755 = vmatpush1.xpose.msra.mxu0 %v2663
        %2756 = vmatprep.subr.mxu0 0.0
        %2757 = vmatpush1.xpose.msra.mxu0 %v2666
        %2758 = vmatprep.subr.mxu0 0.0
        %2759 = vmatpush1.xpose.msra.mxu0 %v2669
        %2760 = vmatprep.subr.mxu0 0.0
        %2761 = vmatpush1.xpose.msra.mxu0 %v2672
        %2762 = vmatprep.subr.mxu0 0.0
        %2763 = vmatpush1.xpose.msra.mxu0 %v2675
        %2764 = vmatprep.subr.mxu0 0.0
        %2765 = vmatpush1.xpose.msra.mxu0 %v2678
        %2766 = vmatprep.subr.mxu0 0.0
        %2767 = vmatpush1.xpose.msra.mxu0 %v2681
        %2768 = vmatprep.subr.mxu0 0.0
        %2769 = vmatpush1.xpose.msra.mxu0 %v2684
        %2770 = vmatprep.subr.mxu0 0.0
        %2771 = vmatpush1.xpose.msra.mxu0 %v2687
        %2772 = vmatprep.subr.mxu0 0.0
        %2773 = vmatpush1.xpose.msra.mxu0 %v2690
        %2774 = vmatprep.subr.mxu0 0.0
        %2775 = vmatpush1.xpose.msra.mxu0 %v2693
        %2776 = vmatprep.subr.mxu0 0.0
        %2777 = vmatpush1.xpose.msra.mxu0 %v2696
        %2778 = vmatprep.subr.mxu0 0.0
        %2779 = vmatpush1.xpose.msra.mxu0 %v2699
        %2780 = vmatprep.subr.mxu0 0.0
        %2781 = vmatpush1.xpose.msra.mxu0 %v2702
        %2782 = vmatprep.subr.mxu0 0.0
        %2783 = vmatpush1.xpose.msra.mxu0 %v2705
        %2784 = vmatprep.subr.mxu0 0.0
        %2785 = vmatpush1.xpose.msra.mxu0 %v2708
        %2786 = vmatprep.subr.mxu0 0.0
        %2787 = vmatpush1.xpose.msra.mxu0 %v2711
        %2788 = vmatprep.subr.mxu0 0.0
        %2789 = vmatpush1.xpose.msra.mxu0 %v2714
        %2790 = vmatprep.subr.mxu0 0.0
        %2791 = vmatpush1.xpose.msra.mxu0 %v2717
        %2792 = vmatprep.subr.mxu0 0.0
        %2793 = vmatpush1.xpose.msra.mxu0 %v2720
        %2794 = vmatprep.subr.mxu0 0.0
        %2795 = vmatpush1.xpose.msra.mxu0 %v2723
        %2796 = vmatprep.subr.mxu0 0.0
        %2797 = vmatpush1.xpose.msra.mxu0 %v2726
        %2798 = vmatprep.subr.mxu0 0.0
        %2799 = vmatpush1.xpose.msra.mxu0 %v2729
        %2800 = vmatprep.subr.mxu0 0.0
        %2801 = vmatpush1.xpose.msra.mxu0 %v2732
        %2802 = vmatprep.subr.mxu0 0.0
        %2803 = vmatpush1.xpose.msra.mxu0 %v2735
        %2804 = vmatprep.subr.mxu0 0.0
        %2805 = vmatpush1.xpose.msra.mxu0 %v2738
        %2806 = vmatprep.subr.mxu0 0.0
        %2807 = vmatpush1.xpose.msra.mxu0 %v2741
        %2808 = vmatprep.subr.mxu0 0.0
        %2809 = vmatpush1.xpose.msra.mxu0 %v2744
        %2810 = vmatprep.mubr.f32.mxu0 0.0
        %2811 = vmatmul.mubr.f32.gmra.mrb[0].mxu0 %v2648
        %v2812 = vpop.f32.mrb[0].mxu0
        %v2813 = vadd.f32 %v2645, %v2812
        %v2814 = vpop.f32.mrb[0].mxu0
        %v2815 = vadd.f32 %v2645, %v2814
        %2816 = vdwg.mxu0
        %v2817 = vmax.f32 %v2813, 0.0
        %v2818 = vmax.f32 %v2815, 0.0
        %2819 = vst [vmem:[%s271] sm:$0xff] %v2817
        %2820 = vst [vmem:[%s271 + $0x8] sm:$0xff] %v2818
        %s2821 = sand.u32 %s181, 1
        %s2822 = scalar_lea.sflag [#allocation5], %s2821
        %s2823 = sand.u32 %s181, 1
        %s2824 = smul.addr %s2823, 16
        %s2825 = scalar_lea.vmem [#allocation4], %s2824
        // Predicated region
        $region49: #{tpu_custom_call.1} parent=47 // pred_check
          %p2826 = pneg %p191
        $region50: #{tpu_custom_call.1} parent=47 // pred_check_branch
          %2828 = sbr.rel (%p2826) target = $region52
        $region51: #{tpu_custom_call.1} parent=47 // pred_region
          %s2830 = ssub.s32 256, 256
          %2831 = vsyncadd %s2822, %s2830
          %s2832 = smul.addr %s21, 2
          %s2833 = smul.addr %s2832, 128
          %s2834 = scalar_lea.hbm %s7, %s2833
          %s2836 = sshll.u32 %s2825, 4
          %s2837 = int_to_ptr.vmem [resolvable:$true] %s2836
          %2839 = dma.vmem_to_hbm [thread:$0]  %s2837, 256, %s2834, %s2822
        $region52: #{tpu_custom_call.1} parent=47 // pred_fallthru
          _
      $region48: #{tpu_custom_call.1} parent=5 // pred_fallthru
        _
      %p2840 = scmp.le.s32.totalorder 2, %s16
      // Predicated region
      $region53: #{tpu_custom_call.1} parent=5 // pred_check
        %p2841 = pneg %p2840
      $region54: #{tpu_custom_call.1} parent=5 // pred_check_branch
        %2843 = sbr.rel (%p2841) target = $region56
      $region55: #{tpu_custom_call.1} parent=5 // pred_region
        %s2844 = ssub.s32 %s16, 2
        // Predicated region
        $region57: #{tpu_custom_call.1} parent=55 // pred_check
          %p2845 = pneg %p197
        $region58: #{tpu_custom_call.1} parent=55 // pred_check_branch
          %2847 = sbr.rel (%p2845) target = $region60
        $region59: #{tpu_custom_call.1} parent=55 // pred_region
          %s2848 = sand.u32 %s182, 1
          %s2849 = scalar_lea.sflag [#allocation5], %s2848
          %s2850 = sand.u32 %s182, 1
          %s2851 = smul.addr %s2850, 16
          %s2852 = scalar_lea.vmem [#allocation4], %s2851
          %2853 = dma.done %s2849, 256
        $region60: #{tpu_custom_call.1} parent=55 // pred_fallthru
          _
      $region56: #{tpu_custom_call.1} parent=5 // pred_fallthru
        _
    $region6: #{tpu_custom_call.1} parent=1 // loop_footer
      %s20 = sadd.s32 1, %s16
    $region7: #{tpu_custom_call.1} parent=1 // loop_footer_branch
      %15 = sbr.rel target = $region3
    $region8: #{tpu_custom_call.1} parent=1 // loop_exit
      _
    %2854 = vsyncpa [#allocation5], 1
    %s2855 = scalar_lea.sflag [#allocation5], 1
    %2856 = vsyncpa %s2855, 1

</llo_original>
